<compile_context>
chip_gen: v7x
topology: tpu7x:2x2x1
jax: 0.10.0
libtpu: 0.0.40
codegen_flags: <defaults>
</compile_context>

<pallas_src>
import functools

import jax
import jax.numpy as jnp
from jax import lax
from jax.experimental import pallas as pl
from jax.experimental.pallas import tpu as pltpu


# ---------------------------------------------------------------------------
# Small helpers
# ---------------------------------------------------------------------------

def _round_up(x, m):
    return (x + m - 1) // m * m


def _largest_divisor_leq(n, cap):
    cap = int(max(1, min(n, cap)))
    for d in range(cap, 0, -1):
        if n % d == 0:
            return d
    return 1


def _pick_rows(Ho, Wo, cap):
    """Largest divisor of Ho <= cap, preferring (rows*Wo) % 256 == 0 (MXU)."""
    best = _largest_divisor_leq(Ho, cap)
    for d in range(best, max(best // 2, 0), -1):
        if Ho % d == 0 and (d * Wo) % 256 == 0:
            return d
    return best


def _vmem_sizes():
    """Generation-aware VMEM budget/limit (v5e/v6e: 128 MiB, v7x: 64 MiB)."""
    fallback_cap = 64 * 1024 * 1024
    try:
        cap = int(getattr(pltpu.get_tpu_info(), "vmem_capacity_bytes", fallback_cap))
        if cap <= 0:
            cap = fallback_cap
    except Exception:
        cap = fallback_cap
    budget = int(cap * 0.65)                      # what the tiler may plan for
    limit = min(int(cap * 0.85), 128 * 1024 * 1024)
    return budget, limit


# ---------------------------------------------------------------------------
# Kernels
# ---------------------------------------------------------------------------

def _conv_stats_kernel(xm_ref, xh_ref, w_ref, y_ref, s_ref, *, th, Wo, Wq):
    """Pass 1: fused im2col + conv matmul + per-tile BN partial stats.

    xm_ref: (1, th, 4*Wq, Cin) bf16  -- row-pair block of the phase-split input
    xh_ref: (1, 1,  4*Wq, Cin) bf16  -- 1-pair halo (first pair of the next block)
    w_ref : (16, Cin, Cp)      bf16  -- per-tap weights, resident
    y_ref : (1, th, Wo, Cp)    bf16  -- pre-BN activations
    s_ref : (1, 2, Cp)         f32   -- this tile's (sum, sumsq) slot
    """
    main = xm_ref[0]                               # (th, 4*Wq, Cin)
    halo = xh_ref[0]                               # (1,  4*Wq, Cin)
    if th > 1:
        shifted = jnp.concatenate([main[1:], halo], axis=0)
    else:
        shifted = halo
    rows = (main, shifted)                         # indexed by dh = kh // 2

    acc = None
    for kh in range(4):
        dh, a = divmod(kh, 2)
        src = rows[dh]
        for kw in range(4):
            dw, b = divmod(kw, 2)
            c0 = (a * 2 + b) * Wq + dw             # column offset inside 4*Wq
            tap = src[:, c0:c0 + Wo, :]            # (th, Wo, Cin)
            tap2d = tap.reshape(th * Wo, tap.shape[-1])
            contrib = jnp.dot(tap2d, w_ref[kh * 4 + kw],
                              preferred_element_type=jnp.float32)
            acc = contrib if acc is None else acc + contrib

    # bf16 activations for the HBM round-trip; stats stay f32 (from the acc).
    y_ref[...] = acc.reshape(1, th, Wo, acc.shape[-1]).astype(y_ref.dtype)
    s_ref[0, 0:1, :] = jnp.sum(acc, axis=0, keepdims=True)
    s_ref[0, 1:2, :] = jnp.sum(acc * acc, axis=0, keepdims=True)


def _bn_lrelu_kernel(y_ref, scale_ref, shift_ref, o_ref, *, negative_slope):
    """Pass 2: z = y*scale + shift ; LeakyReLU.  Pure f32 elementwise (VPU).

    y_ref: (1, th2, Wo, Cp) bf16    scale/shift: (1, Cp) f32 (resident)
    o_ref: (1, th2, Wo, Cp) out_dtype
    """
    z = y_ref[...].astype(jnp.float32) * scale_ref[...] + shift_ref[...]
    o_ref[...] = jnp.where(z > 0.0, z, negative_slope * z).astype(o_ref.dtype)


# ---------------------------------------------------------------------------
# Wrapper
# ---------------------------------------------------------------------------

def convblock_forward(x, weight, gamma, beta, *,
                      eps=1e-5, negative_slope=0.2,
                      in_layout="NCHW", out_layout="NCHW",
                      out_dtype=jnp.float32, tile_rows=None):
    """ConvBlock forward.

    x: (N, Cin, H, W) f32 if in_layout == "NCHW", else (N, H, W, Cin).
    weight: (Cout, Cin, 4, 4); gamma/beta: (Cout,).
    Returns (N, Cout, H/2, W/2) (NCHW) or (N, H/2, W/2, Cout) (NHWC).
    """
    if in_layout == "NCHW":
        N, Cin, H, W = x.shape
        xp = jnp.pad(x.astype(jnp.bfloat16),
                     ((0, 0), (0, 0), (1, 1), (1, 1))).transpose(0, 2, 3, 1)
    elif in_layout == "NHWC":
        N, H, W, Cin = x.shape
        xp = jnp.pad(x.astype(jnp.bfloat16),
                     ((0, 0), (1, 1), (1, 1), (0, 0)))
    else:
        raise ValueError(f"unknown in_layout {in_layout}")

    Cout = weight.shape[0]
    assert weight.shape == (Cout, Cin, 4, 4), weight.shape
    assert H % 2 == 0 and W % 2 == 0, "even spatial dims required"

    Ho, Wo = H // 2, W // 2
    Hq, Wq = Ho + 1, Wo + 1
    L = 4 * Wq                                     # folded (row-parity, col-parity, wq)
    Cp = _round_up(Cout, 128)                      # lane-dense output channels

    # Phase-split input (one cheap, ~input-sized copy; XLA fuses pad/cast/transpose):
    # x_prep[n, hq, (hr*2+wr)*Wq + wq, ci] = xpad[n, 2*hq+hr, 2*wq+wr, ci]
    xprep = xp.reshape(N, Hq, 2, Wq, 2, Cin).transpose(0, 1, 2, 4, 3, 5)
    xprep = xprep.reshape(N, Hq, L, Cin)

    # Per-tap weights: wt[kh*4+kw, ci, co] = weight[co, ci, kh, kw], Cout padded to Cp.
    wt = weight.astype(jnp.bfloat16).transpose(2, 3, 1, 0).reshape(16, Cin, Cout)
    wt = jnp.pad(wt, ((0, 0), (0, 0), (0, Cp - Cout)))

    budget, limit = _vmem_sizes()

    # ---- pass-1 tile sizing (VMEM accounting uses padded (sublane, lane) layout)
    cin_lane = _round_up(Cin, 128)
    L_v = _round_up(L, 16)
    Wo_v = _round_up(Wo, 16)
    wbytes = 16 * _round_up(Cin, 16) * Cp * 2
    w_bufs = 1 if wbytes >= (1 << 20) else 2       # single-buffer big resident weights
    per_row = (2 * L_v * cin_lane * 2              # main x block, 2 buffers (bf16)
               + 2 * Wo_v * Cp * 2                 # y out block, 2 buffers (bf16)
               + L_v * cin_lane * 2                # shifted-rows temp (concat)
               + _round_up(Wo, 8) * Cp * 4         # f32 accumulator
               + 2 * Wo_v * cin_lane * 2)          # tap temporaries
    resident = (w_bufs * wbytes
                + 2 * L_v * cin_lane * 2           # halo block, 2 buffers
                + 2 * 8 * Cp * 4                   # stats block, 2 buffers
                + (2 << 20))                       # compiler-scratch headroom
    if tile_rows is None:
        th = _pick_rows(Ho, Wo, max(1, (budget - resident) // per_row))
    else:
        th = _largest_divisor_leq(Ho, int(tile_rows))
    T = Ho // th

    cparams = pltpu.CompilerParams(
        dimension_semantics=("parallel", "parallel"),   # independent tiles -> megacore
        vmem_limit_bytes=limit,
    )

    w_spec_kw = {}
    if w_bufs == 1:
        # Constant-index resident block: no need for a double buffer (saves VMEM
        # on v7x for deep layers; never triggered for small weights).
        w_spec_kw["pipeline_mode"] = pl.Buffered(1)

    kern1 = functools.partial(_conv_stats_kernel, th=th, Wo=Wo, Wq=Wq)
    y, stats = pl.pallas_call(
        kern1,
        out_shape=(
            jax.ShapeDtypeStruct((N, Ho, Wo, Cp), jnp.bfloat16),
            jax.ShapeDtypeStruct((N * T, 2, Cp), jnp.float32),
        ),
        grid=(N, T),
        in_specs=[
            pl.BlockSpec((1, th, L, Cin), lambda n, i: (n, i, 0, 0)),
            pl.BlockSpec((1, 1, L, Cin), lambda n, i: (n, (i + 1) * th, 0, 0)),
            pl.BlockSpec((16, Cin, Cp), lambda n, i: (0, 0, 0), **w_spec_kw),
        ],
        out_specs=(
            pl.BlockSpec((1, th, Wo, Cp), lambda n, i: (n, i, 0, 0)),
            pl.BlockSpec((1, 2, Cp), lambda n, i: (n * T + i, 0, 0)),
        ),
        compiler_params=cparams,
        cost_estimate=pl.CostEstimate(
            flops=2 * N * Ho * Wo * 16 * Cin * Cp,
            transcendentals=0,
            bytes_accessed=int(xprep.size * 2 * (th + 1) // th) + wt.size * 2
                           + N * Ho * Wo * Cp * 2 + N * T * 2 * Cp * 4,
        ),
    )(xprep, xprep, wt)

    # ---- tiny cross-tile reduction + BN parameter folding (f32, in JAX) -----
    # NOTE: var = E[y^2] - mean^2 with f32 partials; adequate here, but large M
    # with large |mean|/std could benefit from a mean-centered (Chan) reduction.
    count = jnp.float32(N * Ho * Wo)               # every tile row is a real output
    mean = jnp.sum(stats[:, 0, :], axis=0) / count                 # (Cp,)
    var = jnp.maximum(jnp.sum(stats[:, 1, :], axis=0) / count - mean * mean, 0.0)
    inv_std = lax.rsqrt(var + eps)
    gamma_p = jnp.pad(gamma.astype(jnp.float32), (0, Cp - Cout), constant_values=1.0)
    beta_p = jnp.pad(beta.astype(jnp.float32), (0, Cp - Cout))
    # Padded channels: y columns are exactly 0 -> mean/var 0 -> output 0 (stripped).
    scale = (gamma_p * inv_std).reshape(1, Cp)
    shift = (beta_p - mean * gamma_p * inv_std).reshape(1, Cp)

    # ---- pass 2: streaming BN + LeakyReLU, its own (larger) tile ------------
    out_itemsize = jnp.dtype(out_dtype).itemsize
    per_row2 = (2 * Wo_v * Cp * 2                  # y in, 2 buffers (bf16)
                + 2 * Wo_v * Cp * out_itemsize     # out, 2 buffers
                + Wo_v * Cp * 4)                   # f32 temp
    th2 = _largest_divisor_leq(Ho, max(1, (budget - (2 << 20)) // per_row2))
    T2 = Ho // th2

    kern2 = functools.partial(_bn_lrelu_kernel, negative_slope=negative_slope)
    out_full = pl.pallas_call(
        kern2,
        out_shape=jax.ShapeDtypeStruct((N, Ho, Wo, Cp), out_dtype),
        grid=(N, T2),
        in_specs=[
            pl.BlockSpec((1, th2, Wo, Cp), lambda n, j: (n, j, 0, 0)),
            pl.BlockSpec((1, Cp), lambda n, j: (0, 0)),     # scale resident
            pl.BlockSpec((1, Cp), lambda n, j: (0, 0)),     # shift resident
        ],
        out_specs=pl.BlockSpec((1, th2, Wo, Cp), lambda n, j: (n, j, 0, 0)),
        compiler_params=cparams,
        cost_estimate=pl.CostEstimate(
            flops=4 * N * Ho * Wo * Cp,
            transcendentals=0,
            bytes_accessed=N * Ho * Wo * Cp * (2 + out_itemsize) + 2 * Cp * 4,
        ),
    )(y, scale, shift)

    out = out_full if Cp == Cout else out_full[..., :Cout]  # strip lane padding
    if out_layout == "NHWC":
        return out                                 # lane-dense, no transpose
    return out.transpose(0, 3, 1, 2)               # NCHW for module parity


# ---------------------------------------------------------------------------
# Pure-JAX reference (mirrors the PyTorch forward, train-mode BN)
# ---------------------------------------------------------------------------

def convblock_reference(x, weight, gamma, beta):
    y = lax.conv_general_dilated(
        x, weight, window_strides=(2, 2), padding=((1, 1), (1, 1)),
        dimension_numbers=("NCHW", "OIHW", "NCHW"))
    mean = jnp.mean(y, axis=(0, 2, 3), keepdims=True)
    var = jnp.mean(jnp.square(y - mean), axis=(0, 2, 3), keepdims=True)
    yhat = (y - mean) * lax.rsqrt(var + 1e-5)
    z = yhat * gamma.reshape(1, -1, 1, 1) + beta.reshape(1, -1, 1, 1)
    return jnp.where(z > 0.0, z, 0.2 * z)


if __name__ == "__main__":
    key = jax.random.PRNGKey(0)
    N, Cin, H, W = 2, 4, 16, 16
    Cout = 8

    kx, kw_ = jax.random.split(key)
    x = jax.random.normal(kx, (N, Cin, H, W), dtype=jnp.float32)

    # Conv2d default init: kaiming_uniform(a=sqrt(5)) => U(-1/sqrt(fan_in), 1/sqrt(fan_in))
    fan_in = Cin * 4 * 4
    bound = 1.0 / (fan_in ** 0.5)
    weight = jax.random.uniform(kw_, (Cout, Cin, 4, 4), minval=-bound, maxval=bound,
                                dtype=jnp.float32)
    # BatchNorm2d default init
    gamma = jnp.ones((Cout,), dtype=jnp.float32)
    beta = jnp.zeros((Cout,), dtype=jnp.float32)

    fwd = jax.jit(convblock_forward,
                  static_argnames=("in_layout", "out_layout", "out_dtype", "tile_rows"))

    ref = convblock_reference(x, weight, gamma, beta)

    # Default path: auto tile sizing, NCHW output (module parity).
    out = jax.block_until_ready(fwd(x, weight, gamma, beta))
    assert out.shape == (N, Cout, H // 2, W // 2), out.shape
    # bf16 matmul operands (f32 accumulation) => relaxed tolerance vs the f32 reference.
    assert jnp.allclose(out, ref, rtol=2e-2, atol=2e-2), float(jnp.max(jnp.abs(out - ref)))

    # Multi-tile path (exercises the cross-tile halo + in-kernel concat).
    out_mt = jax.block_until_ready(fwd(x, weight, gamma, beta, tile_rows=4))
    assert jnp.allclose(out_mt, ref, rtol=2e-2, atol=2e-2), \
        float(jnp.max(jnp.abs(out_mt - ref)))

    # NHWC output path (skips the final transpose for chained blocks).
    out_nhwc = jax.block_until_ready(fwd(x, weight, gamma, beta, out_layout="NHWC"))
    assert jnp.allclose(out_nhwc, ref.transpose(0, 2, 3, 1), rtol=2e-2, atol=2e-2)

    print("KERNEL_OK")
</pallas_src>

<mosaic_0001>
module attributes {stable_mosaic.version = 11 : i64} {
  func.func @_conv_stats_kernel(%arg0: i32, %arg1: i32, %arg2: memref<1x8x36x4xbf16, #tpu.memory_space<vmem>>, %arg3: memref<1x1x36x4xbf16, #tpu.memory_space<vmem>>, %arg4: memref<16x4x128xbf16, #tpu.memory_space<vmem>>, %arg5: memref<1x8x8x128xbf16, #tpu.memory_space<vmem>>, %arg6: memref<1x2x128xf32, #tpu.memory_space<vmem>>) attributes {dimension_semantics = [#tpu.dimension_semantics<parallel>, #tpu.dimension_semantics<parallel>], iteration_bounds = array<i64: 2, 1>, scalar_prefetch = 0 : i64, scratch_operands = 0 : i64, tpu.core_type = #tpu.core_type<tc>, window_params = [{transform_indices = @transform_0, window_bounds = array<i64: 1, 8, 36, 4>}, {transform_indices = @transform_1, window_bounds = array<i64: 1, 1, 36, 4>}, {pipeline_mode = #tpu.pipeline_mode<synchronous>, transform_indices = @transform_2, window_bounds = array<i64: 16, 4, 128>}, {transform_indices = @transform_3, window_bounds = array<i64: 1, 8, 8, 128>}, {transform_indices = @transform_4, window_bounds = array<i64: 1, 2, 128>}]} {
    %c0 = arith.constant 0 : index
    %c0_0 = arith.constant 0 : index
    %c0_1 = arith.constant 0 : index
    %c0_2 = arith.constant 0 : index
    %0 = vector.load %arg2[%c0, %c0_0, %c0_1, %c0_2] : memref<1x8x36x4xbf16, #tpu.memory_space<vmem>>, vector<1x8x36x4xbf16>
    %1 = vector.shape_cast %0 : vector<1x8x36x4xbf16> to vector<8x36x4xbf16>
    %c0_3 = arith.constant 0 : index
    %c0_4 = arith.constant 0 : index
    %c0_5 = arith.constant 0 : index
    %c0_6 = arith.constant 0 : index
    %2 = vector.load %arg3[%c0_3, %c0_4, %c0_5, %c0_6] : memref<1x1x36x4xbf16, #tpu.memory_space<vmem>>, vector<1x1x36x4xbf16>
    %3 = vector.shape_cast %2 : vector<1x1x36x4xbf16> to vector<1x36x4xbf16>
    %4 = vector.extract_strided_slice %1 {offsets = [1, 0, 0], sizes = [7, 36, 4], strides = [1, 1, 1]} : vector<8x36x4xbf16> to vector<7x36x4xbf16>
    %5 = tpu.concatenate %4, %3 in 0 : vector<7x36x4xbf16>, vector<1x36x4xbf16> -> vector<8x36x4xbf16>
    %6 = vector.extract_strided_slice %1 {offsets = [0, 0, 0], sizes = [8, 8, 4], strides = [1, 1, 1]} : vector<8x36x4xbf16> to vector<8x8x4xbf16>
    %7 = vector.shape_cast %6 : vector<8x8x4xbf16> to vector<64x4xbf16>
    %c0_7 = arith.constant 0 : index
    %c0_8 = arith.constant 0 : index
    %c0_9 = arith.constant 0 : index
    %8 = vector.load %arg4[%c0_7, %c0_8, %c0_9] : memref<16x4x128xbf16, #tpu.memory_space<vmem>>, vector<1x4x128xbf16>
    %9 = vector.shape_cast %8 : vector<1x4x128xbf16> to vector<4x128xbf16>
    %cst = arith.constant dense<0.000000e+00> : vector<64x128xf32>
    %10 = tpu.matmul %7, %9, %cst {dimension_numbers = #tpu.dot_dimension_numbers<[1], [0], [0], [1], [0, 0, 1, 1], [], []>} : vector<64x4xbf16>, vector<4x128xbf16>, vector<64x128xf32> -> vector<64x128xf32>
    %11 = vector.extract_strided_slice %1 {offsets = [0, 9, 0], sizes = [8, 8, 4], strides = [1, 1, 1]} : vector<8x36x4xbf16> to vector<8x8x4xbf16>
    %12 = vector.shape_cast %11 : vector<8x8x4xbf16> to vector<64x4xbf16>
    %c1 = arith.constant 1 : index
    %c0_10 = arith.constant 0 : index
    %c0_11 = arith.constant 0 : index
    %13 = vector.load %arg4[%c1, %c0_10, %c0_11] : memref<16x4x128xbf16, #tpu.memory_space<vmem>>, vector<1x4x128xbf16>
    %14 = vector.shape_cast %13 : vector<1x4x128xbf16> to vector<4x128xbf16>
    %cst_12 = arith.constant dense<0.000000e+00> : vector<64x128xf32>
    %15 = tpu.matmul %12, %14, %cst_12 {dimension_numbers = #tpu.dot_dimension_numbers<[1], [0], [0], [1], [0, 0, 1, 1], [], []>} : vector<64x4xbf16>, vector<4x128xbf16>, vector<64x128xf32> -> vector<64x128xf32>
    %16 = arith.addf %10, %15 : vector<64x128xf32>
    %17 = vector.extract_strided_slice %1 {offsets = [0, 1, 0], sizes = [8, 8, 4], strides = [1, 1, 1]} : vector<8x36x4xbf16> to vector<8x8x4xbf16>
    %18 = vector.shape_cast %17 : vector<8x8x4xbf16> to vector<64x4xbf16>
    %c2 = arith.constant 2 : index
    %c0_13 = arith.constant 0 : index
    %c0_14 = arith.constant 0 : index
    %19 = vector.load %arg4[%c2, %c0_13, %c0_14] : memref<16x4x128xbf16, #tpu.memory_space<vmem>>, vector<1x4x128xbf16>
    %20 = vector.shape_cast %19 : vector<1x4x128xbf16> to vector<4x128xbf16>
    %cst_15 = arith.constant dense<0.000000e+00> : vector<64x128xf32>
    %21 = tpu.matmul %18, %20, %cst_15 {dimension_numbers = #tpu.dot_dimension_numbers<[1], [0], [0], [1], [0, 0, 1, 1], [], []>} : vector<64x4xbf16>, vector<4x128xbf16>, vector<64x128xf32> -> vector<64x128xf32>
    %22 = arith.addf %16, %21 : vector<64x128xf32>
    %23 = vector.extract_strided_slice %1 {offsets = [0, 10, 0], sizes = [8, 8, 4], strides = [1, 1, 1]} : vector<8x36x4xbf16> to vector<8x8x4xbf16>
    %24 = vector.shape_cast %23 : vector<8x8x4xbf16> to vector<64x4xbf16>
    %c3 = arith.constant 3 : index
    %c0_16 = arith.constant 0 : index
    %c0_17 = arith.constant 0 : index
    %25 = vector.load %arg4[%c3, %c0_16, %c0_17] : memref<16x4x128xbf16, #tpu.memory_space<vmem>>, vector<1x4x128xbf16>
    %26 = vector.shape_cast %25 : vector<1x4x128xbf16> to vector<4x128xbf16>
    %cst_18 = arith.constant dense<0.000000e+00> : vector<64x128xf32>
    %27 = tpu.matmul %24, %26, %cst_18 {dimension_numbers = #tpu.dot_dimension_numbers<[1], [0], [0], [1], [0, 0, 1, 1], [], []>} : vector<64x4xbf16>, vector<4x128xbf16>, vector<64x128xf32> -> vector<64x128xf32>
    %28 = arith.addf %22, %27 : vector<64x128xf32>
    %29 = vector.extract_strided_slice %1 {offsets = [0, 18, 0], sizes = [8, 8, 4], strides = [1, 1, 1]} : vector<8x36x4xbf16> to vector<8x8x4xbf16>
    %30 = vector.shape_cast %29 : vector<8x8x4xbf16> to vector<64x4xbf16>
    %c4 = arith.constant 4 : index
    %c0_19 = arith.constant 0 : index
    %c0_20 = arith.constant 0 : index
    %31 = vector.load %arg4[%c4, %c0_19, %c0_20] : memref<16x4x128xbf16, #tpu.memory_space<vmem>>, vector<1x4x128xbf16>
    %32 = vector.shape_cast %31 : vector<1x4x128xbf16> to vector<4x128xbf16>
    %cst_21 = arith.constant dense<0.000000e+00> : vector<64x128xf32>
    %33 = tpu.matmul %30, %32, %cst_21 {dimension_numbers = #tpu.dot_dimension_numbers<[1], [0], [0], [1], [0, 0, 1, 1], [], []>} : vector<64x4xbf16>, vector<4x128xbf16>, vector<64x128xf32> -> vector<64x128xf32>
    %34 = arith.addf %28, %33 : vector<64x128xf32>
    %35 = vector.extract_strided_slice %1 {offsets = [0, 27, 0], sizes = [8, 8, 4], strides = [1, 1, 1]} : vector<8x36x4xbf16> to vector<8x8x4xbf16>
    %36 = vector.shape_cast %35 : vector<8x8x4xbf16> to vector<64x4xbf16>
    %c5 = arith.constant 5 : index
    %c0_22 = arith.constant 0 : index
    %c0_23 = arith.constant 0 : index
    %37 = vector.load %arg4[%c5, %c0_22, %c0_23] : memref<16x4x128xbf16, #tpu.memory_space<vmem>>, vector<1x4x128xbf16>
    %38 = vector.shape_cast %37 : vector<1x4x128xbf16> to vector<4x128xbf16>
    %cst_24 = arith.constant dense<0.000000e+00> : vector<64x128xf32>
    %39 = tpu.matmul %36, %38, %cst_24 {dimension_numbers = #tpu.dot_dimension_numbers<[1], [0], [0], [1], [0, 0, 1, 1], [], []>} : vector<64x4xbf16>, vector<4x128xbf16>, vector<64x128xf32> -> vector<64x128xf32>
    %40 = arith.addf %34, %39 : vector<64x128xf32>
    %41 = vector.extract_strided_slice %1 {offsets = [0, 19, 0], sizes = [8, 8, 4], strides = [1, 1, 1]} : vector<8x36x4xbf16> to vector<8x8x4xbf16>
    %42 = vector.shape_cast %41 : vector<8x8x4xbf16> to vector<64x4xbf16>
    %c6 = arith.constant 6 : index
    %c0_25 = arith.constant 0 : index
    %c0_26 = arith.constant 0 : index
    %43 = vector.load %arg4[%c6, %c0_25, %c0_26] : memref<16x4x128xbf16, #tpu.memory_space<vmem>>, vector<1x4x128xbf16>
    %44 = vector.shape_cast %43 : vector<1x4x128xbf16> to vector<4x128xbf16>
    %cst_27 = arith.constant dense<0.000000e+00> : vector<64x128xf32>
    %45 = tpu.matmul %42, %44, %cst_27 {dimension_numbers = #tpu.dot_dimension_numbers<[1], [0], [0], [1], [0, 0, 1, 1], [], []>} : vector<64x4xbf16>, vector<4x128xbf16>, vector<64x128xf32> -> vector<64x128xf32>
    %46 = arith.addf %40, %45 : vector<64x128xf32>
    %47 = vector.extract_strided_slice %1 {offsets = [0, 28, 0], sizes = [8, 8, 4], strides = [1, 1, 1]} : vector<8x36x4xbf16> to vector<8x8x4xbf16>
    %48 = vector.shape_cast %47 : vector<8x8x4xbf16> to vector<64x4xbf16>
    %c7 = arith.constant 7 : index
    %c0_28 = arith.constant 0 : index
    %c0_29 = arith.constant 0 : index
    %49 = vector.load %arg4[%c7, %c0_28, %c0_29] : memref<16x4x128xbf16, #tpu.memory_space<vmem>>, vector<1x4x128xbf16>
    %50 = vector.shape_cast %49 : vector<1x4x128xbf16> to vector<4x128xbf16>
    %cst_30 = arith.constant dense<0.000000e+00> : vector<64x128xf32>
    %51 = tpu.matmul %48, %50, %cst_30 {dimension_numbers = #tpu.dot_dimension_numbers<[1], [0], [0], [1], [0, 0, 1, 1], [], []>} : vector<64x4xbf16>, vector<4x128xbf16>, vector<64x128xf32> -> vector<64x128xf32>
    %52 = arith.addf %46, %51 : vector<64x128xf32>
    %53 = vector.extract_strided_slice %5 {offsets = [0, 0, 0], sizes = [8, 8, 4], strides = [1, 1, 1]} : vector<8x36x4xbf16> to vector<8x8x4xbf16>
    %54 = vector.shape_cast %53 : vector<8x8x4xbf16> to vector<64x4xbf16>
    %c8 = arith.constant 8 : index
    %c0_31 = arith.constant 0 : index
    %c0_32 = arith.constant 0 : index
    %55 = vector.load %arg4[%c8, %c0_31, %c0_32] : memref<16x4x128xbf16, #tpu.memory_space<vmem>>, vector<1x4x128xbf16>
    %56 = vector.shape_cast %55 : vector<1x4x128xbf16> to vector<4x128xbf16>
    %cst_33 = arith.constant dense<0.000000e+00> : vector<64x128xf32>
    %57 = tpu.matmul %54, %56, %cst_33 {dimension_numbers = #tpu.dot_dimension_numbers<[1], [0], [0], [1], [0, 0, 1, 1], [], []>} : vector<64x4xbf16>, vector<4x128xbf16>, vector<64x128xf32> -> vector<64x128xf32>
    %58 = arith.addf %52, %57 : vector<64x128xf32>
    %59 = vector.extract_strided_slice %5 {offsets = [0, 9, 0], sizes = [8, 8, 4], strides = [1, 1, 1]} : vector<8x36x4xbf16> to vector<8x8x4xbf16>
    %60 = vector.shape_cast %59 : vector<8x8x4xbf16> to vector<64x4xbf16>
    %c9 = arith.constant 9 : index
    %c0_34 = arith.constant 0 : index
    %c0_35 = arith.constant 0 : index
    %61 = vector.load %arg4[%c9, %c0_34, %c0_35] : memref<16x4x128xbf16, #tpu.memory_space<vmem>>, vector<1x4x128xbf16>
    %62 = vector.shape_cast %61 : vector<1x4x128xbf16> to vector<4x128xbf16>
    %cst_36 = arith.constant dense<0.000000e+00> : vector<64x128xf32>
    %63 = tpu.matmul %60, %62, %cst_36 {dimension_numbers = #tpu.dot_dimension_numbers<[1], [0], [0], [1], [0, 0, 1, 1], [], []>} : vector<64x4xbf16>, vector<4x128xbf16>, vector<64x128xf32> -> vector<64x128xf32>
    %64 = arith.addf %58, %63 : vector<64x128xf32>
    %65 = vector.extract_strided_slice %5 {offsets = [0, 1, 0], sizes = [8, 8, 4], strides = [1, 1, 1]} : vector<8x36x4xbf16> to vector<8x8x4xbf16>
    %66 = vector.shape_cast %65 : vector<8x8x4xbf16> to vector<64x4xbf16>
    %c10 = arith.constant 10 : index
    %c0_37 = arith.constant 0 : index
    %c0_38 = arith.constant 0 : index
    %67 = vector.load %arg4[%c10, %c0_37, %c0_38] : memref<16x4x128xbf16, #tpu.memory_space<vmem>>, vector<1x4x128xbf16>
    %68 = vector.shape_cast %67 : vector<1x4x128xbf16> to vector<4x128xbf16>
    %cst_39 = arith.constant dense<0.000000e+00> : vector<64x128xf32>
    %69 = tpu.matmul %66, %68, %cst_39 {dimension_numbers = #tpu.dot_dimension_numbers<[1], [0], [0], [1], [0, 0, 1, 1], [], []>} : vector<64x4xbf16>, vector<4x128xbf16>, vector<64x128xf32> -> vector<64x128xf32>
    %70 = arith.addf %64, %69 : vector<64x128xf32>
    %71 = vector.extract_strided_slice %5 {offsets = [0, 10, 0], sizes = [8, 8, 4], strides = [1, 1, 1]} : vector<8x36x4xbf16> to vector<8x8x4xbf16>
    %72 = vector.shape_cast %71 : vector<8x8x4xbf16> to vector<64x4xbf16>
    %c11 = arith.constant 11 : index
    %c0_40 = arith.constant 0 : index
    %c0_41 = arith.constant 0 : index
    %73 = vector.load %arg4[%c11, %c0_40, %c0_41] : memref<16x4x128xbf16, #tpu.memory_space<vmem>>, vector<1x4x128xbf16>
    %74 = vector.shape_cast %73 : vector<1x4x128xbf16> to vector<4x128xbf16>
    %cst_42 = arith.constant dense<0.000000e+00> : vector<64x128xf32>
    %75 = tpu.matmul %72, %74, %cst_42 {dimension_numbers = #tpu.dot_dimension_numbers<[1], [0], [0], [1], [0, 0, 1, 1], [], []>} : vector<64x4xbf16>, vector<4x128xbf16>, vector<64x128xf32> -> vector<64x128xf32>
    %76 = arith.addf %70, %75 : vector<64x128xf32>
    %77 = vector.extract_strided_slice %5 {offsets = [0, 18, 0], sizes = [8, 8, 4], strides = [1, 1, 1]} : vector<8x36x4xbf16> to vector<8x8x4xbf16>
    %78 = vector.shape_cast %77 : vector<8x8x4xbf16> to vector<64x4xbf16>
    %c12 = arith.constant 12 : index
    %c0_43 = arith.constant 0 : index
    %c0_44 = arith.constant 0 : index
    %79 = vector.load %arg4[%c12, %c0_43, %c0_44] : memref<16x4x128xbf16, #tpu.memory_space<vmem>>, vector<1x4x128xbf16>
    %80 = vector.shape_cast %79 : vector<1x4x128xbf16> to vector<4x128xbf16>
    %cst_45 = arith.constant dense<0.000000e+00> : vector<64x128xf32>
    %81 = tpu.matmul %78, %80, %cst_45 {dimension_numbers = #tpu.dot_dimension_numbers<[1], [0], [0], [1], [0, 0, 1, 1], [], []>} : vector<64x4xbf16>, vector<4x128xbf16>, vector<64x128xf32> -> vector<64x128xf32>
    %82 = arith.addf %76, %81 : vector<64x128xf32>
    %83 = vector.extract_strided_slice %5 {offsets = [0, 27, 0], sizes = [8, 8, 4], strides = [1, 1, 1]} : vector<8x36x4xbf16> to vector<8x8x4xbf16>
    %84 = vector.shape_cast %83 : vector<8x8x4xbf16> to vector<64x4xbf16>
    %c13 = arith.constant 13 : index
    %c0_46 = arith.constant 0 : index
    %c0_47 = arith.constant 0 : index
    %85 = vector.load %arg4[%c13, %c0_46, %c0_47] : memref<16x4x128xbf16, #tpu.memory_space<vmem>>, vector<1x4x128xbf16>
    %86 = vector.shape_cast %85 : vector<1x4x128xbf16> to vector<4x128xbf16>
    %cst_48 = arith.constant dense<0.000000e+00> : vector<64x128xf32>
    %87 = tpu.matmul %84, %86, %cst_48 {dimension_numbers = #tpu.dot_dimension_numbers<[1], [0], [0], [1], [0, 0, 1, 1], [], []>} : vector<64x4xbf16>, vector<4x128xbf16>, vector<64x128xf32> -> vector<64x128xf32>
    %88 = arith.addf %82, %87 : vector<64x128xf32>
    %89 = vector.extract_strided_slice %5 {offsets = [0, 19, 0], sizes = [8, 8, 4], strides = [1, 1, 1]} : vector<8x36x4xbf16> to vector<8x8x4xbf16>
    %90 = vector.shape_cast %89 : vector<8x8x4xbf16> to vector<64x4xbf16>
    %c14 = arith.constant 14 : index
    %c0_49 = arith.constant 0 : index
    %c0_50 = arith.constant 0 : index
    %91 = vector.load %arg4[%c14, %c0_49, %c0_50] : memref<16x4x128xbf16, #tpu.memory_space<vmem>>, vector<1x4x128xbf16>
    %92 = vector.shape_cast %91 : vector<1x4x128xbf16> to vector<4x128xbf16>
    %cst_51 = arith.constant dense<0.000000e+00> : vector<64x128xf32>
    %93 = tpu.matmul %90, %92, %cst_51 {dimension_numbers = #tpu.dot_dimension_numbers<[1], [0], [0], [1], [0, 0, 1, 1], [], []>} : vector<64x4xbf16>, vector<4x128xbf16>, vector<64x128xf32> -> vector<64x128xf32>
    %94 = arith.addf %88, %93 : vector<64x128xf32>
    %95 = vector.extract_strided_slice %5 {offsets = [0, 28, 0], sizes = [8, 8, 4], strides = [1, 1, 1]} : vector<8x36x4xbf16> to vector<8x8x4xbf16>
    %96 = vector.shape_cast %95 : vector<8x8x4xbf16> to vector<64x4xbf16>
    %c15 = arith.constant 15 : index
    %c0_52 = arith.constant 0 : index
    %c0_53 = arith.constant 0 : index
    %97 = vector.load %arg4[%c15, %c0_52, %c0_53] : memref<16x4x128xbf16, #tpu.memory_space<vmem>>, vector<1x4x128xbf16>
    %98 = vector.shape_cast %97 : vector<1x4x128xbf16> to vector<4x128xbf16>
    %cst_54 = arith.constant dense<0.000000e+00> : vector<64x128xf32>
    %99 = tpu.matmul %96, %98, %cst_54 {dimension_numbers = #tpu.dot_dimension_numbers<[1], [0], [0], [1], [0, 0, 1, 1], [], []>} : vector<64x4xbf16>, vector<4x128xbf16>, vector<64x128xf32> -> vector<64x128xf32>
    %100 = arith.addf %94, %99 : vector<64x128xf32>
    %101 = vector.shape_cast %100 : vector<64x128xf32> to vector<1x8x8x128xf32>
    %102 = arith.truncf %101 : vector<1x8x8x128xf32> to vector<1x8x8x128xbf16>
    %c0_55 = arith.constant 0 : index
    %c0_56 = arith.constant 0 : index
    %c0_57 = arith.constant 0 : index
    %c0_58 = arith.constant 0 : index
    %103 = vector.load %arg5[%c0_55, %c0_56, %c0_57, %c0_58] : memref<1x8x8x128xbf16, #tpu.memory_space<vmem>>, vector<1x8x8x128xbf16>
    tpu.vector_store %arg5[%c0_55, %c0_56, %c0_57, %c0_58], %102 {strides = array<i32>} : memref<1x8x8x128xbf16, #tpu.memory_space<vmem>>, vector<1x8x8x128xbf16>,
    %cst_59 = arith.constant dense<0.000000e+00> : vector<128xf32>
    %104 = vector.multi_reduction <add>, %100, %cst_59 [0] : vector<64x128xf32> to vector<128xf32>
    %105 = vector.shape_cast %104 : vector<128xf32> to vector<1x128xf32>
    %c0_60 = arith.constant 0 : index
    %c0_61 = arith.constant 0 : index
    %c0_62 = arith.constant 0 : index
    %106 = vector.load %arg6[%c0_60, %c0_61, %c0_62] : memref<1x2x128xf32, #tpu.memory_space<vmem>>, vector<1x1x128xf32>
    %107 = vector.shape_cast %106 : vector<1x1x128xf32> to vector<1x128xf32>
    %108 = vector.shape_cast %105 : vector<1x128xf32> to vector<1x1x128xf32>
    tpu.vector_store %arg6[%c0_60, %c0_61, %c0_62], %108 {strides = array<i32>} : memref<1x2x128xf32, #tpu.memory_space<vmem>>, vector<1x1x128xf32>,
    %109 = arith.mulf %100, %100 : vector<64x128xf32>
    %cst_63 = arith.constant dense<0.000000e+00> : vector<128xf32>
    %110 = vector.multi_reduction <add>, %109, %cst_63 [0] : vector<64x128xf32> to vector<128xf32>
    %111 = vector.shape_cast %110 : vector<128xf32> to vector<1x128xf32>
    %c0_64 = arith.constant 0 : index
    %c1_65 = arith.constant 1 : index
    %c0_66 = arith.constant 0 : index
    %112 = vector.load %arg6[%c0_64, %c1_65, %c0_66] : memref<1x2x128xf32, #tpu.memory_space<vmem>>, vector<1x1x128xf32>
    %113 = vector.shape_cast %112 : vector<1x1x128xf32> to vector<1x128xf32>
    %114 = vector.shape_cast %111 : vector<1x128xf32> to vector<1x1x128xf32>
    tpu.vector_store %arg6[%c0_64, %c1_65, %c0_66], %114 {strides = array<i32>} : memref<1x2x128xf32, #tpu.memory_space<vmem>>, vector<1x1x128xf32>,
    return
  }
  func.func @transform_0(%arg0: i32, %arg1: i32) -> (i32, i32, i32, i32) {
    %c0_i32 = arith.constant 0 : i32
    %c0_i32_0 = arith.constant 0 : i32
    %c0_i32_1 = arith.constant 0 : i32
    return %arg0, %arg1, %c0_i32, %c0_i32_0 : i32, i32, i32, i32
  }
  func.func @transform_1(%arg0: i32, %arg1: i32) -> (i32, i32, i32, i32) {
    %c1_i32 = arith.constant 1 : i32
    %0 = arith.addi %arg1, %c1_i32 : i32
    %c8_i32 = arith.constant 8 : i32
    %1 = arith.muli %0, %c8_i32 : i32
    %c0_i32 = arith.constant 0 : i32
    %c0_i32_0 = arith.constant 0 : i32
    %c0_i32_1 = arith.constant 0 : i32
    return %arg0, %1, %c0_i32, %c0_i32_0 : i32, i32, i32, i32
  }
  func.func @transform_2(%arg0: i32, %arg1: i32) -> (i32, i32, i32) {
    %c0_i32 = arith.constant 0 : i32
    %c0_i32_0 = arith.constant 0 : i32
    %c0_i32_1 = arith.constant 0 : i32
    %c0_i32_2 = arith.constant 0 : i32
    return %c0_i32, %c0_i32_0, %c0_i32_1 : i32, i32, i32
  }
  func.func @transform_3(%arg0: i32, %arg1: i32) -> (i32, i32, i32, i32) {
    %c0_i32 = arith.constant 0 : i32
    %c0_i32_0 = arith.constant 0 : i32
    %c0_i32_1 = arith.constant 0 : i32
    return %arg0, %arg1, %c0_i32, %c0_i32_0 : i32, i32, i32, i32
  }
  func.func @transform_4(%arg0: i32, %arg1: i32) -> (i32, i32, i32) {
    %c1_i32 = arith.constant 1 : i32
    %0 = arith.muli %arg0, %c1_i32 : i32
    %1 = arith.addi %0, %arg1 : i32
    %c0_i32 = arith.constant 0 : i32
    %c0_i32_0 = arith.constant 0 : i32
    %c0_i32_1 = arith.constant 0 : i32
    return %1, %c0_i32, %c0_i32_0 : i32, i32, i32
  }
}

module attributes {stable_mosaic.version = 11 : i64} {
  func.func @_bn_lrelu_kernel(%arg0: i32, %arg1: i32, %arg2: memref<1x8x8x128xbf16, #tpu.memory_space<vmem>>, %arg3: memref<1x128xf32, #tpu.memory_space<vmem>>, %arg4: memref<1x128xf32, #tpu.memory_space<vmem>>, %arg5: memref<1x8x8x128xf32, #tpu.memory_space<vmem>>) attributes {dimension_semantics = [#tpu.dimension_semantics<parallel>, #tpu.dimension_semantics<parallel>], iteration_bounds = array<i64: 2, 1>, scalar_prefetch = 0 : i64, scratch_operands = 0 : i64, tpu.core_type = #tpu.core_type<tc>, window_params = [{transform_indices = @transform_0, window_bounds = array<i64: 1, 8, 8, 128>}, {pipeline_mode = #tpu.pipeline_mode<synchronous>, transform_indices = @transform_1, window_bounds = array<i64: 1, 128>}, {pipeline_mode = #tpu.pipeline_mode<synchronous>, transform_indices = @transform_2, window_bounds = array<i64: 1, 128>}, {transform_indices = @transform_3, window_bounds = array<i64: 1, 8, 8, 128>}]} {
    %c0 = arith.constant 0 : index
    %c0_0 = arith.constant 0 : index
    %c0_1 = arith.constant 0 : index
    %c0_2 = arith.constant 0 : index
    %0 = vector.load %arg2[%c0, %c0_0, %c0_1, %c0_2] : memref<1x8x8x128xbf16, #tpu.memory_space<vmem>>, vector<1x8x8x128xbf16>
    %1 = arith.extf %0 : vector<1x8x8x128xbf16> to vector<1x8x8x128xf32>
    %c0_3 = arith.constant 0 : index
    %c0_4 = arith.constant 0 : index
    %2 = vector.load %arg3[%c0_3, %c0_4] : memref<1x128xf32, #tpu.memory_space<vmem>>, vector<1x128xf32>
    %3 = vector.shape_cast %2 : vector<1x128xf32> to vector<1x1x1x128xf32>
    %4 = vector.broadcast %3 : vector<1x1x1x128xf32> to vector<1x8x8x128xf32>
    %5 = arith.mulf %1, %4 : vector<1x8x8x128xf32>
    %c0_5 = arith.constant 0 : index
    %c0_6 = arith.constant 0 : index
    %6 = vector.load %arg4[%c0_5, %c0_6] : memref<1x128xf32, #tpu.memory_space<vmem>>, vector<1x128xf32>
    %7 = vector.shape_cast %6 : vector<1x128xf32> to vector<1x1x1x128xf32>
    %8 = vector.broadcast %7 : vector<1x1x1x128xf32> to vector<1x8x8x128xf32>
    %9 = arith.addf %5, %8 : vector<1x8x8x128xf32>
    %cst = arith.constant 0.000000e+00 : f32
    %10 = vector.broadcast %cst : f32 to vector<1x8x8x128xf32>
    %11 = arith.cmpf ogt, %9, %10 : vector<1x8x8x128xf32>
    %cst_7 = arith.constant 2.000000e-01 : f32
    %12 = vector.broadcast %cst_7 : f32 to vector<1x8x8x128xf32>
    %13 = arith.mulf %12, %9 : vector<1x8x8x128xf32>
    %14 = arith.select %11, %9, %13 : vector<1x8x8x128xi1>, vector<1x8x8x128xf32>
    %c0_8 = arith.constant 0 : index
    %c0_9 = arith.constant 0 : index
    %c0_10 = arith.constant 0 : index
    %c0_11 = arith.constant 0 : index
    %15 = vector.load %arg5[%c0_8, %c0_9, %c0_10, %c0_11] : memref<1x8x8x128xf32, #tpu.memory_space<vmem>>, vector<1x8x8x128xf32>
    tpu.vector_store %arg5[%c0_8, %c0_9, %c0_10, %c0_11], %14 {strides = array<i32>} : memref<1x8x8x128xf32, #tpu.memory_space<vmem>>, vector<1x8x8x128xf32>,
    return
  }
  func.func @transform_0(%arg0: i32, %arg1: i32) -> (i32, i32, i32, i32) {
    %c0_i32 = arith.constant 0 : i32
    %c0_i32_0 = arith.constant 0 : i32
    %c0_i32_1 = arith.constant 0 : i32
    return %arg0, %arg1, %c0_i32, %c0_i32_0 : i32, i32, i32, i32
  }
  func.func @transform_1(%arg0: i32, %arg1: i32) -> (i32, i32) {
    %c0_i32 = arith.constant 0 : i32
    %c0_i32_0 = arith.constant 0 : i32
    %c0_i32_1 = arith.constant 0 : i32
    return %c0_i32, %c0_i32_0 : i32, i32
  }
  func.func @transform_2(%arg0: i32, %arg1: i32) -> (i32, i32) {
    %c0_i32 = arith.constant 0 : i32
    %c0_i32_0 = arith.constant 0 : i32
    %c0_i32_1 = arith.constant 0 : i32
    return %c0_i32, %c0_i32_0 : i32, i32
  }
  func.func @transform_3(%arg0: i32, %arg1: i32) -> (i32, i32, i32, i32) {
    %c0_i32 = arith.constant 0 : i32
    %c0_i32_0 = arith.constant 0 : i32
    %c0_i32_1 = arith.constant 0 : i32
    return %arg0, %arg1, %c0_i32, %c0_i32_0 : i32, i32, i32, i32
  }
}

</mosaic_0001>

<llo_original>
// kernel: convblock_forward.3
$region0: #{convblock_forward.3}
  #allocation0 [shape = 'u32[]', space=smem, size = 0x4, offset = 0x4, fixed_abs, tag = 'smem constant byte address 0x4 - core index']
  #allocation1 [shape = 'u32[144,128]{1,0:T(1,128)}', space=vmem, size = 0x12000, scoped, tag = 'internal scratch']
  %s0 = inlined_call_operand.vmem [shape: bf16[2,8,8,128], index: 0, kind: input, shape index: {}]
  %s1 = inlined_call_operand.vmem [shape: f32[1,128], index: 1, kind: input, shape index: {}]
  %s2 = inlined_call_operand.vmem [shape: f32[1,128], index: 2, kind: input, shape index: {}]
  %s3 = inlined_call_operand.vmem [shape: f32[2,8,8,128], index: 3, kind: output, shape index: {}]
  %s4 = sld [smem:[#allocation0]]
  $region45: #{convblock_forward.3} parent=0
    _
  %s6 = ssub.s32 1, %s4
  %s7 = scalar_select 0, %s6, %s4
  loop: start=0, step=1, limit=4
  $region2: #{convblock_forward.3} parent=0 // loop_pre_header
    _
  $region3: #{convblock_forward.3} parent=0 // loop_header
    %s9 = sphi 0, %s13
    %p10 = scmp.ge.s32.totalorder %s9, 4
    %s16 = sphi 0, %s28
    %s17 = sphi 0, %s24
    %s18 = sphi 0, %s16
    %s19 = sphi 0, %s17
    %s20 = sphi 0, %s18
    %s21 = sphi 0, %s19
    %s33 = sphi 0, %s35
    %s36 = sphi 0, %s33
    %s37 = sphi 0, %s36
    %s53 = sphi 0, %s37
    %s57 = sphi 0, %s57
    %s59 = sphi 0, %s57
    %s60 = sphi 0, %s59
    %s74 = sphi 0, %s60
    %s78 = sphi 0, %s78
    %s80 = sphi 0, %s78
    %s81 = sphi 0, %s80
    %s95 = sphi 0, %s81
    %s103 = sphi 0, %s105
    %s106 = sphi 0, %s103
    %s107 = sphi 0, %s106
    %s123 = sphi 0, %s107
  $region4: #{convblock_forward.3} parent=0 // loop_header_branch
    %12 = sbr.rel (%p10) target = $region8
  $region5: #{convblock_forward.3} parent=0 // loop_body
    %s14 = ssub.s32 %s9, 1
    %s15 = ssub.s32 %s9, 2
    %s22 = sadd.s32 1, %s17
    %p23 = scmp.ge.s32.totalorder %s22, 1
    %s24 = scalar_select %p23, 0, %s22
    %s25 = sadd.s32 1, %s16
    %s26 = scalar_select %p23, %s25, %s16
    %p27 = scmp.ge.s32.totalorder %s26, 2
    %s28 = scalar_select %p27, 0, %s26
    %s29 = ssub.s32 %s16, %s28
    %s30 = ssub.s32 %s17, %s24
    %s31 = sor.u32 %s29, %s30
    %p32 = scmp.eq.s32.totalorder %s31, 0
    %s34 = sadd.s32 %s33, 1
    %s35 = scalar_select %p32, %s33, %s34
    %p38 = pneg %p32
    %p39 = scmp.eq.s32.totalorder %s9, 1
    %p40 = por %p38, %p39
    %p41 = scmp.ne.s32.totalorder %s33, %s36
    %p42 = scmp.eq.s32.totalorder %s9, 0
    %p43 = por %p41, %p42
    %p44 = scmp.ne.s32.totalorder %s33, %s36
    %p45 = scmp.eq.s32.totalorder %s14, 1
    %p46 = por %p44, %p45
    %p47 = scmp.ne.s32.totalorder %s36, %s37
    %p48 = scmp.eq.s32.totalorder %s14, 0
    %p49 = por %p47, %p48
    %p50 = scmp.ne.s32.totalorder %s36, %s37
    %p51 = scmp.eq.s32.totalorder %s15, 1
    %p52 = por %p50, %p51
    %p54 = scmp.ne.s32.totalorder %s37, %s53
    %p55 = scmp.eq.s32.totalorder %s15, 0
    %p56 = por %p54, %p55
    %s58 = sadd.s32 %s57, 1
    %p61 = scmp.eq.s32.totalorder %s9, 1
    %p62 = scmp.ne.s32.totalorder %s57, %s59
    %p63 = scmp.eq.s32.totalorder %s9, 0
    %p64 = por %p62, %p63
    %p65 = scmp.ne.s32.totalorder %s57, %s59
    %p66 = scmp.eq.s32.totalorder %s14, 1
    %p67 = por %p65, %p66
    %p68 = scmp.ne.s32.totalorder %s59, %s60
    %p69 = scmp.eq.s32.totalorder %s14, 0
    %p70 = por %p68, %p69
    %p71 = scmp.ne.s32.totalorder %s59, %s60
    %p72 = scmp.eq.s32.totalorder %s15, 1
    %p73 = por %p71, %p72
    %p75 = scmp.ne.s32.totalorder %s60, %s74
    %p76 = scmp.eq.s32.totalorder %s15, 0
    %p77 = por %p75, %p76
    %s79 = sadd.s32 %s78, 1
    %p82 = scmp.eq.s32.totalorder %s9, 1
    %p83 = scmp.ne.s32.totalorder %s78, %s80
    %p84 = scmp.eq.s32.totalorder %s9, 0
    %p85 = por %p83, %p84
    %p86 = scmp.ne.s32.totalorder %s78, %s80
    %p87 = scmp.eq.s32.totalorder %s14, 1
    %p88 = por %p86, %p87
    %p89 = scmp.ne.s32.totalorder %s80, %s81
    %p90 = scmp.eq.s32.totalorder %s14, 0
    %p91 = por %p89, %p90
    %p92 = scmp.ne.s32.totalorder %s80, %s81
    %p93 = scmp.eq.s32.totalorder %s15, 1
    %p94 = por %p92, %p93
    %p96 = scmp.ne.s32.totalorder %s81, %s95
    %p97 = scmp.eq.s32.totalorder %s15, 0
    %p98 = por %p96, %p97
    %s99 = ssub.s32 %s16, %s28
    %s100 = ssub.s32 %s17, %s24
    %s101 = sor.u32 %s99, %s100
    %p102 = scmp.eq.s32.totalorder %s101, 0
    %s104 = sadd.s32 %s103, 1
    %s105 = scalar_select %p102, %s103, %s104
    %p108 = pneg %p102
    %p109 = scmp.eq.s32.totalorder %s9, 1
    %p110 = por %p108, %p109
    %p111 = scmp.ne.s32.totalorder %s103, %s106
    %p112 = scmp.eq.s32.totalorder %s9, 0
    %p113 = por %p111, %p112
    %p114 = scmp.ne.s32.totalorder %s103, %s106
    %p115 = scmp.eq.s32.totalorder %s14, 1
    %p116 = por %p114, %p115
    %p117 = scmp.ne.s32.totalorder %s106, %s107
    %p118 = scmp.eq.s32.totalorder %s14, 0
    %p119 = por %p117, %p118
    %p120 = scmp.ne.s32.totalorder %s106, %s107
    %p121 = scmp.eq.s32.totalorder %s15, 1
    %p122 = por %p120, %p121
    %p124 = scmp.ne.s32.totalorder %s107, %s123
    %p125 = scmp.eq.s32.totalorder %s15, 0
    %p126 = por %p124, %p125
    %p127 = scmp.le.s32.totalorder 1, %s9
    %p128 = scmp.lt.s32.totalorder %s9, 3
    %p129 = pnand %p127, %p128
    %p130 = pneg %p129
    // Predicated region
    $region9: #{convblock_forward.3} parent=5 // pred_check
      _
    $region10: #{convblock_forward.3} parent=5 // pred_check_branch
      %132 = sbr.rel (%p129) target = $region12
    $region11: #{convblock_forward.3} parent=5 // pred_region
      %s133 = ssub.s32 %s9, 1
      // Predicated region
      $region13: #{convblock_forward.3} parent=11 // pred_check
        %p134 = pneg %p70
      $region14: #{convblock_forward.3} parent=11 // pred_check_branch
        %136 = sbr.rel (%p134) target = $region16
      $region15: #{convblock_forward.3} parent=11 // pred_region
        _
      $region16: #{convblock_forward.3} parent=11 // pred_fallthru
        _
      // Predicated region
      $region17: #{convblock_forward.3} parent=11 // pred_check
        %p137 = pneg %p91
      $region18: #{convblock_forward.3} parent=11 // pred_check_branch
        %139 = sbr.rel (%p137) target = $region20
      $region19: #{convblock_forward.3} parent=11 // pred_region
        _
      $region20: #{convblock_forward.3} parent=11 // pred_fallthru
        _
    $region12: #{convblock_forward.3} parent=5 // pred_fallthru
      _
    %p140 = scmp.lt.s32.totalorder %s9, 2
    // Predicated region
    $region21: #{convblock_forward.3} parent=5 // pred_check
      %p141 = pneg %p140
    $region22: #{convblock_forward.3} parent=5 // pred_check_branch
      %143 = sbr.rel (%p141) target = $region24
    $region23: #{convblock_forward.3} parent=5 // pred_region
      // Predicated region
      $region25: #{convblock_forward.3} parent=23 // pred_check
        %p144 = pneg %p43
      $region26: #{convblock_forward.3} parent=23 // pred_check_branch
        %146 = sbr.rel (%p144) target = $region28
      $region27: #{convblock_forward.3} parent=23 // pred_region
        %s147 = smul.u32 8, %s17
        %p148 = scmp.lt.s32.totalorder %s16, 1
        %s149 = scalar_select %p148, %s16, 1
        %p150 = scmp.lt.s32.totalorder %s147, 7
        %s151 = scalar_select %p150, %s147, 7
        %s152 = smul.addr %s149, 8
        %s153 = sadd.s32 %s151, %s152
        %s154 = smul.addr %s153, 4
        %s155 = scalar_lea.vmem %s0, %s154
        %s156 = smul.u32 8, %s17
      $region28: #{convblock_forward.3} parent=23 // pred_fallthru
        _
    $region24: #{convblock_forward.3} parent=5 // pred_fallthru
      _
    %p157 = scmp.le.s32.totalorder 1, %s9
    %p158 = scmp.lt.s32.totalorder %s9, 3
    %p159 = pnand %p157, %p158
    %p160 = pneg %p159
    // Predicated region
    $region29: #{convblock_forward.3} parent=5 // pred_check
      _
    $region30: #{convblock_forward.3} parent=5 // pred_check_branch
      %162 = sbr.rel (%p159) target = $region32
    $region31: #{convblock_forward.3} parent=5 // pred_region
      %s163 = ssub.s32 %s9, 1
      %s164 = smul.u32 8, %s19
      %p165 = scmp.lt.s32.totalorder %s18, 1
      %s166 = scalar_select %p165, %s18, 1
      %p167 = scmp.lt.s32.totalorder %s164, 7
      %s168 = scalar_select %p167, %s164, 7
      %s169 = smul.addr %s166, 8
      %s170 = sadd.s32 %s168, %s169
      %s171 = smul.addr %s170, 4
      %s172 = scalar_lea.vmem %s0, %s171
      %p173 = pneg %p49
      %p174 = pneg %p46
      %p175 = pneg %p70
      %p176 = pneg %p67
      %p177 = pneg %p91
      %p178 = pneg %p88
      %p179 = pneg %p119
      %p180 = pneg %p116
      %s181 = smul.u32 8, %s19
      %p182 = scmp.lt.s32.totalorder %s18, 1
      %s183 = scalar_select %p182, %s18, 1
      %p184 = scmp.lt.s32.totalorder %s181, 7
      %s185 = scalar_select %p184, %s181, 7
      %s186 = smul.addr %s183, 8
      %s187 = sadd.s32 %s185, %s186
      %s188 = smul.addr %s187, 8
      %s189 = scalar_lea.vmem %s3, %s188
      %s190 = smul.u32 8, %s19
      %p191 = scmp.lt.s32.totalorder %s18, 1
      %s192 = scalar_select %p191, %s18, 1
      %p193 = scmp.lt.s32.totalorder %s190, 7
      %s194 = scalar_select %p193, %s190, 7
      %s195 = smul.addr %s192, 8
      %s196 = sadd.s32 %s194, %s195
      %s197 = smul.addr %s196, 4
      %s198 = scalar_lea.vmem %s0, %s197
      %s199 = smul.u32 8, %s19
      %s200 = smul.u32 8, %s19
      %p201 = scmp.lt.s32.totalorder %s18, 1
      %s202 = scalar_select %p201, %s18, 1
      %p203 = scmp.lt.s32.totalorder %s200, 7
      %s204 = scalar_select %p203, %s200, 7
      %s205 = smul.addr %s202, 8
      %s206 = sadd.s32 %s204, %s205
      %s207 = smul.addr %s206, 8
      %s208 = scalar_lea.vmem %s3, %s207
      %s209 = smul.u32 8, %s19
      %v210 = vld [vmem:[%s198] sm:$0xf]
      %v211 = vld [vmem:[%s198 + $0x4] sm:$0xf]
      %v212 = vld [vmem:[%s198 + $0x8] sm:$0xf]
      %v213 = vld [vmem:[%s198 + $0xc] sm:$0xf]
      %v214 = vld [vmem:[%s198 + $0x10] sm:$0xf]
      %v215 = vld [vmem:[%s198 + $0x14] sm:$0xf]
      %v216 = vld [vmem:[%s198 + $0x18] sm:$0xf]
      %v217 = vld [vmem:[%s198 + $0x1c] sm:$0xf]
      %v218 = vunpack.c.l.bf16 %v210
      %v219 = vunpack.c.l.bf16 %v211
      %v220 = vunpack.c.l.bf16 %v212
      %v221 = vunpack.c.l.bf16 %v213
      %v222 = vunpack.c.l.bf16 %v214
      %v223 = vunpack.c.l.bf16 %v215
      %v224 = vunpack.c.l.bf16 %v216
      %v225 = vunpack.c.l.bf16 %v217
      %v226 = vld [vmem:[%s1] sm:$0x1]
      %v228 = vlaneseq
      %v229 = vshrl.u32 %v228, 7
      %v230 = vsub.s32 0, %v229
      %v231 = vrot.slane %v226, %v230
      %v233 = vmul.f32 %v218, %v231
      %v234 = vmul.f32 %v219, %v231
      %v235 = vmul.f32 %v220, %v231
      %v236 = vmul.f32 %v221, %v231
      %v237 = vmul.f32 %v222, %v231
      %v238 = vmul.f32 %v223, %v231
      %v239 = vmul.f32 %v224, %v231
      %v240 = vmul.f32 %v225, %v231
      %v241 = vld [vmem:[%s2] sm:$0x1]
      %v243 = vlaneseq
      %v244 = vshrl.u32 %v243, 7
      %v245 = vsub.s32 0, %v244
      %v246 = vrot.slane %v241, %v245
      %v248 = vadd.f32 %v233, %v246
      %v249 = vadd.f32 %v234, %v246
      %v250 = vadd.f32 %v235, %v246
      %v251 = vadd.f32 %v236, %v246
      %v252 = vadd.f32 %v237, %v246
      %v253 = vadd.f32 %v238, %v246
      %v254 = vadd.f32 %v239, %v246
      %v255 = vadd.f32 %v240, %v246
      %vm256 = vcmp.gt.f32.partialorder %v248, 0.0
      %vm257 = vcmp.gt.f32.partialorder %v249, 0.0
      %vm258 = vcmp.gt.f32.partialorder %v250, 0.0
      %vm259 = vcmp.gt.f32.partialorder %v251, 0.0
      %vm260 = vcmp.gt.f32.partialorder %v252, 0.0
      %vm261 = vcmp.gt.f32.partialorder %v253, 0.0
      %vm262 = vcmp.gt.f32.partialorder %v254, 0.0
      %vm263 = vcmp.gt.f32.partialorder %v255, 0.0
      %v264 = vmul.f32 %v248, 0.2
      %v265 = vmul.f32 %v249, 0.2
      %v266 = vmul.f32 %v250, 0.2
      %v267 = vmul.f32 %v251, 0.2
      %v268 = vmul.f32 %v252, 0.2
      %v269 = vmul.f32 %v253, 0.2
      %v270 = vmul.f32 %v254, 0.2
      %v271 = vmul.f32 %v255, 0.2
      %v272 = vsel %vm256, %v248, %v264
      %v273 = vsel %vm257, %v249, %v265
      %v274 = vsel %vm258, %v250, %v266
      %v275 = vsel %vm259, %v251, %v267
      %v276 = vsel %vm260, %v252, %v268
      %v277 = vsel %vm261, %v253, %v269
      %v278 = vsel %vm262, %v254, %v270
      %v279 = vsel %vm263, %v255, %v271
      %280 = vst [vmem:[%s208] sm:$0xff] %v272
      %281 = vst [vmem:[%s208 + $0x8] sm:$0xff] %v273
      %282 = vst [vmem:[%s208 + $0x10] sm:$0xff] %v274
      %283 = vst [vmem:[%s208 + $0x18] sm:$0xff] %v275
      %284 = vst [vmem:[%s208 + $0x20] sm:$0xff] %v276
      %285 = vst [vmem:[%s208 + $0x28] sm:$0xff] %v277
      %286 = vst [vmem:[%s208 + $0x30] sm:$0xff] %v278
      %287 = vst [vmem:[%s208 + $0x38] sm:$0xff] %v279
      %s288 = smul.u32 8, %s19
      %p289 = scmp.lt.s32.totalorder %s18, 1
      %s290 = scalar_select %p289, %s18, 1
      %p291 = scmp.lt.s32.totalorder %s288, 7
      %s292 = scalar_select %p291, %s288, 7
      %s293 = smul.addr %s290, 8
      %s294 = sadd.s32 %s292, %s293
      %s295 = smul.addr %s294, 8
      %s296 = scalar_lea.vmem %s3, %s295
      // Predicated region
      $region33: #{convblock_forward.3} parent=31 // pred_check
        %p297 = pneg %p116
      $region34: #{convblock_forward.3} parent=31 // pred_check_branch
        %299 = sbr.rel (%p297) target = $region36
      $region35: #{convblock_forward.3} parent=31 // pred_region
        %s300 = smul.u32 8, %s19
      $region36: #{convblock_forward.3} parent=31 // pred_fallthru
        _
    $region32: #{convblock_forward.3} parent=5 // pred_fallthru
      _
    %p301 = scmp.le.s32.totalorder 2, %s9
    // Predicated region
    $region37: #{convblock_forward.3} parent=5 // pred_check
      %p302 = pneg %p301
    $region38: #{convblock_forward.3} parent=5 // pred_check_branch
      %304 = sbr.rel (%p302) target = $region40
    $region39: #{convblock_forward.3} parent=5 // pred_region
      %s305 = ssub.s32 %s9, 2
      // Predicated region
      $region41: #{convblock_forward.3} parent=39 // pred_check
        %p306 = pneg %p122
      $region42: #{convblock_forward.3} parent=39 // pred_check_branch
        %308 = sbr.rel (%p306) target = $region44
      $region43: #{convblock_forward.3} parent=39 // pred_region
        %s309 = smul.u32 8, %s21
        %p310 = scmp.lt.s32.totalorder %s20, 1
        %s311 = scalar_select %p310, %s20, 1
        %p312 = scmp.lt.s32.totalorder %s309, 7
        %s313 = scalar_select %p312, %s309, 7
        %s314 = smul.addr %s311, 8
        %s315 = sadd.s32 %s313, %s314
        %s316 = smul.addr %s315, 8
        %s317 = scalar_lea.vmem %s3, %s316
      $region44: #{convblock_forward.3} parent=39 // pred_fallthru
        _
    $region40: #{convblock_forward.3} parent=5 // pred_fallthru
      _
  $region6: #{convblock_forward.3} parent=0 // loop_footer
    %s13 = sadd.s32 1, %s9
  $region7: #{convblock_forward.3} parent=0 // loop_footer_branch
    %8 = sbr.rel target = $region3
  $region8: #{convblock_forward.3} parent=0 // loop_exit
    _

// kernel: convblock_forward.2
$region0: #{convblock_forward.2}
  #allocation0 [shape = 'u32[]', space=smem, size = 0x4, offset = 0x4, fixed_abs, tag = 'smem constant byte address 0x4 - core index']
  #allocation1 [shape = 'u32[144,128]{1,0:T(1,128)}', space=vmem, size = 0x12000, scoped, tag = 'internal scratch']
  %s0 = inlined_call_operand.vmem [shape: bf16[2,9,36,4], index: 0, kind: input, shape index: {}, may-alias: {0,1}]
  %s1 = inlined_call_operand.vmem [shape: bf16[2,9,36,4], index: 1, kind: input, shape index: {}, may-alias: {0,1}]
  %s2 = inlined_call_operand.vmem [shape: bf16[16,4,128], index: 2, kind: input, shape index: {}]
  %s3 = inlined_call_operand.vmem [shape: bf16[2,8,8,128], index: 3, kind: output, shape index: {0}]
  %s4 = inlined_call_operand.vmem [shape: f32[2,2,128], index: 4, kind: output, shape index: {1}]
  %5 = xla_tuple %s3, %s4
  %s6 = sld [smem:[#allocation0]]
  $region53: #{convblock_forward.2} parent=0
    _
  %s8 = ssub.s32 1, %s6
  %s9 = scalar_select 0, %s8, %s6
  loop: start=0, step=1, limit=4
  $region2: #{convblock_forward.2} parent=0 // loop_pre_header
    _
  $region3: #{convblock_forward.2} parent=0 // loop_header
    %s11 = sphi 0, %s15
    %p12 = scmp.ge.s32.totalorder %s11, 4
    %s18 = sphi 0, %s30
    %s19 = sphi 0, %s26
    %s20 = sphi 0, %s18
    %s21 = sphi 0, %s19
    %s22 = sphi 0, %s20
    %s23 = sphi 0, %s21
    %s35 = sphi 0, %s37
    %s38 = sphi 0, %s35
    %s39 = sphi 0, %s38
    %s55 = sphi 0, %s39
    %s67 = sphi 0, %s69
    %s70 = sphi 0, %s67
    %s71 = sphi 0, %s70
    %s87 = sphi 0, %s71
    %s91 = sphi 0, %s91
    %s93 = sphi 0, %s91
    %s94 = sphi 0, %s93
    %s108 = sphi 0, %s94
    %s116 = sphi 0, %s118
    %s119 = sphi 0, %s116
    %s120 = sphi 0, %s119
    %s136 = sphi 0, %s120
    %s144 = sphi 0, %s146
    %s147 = sphi 0, %s144
    %s148 = sphi 0, %s147
    %s164 = sphi 0, %s148
  $region4: #{convblock_forward.2} parent=0 // loop_header_branch
    %14 = sbr.rel (%p12) target = $region8
  $region5: #{convblock_forward.2} parent=0 // loop_body
    %s16 = ssub.s32 %s11, 1
    %s17 = ssub.s32 %s11, 2
    %s24 = sadd.s32 1, %s19
    %p25 = scmp.ge.s32.totalorder %s24, 1
    %s26 = scalar_select %p25, 0, %s24
    %s27 = sadd.s32 1, %s18
    %s28 = scalar_select %p25, %s27, %s18
    %p29 = scmp.ge.s32.totalorder %s28, 2
    %s30 = scalar_select %p29, 0, %s28
    %s31 = ssub.s32 %s18, %s30
    %s32 = ssub.s32 %s19, %s26
    %s33 = sor.u32 %s31, %s32
    %p34 = scmp.eq.s32.totalorder %s33, 0
    %s36 = sadd.s32 %s35, 1
    %s37 = scalar_select %p34, %s35, %s36
    %p40 = pneg %p34
    %p41 = scmp.eq.s32.totalorder %s11, 1
    %p42 = por %p40, %p41
    %p43 = scmp.ne.s32.totalorder %s35, %s38
    %p44 = scmp.eq.s32.totalorder %s11, 0
    %p45 = por %p43, %p44
    %p46 = scmp.ne.s32.totalorder %s35, %s38
    %p47 = scmp.eq.s32.totalorder %s16, 1
    %p48 = por %p46, %p47
    %p49 = scmp.ne.s32.totalorder %s38, %s39
    %p50 = scmp.eq.s32.totalorder %s16, 0
    %p51 = por %p49, %p50
    %p52 = scmp.ne.s32.totalorder %s38, %s39
    %p53 = scmp.eq.s32.totalorder %s17, 1
    %p54 = por %p52, %p53
    %p56 = scmp.ne.s32.totalorder %s39, %s55
    %p57 = scmp.eq.s32.totalorder %s17, 0
    %p58 = por %p56, %p57
    %s59 = sadd.s32 %s19, 1
    %s60 = smul.u32 %s59, 8
    %s61 = sadd.s32 %s26, 1
    %s62 = smul.u32 %s61, 8
    %s63 = ssub.s32 %s18, %s30
    %s64 = ssub.s32 %s60, %s62
    %s65 = sor.u32 %s63, %s64
    %p66 = scmp.eq.s32.totalorder %s65, 0
    %s68 = sadd.s32 %s67, 1
    %s69 = scalar_select %p66, %s67, %s68
    %p72 = pneg %p66
    %p73 = scmp.eq.s32.totalorder %s11, 1
    %p74 = por %p72, %p73
    %p75 = scmp.ne.s32.totalorder %s67, %s70
    %p76 = scmp.eq.s32.totalorder %s11, 0
    %p77 = por %p75, %p76
    %p78 = scmp.ne.s32.totalorder %s67, %s70
    %p79 = scmp.eq.s32.totalorder %s16, 1
    %p80 = por %p78, %p79
    %p81 = scmp.ne.s32.totalorder %s70, %s71
    %p82 = scmp.eq.s32.totalorder %s16, 0
    %p83 = por %p81, %p82
    %p84 = scmp.ne.s32.totalorder %s70, %s71
    %p85 = scmp.eq.s32.totalorder %s17, 1
    %p86 = por %p84, %p85
    %p88 = scmp.ne.s32.totalorder %s71, %s87
    %p89 = scmp.eq.s32.totalorder %s17, 0
    %p90 = por %p88, %p89
    %s92 = sadd.s32 %s91, 1
    %p95 = scmp.eq.s32.totalorder %s11, 1
    %p96 = scmp.ne.s32.totalorder %s91, %s93
    %p97 = scmp.eq.s32.totalorder %s11, 0
    %p98 = por %p96, %p97
    %p99 = scmp.ne.s32.totalorder %s91, %s93
    %p100 = scmp.eq.s32.totalorder %s16, 1
    %p101 = por %p99, %p100
    %p102 = scmp.ne.s32.totalorder %s93, %s94
    %p103 = scmp.eq.s32.totalorder %s16, 0
    %p104 = por %p102, %p103
    %p105 = scmp.ne.s32.totalorder %s93, %s94
    %p106 = scmp.eq.s32.totalorder %s17, 1
    %p107 = por %p105, %p106
    %p109 = scmp.ne.s32.totalorder %s94, %s108
    %p110 = scmp.eq.s32.totalorder %s17, 0
    %p111 = por %p109, %p110
    %s112 = ssub.s32 %s18, %s30
    %s113 = ssub.s32 %s19, %s26
    %s114 = sor.u32 %s112, %s113
    %p115 = scmp.eq.s32.totalorder %s114, 0
    %s117 = sadd.s32 %s116, 1
    %s118 = scalar_select %p115, %s116, %s117
    %p121 = pneg %p115
    %p122 = scmp.eq.s32.totalorder %s11, 1
    %p123 = por %p121, %p122
    %p124 = scmp.ne.s32.totalorder %s116, %s119
    %p125 = scmp.eq.s32.totalorder %s11, 0
    %p126 = por %p124, %p125
    %p127 = scmp.ne.s32.totalorder %s116, %s119
    %p128 = scmp.eq.s32.totalorder %s16, 1
    %p129 = por %p127, %p128
    %p130 = scmp.ne.s32.totalorder %s119, %s120
    %p131 = scmp.eq.s32.totalorder %s16, 0
    %p132 = por %p130, %p131
    %p133 = scmp.ne.s32.totalorder %s119, %s120
    %p134 = scmp.eq.s32.totalorder %s17, 1
    %p135 = por %p133, %p134
    %p137 = scmp.ne.s32.totalorder %s120, %s136
    %p138 = scmp.eq.s32.totalorder %s17, 0
    %p139 = por %p137, %p138
    %s140 = sadd.s32 %s18, %s19
    %s141 = sadd.s32 %s30, %s26
    %s142 = ssub.s32 %s140, %s141
    %p143 = scmp.eq.s32.totalorder %s142, 0
    %s145 = sadd.s32 %s144, 1
    %s146 = scalar_select %p143, %s144, %s145
    %p149 = pneg %p143
    %p150 = scmp.eq.s32.totalorder %s11, 1
    %p151 = por %p149, %p150
    %p152 = scmp.ne.s32.totalorder %s144, %s147
    %p153 = scmp.eq.s32.totalorder %s11, 0
    %p154 = por %p152, %p153
    %p155 = scmp.ne.s32.totalorder %s144, %s147
    %p156 = scmp.eq.s32.totalorder %s16, 1
    %p157 = por %p155, %p156
    %p158 = scmp.ne.s32.totalorder %s147, %s148
    %p159 = scmp.eq.s32.totalorder %s16, 0
    %p160 = por %p158, %p159
    %p161 = scmp.ne.s32.totalorder %s147, %s148
    %p162 = scmp.eq.s32.totalorder %s17, 1
    %p163 = por %p161, %p162
    %p165 = scmp.ne.s32.totalorder %s148, %s164
    %p166 = scmp.eq.s32.totalorder %s17, 0
    %p167 = por %p165, %p166
    %p168 = scmp.le.s32.totalorder 1, %s11
    %p169 = scmp.lt.s32.totalorder %s11, 3
    %p170 = pnand %p168, %p169
    %p171 = pneg %p170
    // Predicated region
    $region9: #{convblock_forward.2} parent=5 // pred_check
      _
    $region10: #{convblock_forward.2} parent=5 // pred_check_branch
      %173 = sbr.rel (%p170) target = $region12
    $region11: #{convblock_forward.2} parent=5 // pred_region
      %s174 = ssub.s32 %s11, 1
      // Predicated region
      $region13: #{convblock_forward.2} parent=11 // pred_check
        %p175 = pneg %p104
      $region14: #{convblock_forward.2} parent=11 // pred_check_branch
        %177 = sbr.rel (%p175) target = $region16
      $region15: #{convblock_forward.2} parent=11 // pred_region
        _
      $region16: #{convblock_forward.2} parent=11 // pred_fallthru
        _
    $region12: #{convblock_forward.2} parent=5 // pred_fallthru
      _
    %p178 = scmp.lt.s32.totalorder %s11, 2
    // Predicated region
    $region17: #{convblock_forward.2} parent=5 // pred_check
      %p179 = pneg %p178
    $region18: #{convblock_forward.2} parent=5 // pred_check_branch
      %181 = sbr.rel (%p179) target = $region20
    $region19: #{convblock_forward.2} parent=5 // pred_region
      // Predicated region
      $region21: #{convblock_forward.2} parent=19 // pred_check
        %p182 = pneg %p45
      $region22: #{convblock_forward.2} parent=19 // pred_check_branch
        %184 = sbr.rel (%p182) target = $region24
      $region23: #{convblock_forward.2} parent=19 // pred_region
        %s185 = smul.u32 8, %s19
        %s186 = ssub.s32 9, %s185
        %p187 = scmp.lt.s32.totalorder %s186, 8
        %s188 = scalar_select %p187, %s186, 8
        %s189 = smul.u32 64, %s188
        %s190 = smul.u32 %s189, 5
        %p191 = scmp.lt.s32.totalorder %s18, 1
        %s192 = scalar_select %p191, %s18, 1
        %p193 = scmp.lt.s32.totalorder %s185, 8
        %s194 = scalar_select %p193, %s185, 8
        %s195 = smul.addr %s194, 5
        %s196 = smul.addr %s192, 45
        %s197 = sadd.s32 %s195, %s196
        %s198 = smul.addr %s197, 4
        %s199 = scalar_lea.vmem %s0, %s198
        %s200 = smul.u32 8, %s19
        %s201 = ssub.s32 9, %s200
        %p202 = scmp.lt.s32.totalorder %s201, 8
        %s203 = scalar_select %p202, %s201, 8
        %s204 = smul.u32 64, %s203
        %s205 = smul.u32 %s204, 5
      $region24: #{convblock_forward.2} parent=19 // pred_fallthru
        _
      // Predicated region
      $region25: #{convblock_forward.2} parent=19 // pred_check
        %p206 = pneg %p77
      $region26: #{convblock_forward.2} parent=19 // pred_check_branch
        %208 = sbr.rel (%p206) target = $region28
      $region27: #{convblock_forward.2} parent=19 // pred_region
        %s209 = sadd.s32 %s19, 1
        %s210 = smul.u32 %s209, 8
        %p211 = scmp.lt.s32.totalorder %s18, 1
        %s212 = scalar_select %p211, %s18, 1
        %p213 = scmp.lt.s32.totalorder %s210, 8
        %s214 = scalar_select %p213, %s210, 8
        %s215 = smul.addr %s214, 5
        %s216 = smul.addr %s212, 45
        %s217 = sadd.s32 %s215, %s216
        %s218 = smul.addr %s217, 4
        %s219 = scalar_lea.vmem %s1, %s218
        %s220 = sadd.s32 %s19, 1
        %s221 = smul.u32 %s220, 8
      $region28: #{convblock_forward.2} parent=19 // pred_fallthru
        _
    $region20: #{convblock_forward.2} parent=5 // pred_fallthru
      _
    %p222 = scmp.le.s32.totalorder 1, %s11
    %p223 = scmp.lt.s32.totalorder %s11, 3
    %p224 = pnand %p222, %p223
    %p225 = pneg %p224
    // Predicated region
    $region29: #{convblock_forward.2} parent=5 // pred_check
      _
    $region30: #{convblock_forward.2} parent=5 // pred_check_branch
      %227 = sbr.rel (%p224) target = $region32
    $region31: #{convblock_forward.2} parent=5 // pred_region
      %s228 = ssub.s32 %s11, 1
      %s229 = smul.u32 8, %s21
      %s230 = ssub.s32 9, %s229
      %p231 = scmp.lt.s32.totalorder %s230, 8
      %s232 = scalar_select %p231, %s230, 8
      %s233 = smul.u32 64, %s232
      %s234 = smul.u32 %s233, 5
      %p235 = scmp.lt.s32.totalorder %s20, 1
      %s236 = scalar_select %p235, %s20, 1
      %p237 = scmp.lt.s32.totalorder %s229, 8
      %s238 = scalar_select %p237, %s229, 8
      %s239 = smul.addr %s238, 5
      %s240 = smul.addr %s236, 45
      %s241 = sadd.s32 %s239, %s240
      %s242 = smul.addr %s241, 4
      %s243 = scalar_lea.vmem %s0, %s242
      %p244 = pneg %p51
      %p245 = pneg %p48
      %s246 = sadd.s32 %s21, 1
      %s247 = smul.u32 %s246, 8
      %p248 = scmp.lt.s32.totalorder %s20, 1
      %s249 = scalar_select %p248, %s20, 1
      %p250 = scmp.lt.s32.totalorder %s247, 8
      %s251 = scalar_select %p250, %s247, 8
      %s252 = smul.addr %s251, 5
      %s253 = smul.addr %s249, 45
      %s254 = sadd.s32 %s252, %s253
      %s255 = smul.addr %s254, 4
      %s256 = scalar_lea.vmem %s1, %s255
      %p257 = pneg %p83
      %p258 = pneg %p80
      %p259 = pneg %p104
      %p260 = pneg %p101
      %p261 = pneg %p132
      %p262 = pneg %p129
      %s263 = smul.u32 8, %s21
      %p264 = scmp.lt.s32.totalorder %s20, 1
      %s265 = scalar_select %p264, %s20, 1
      %p266 = scmp.lt.s32.totalorder %s263, 7
      %s267 = scalar_select %p266, %s263, 7
      %s268 = smul.addr %s265, 8
      %s269 = sadd.s32 %s267, %s268
      %s270 = smul.addr %s269, 4
      %s271 = scalar_lea.vmem %s3, %s270
      %p272 = pneg %p160
      %p273 = pneg %p157
      %s274 = sadd.s32 %s20, %s21
      %p275 = scmp.lt.s32.totalorder %s274, 1
      %s276 = scalar_select %p275, %s274, 1
      %s277 = smul.addr %s276, 2
      %s278 = scalar_lea.vmem %s4, %s277
      %s279 = smul.u32 8, %s21
      %s280 = ssub.s32 9, %s279
      %p281 = scmp.lt.s32.totalorder %s280, 8
      %s282 = scalar_select %p281, %s280, 8
      %s283 = smul.u32 64, %s282
      %s284 = smul.u32 %s283, 5
      %p285 = scmp.lt.s32.totalorder %s20, 1
      %s286 = scalar_select %p285, %s20, 1
      %p287 = scmp.lt.s32.totalorder %s279, 8
      %s288 = scalar_select %p287, %s279, 8
      %s289 = smul.addr %s288, 5
      %s290 = smul.addr %s286, 45
      %s291 = sadd.s32 %s289, %s290
      %s292 = smul.addr %s291, 4
      %s293 = scalar_lea.vmem %s0, %s292
      %s294 = smul.u32 8, %s21
      %s295 = ssub.s32 9, %s294
      %p296 = scmp.lt.s32.totalorder %s295, 8
      %s297 = scalar_select %p296, %s295, 8
      %s298 = smul.u32 64, %s297
      %s299 = smul.u32 %s298, 5
      %s300 = sadd.s32 %s21, 1
      %s301 = smul.u32 %s300, 8
      %p302 = scmp.lt.s32.totalorder %s20, 1
      %s303 = scalar_select %p302, %s20, 1
      %p304 = scmp.lt.s32.totalorder %s301, 8
      %s305 = scalar_select %p304, %s301, 8
      %s306 = smul.addr %s305, 5
      %s307 = smul.addr %s303, 45
      %s308 = sadd.s32 %s306, %s307
      %s309 = smul.addr %s308, 4
      %s310 = scalar_lea.vmem %s1, %s309
      %s311 = sadd.s32 %s21, 1
      %s312 = smul.u32 %s311, 8
      %s313 = smul.u32 8, %s21
      %p314 = scmp.lt.s32.totalorder %s20, 1
      %s315 = scalar_select %p314, %s20, 1
      %p316 = scmp.lt.s32.totalorder %s313, 7
      %s317 = scalar_select %p316, %s313, 7
      %s318 = smul.addr %s315, 8
      %s319 = sadd.s32 %s317, %s318
      %s320 = smul.addr %s319, 4
      %s321 = scalar_lea.vmem %s3, %s320
      %s322 = smul.u32 8, %s21
      %s323 = sadd.s32 %s20, %s21
      %p324 = scmp.lt.s32.totalorder %s323, 1
      %s325 = scalar_select %p324, %s323, 1
      %s326 = smul.addr %s325, 2
      %s327 = scalar_lea.vmem %s4, %s326
      %s328 = sadd.s32 %s20, %s21
      %v330 = vld [vmem:[%s293] sm:$0xf]
      %v331 = vld [vmem:[%s293 + $0x4] sm:$0xf]
      %v332 = vld [vmem:[%s293 + $0x8] sm:$0xf]
      %v333 = vld [vmem:[%s293 + $0xc] sm:$0xf]
      %v334 = vld [vmem:[%s293 + $0x10] sm:$0x3]
      %v335 = vld [vmem:[%s293 + $0x14] sm:$0xf]
      %v336 = vld [vmem:[%s293 + $0x18] sm:$0xf]
      %v337 = vld [vmem:[%s293 + $0x1c] sm:$0xf]
      %v338 = vld [vmem:[%s293 + $0x20] sm:$0xf]
      %v339 = vld [vmem:[%s293 + $0x24] sm:$0x3]
      %v340 = vld [vmem:[%s293 + $0x28] sm:$0xf]
      %v341 = vld [vmem:[%s293 + $0x2c] sm:$0xf]
      %v342 = vld [vmem:[%s293 + $0x30] sm:$0xf]
      %v343 = vld [vmem:[%s293 + $0x34] sm:$0xf]
      %v344 = vld [vmem:[%s293 + $0x38] sm:$0x3]
      %v345 = vld [vmem:[%s293 + $0x3c] sm:$0xf]
      %v346 = vld [vmem:[%s293 + $0x40] sm:$0xf]
      %v347 = vld [vmem:[%s293 + $0x44] sm:$0xf]
      %v348 = vld [vmem:[%s293 + $0x48] sm:$0xf]
      %v349 = vld [vmem:[%s293 + $0x4c] sm:$0x3]
      %v350 = vld [vmem:[%s293 + $0x50] sm:$0xf]
      %v351 = vld [vmem:[%s293 + $0x54] sm:$0xf]
      %v352 = vld [vmem:[%s293 + $0x58] sm:$0xf]
      %v353 = vld [vmem:[%s293 + $0x5c] sm:$0xf]
      %v354 = vld [vmem:[%s293 + $0x60] sm:$0x3]
      %v355 = vld [vmem:[%s293 + $0x64] sm:$0xf]
      %v356 = vld [vmem:[%s293 + $0x68] sm:$0xf]
      %v357 = vld [vmem:[%s293 + $0x6c] sm:$0xf]
      %v358 = vld [vmem:[%s293 + $0x70] sm:$0xf]
      %v359 = vld [vmem:[%s293 + $0x74] sm:$0x3]
      %v360 = vld [vmem:[%s293 + $0x78] sm:$0xf]
      %v361 = vld [vmem:[%s293 + $0x7c] sm:$0xf]
      %v362 = vld [vmem:[%s293 + $0x80] sm:$0xf]
      %v363 = vld [vmem:[%s293 + $0x84] sm:$0xf]
      %v364 = vld [vmem:[%s293 + $0x88] sm:$0x3]
      %v365 = vld [vmem:[%s293 + $0x8c] sm:$0xf]
      %v366 = vld [vmem:[%s293 + $0x90] sm:$0xf]
      %v367 = vld [vmem:[%s293 + $0x94] sm:$0xf]
      %v368 = vld [vmem:[%s293 + $0x98] sm:$0xf]
      %v369 = vld [vmem:[%s293 + $0x9c] sm:$0x3]
      %v370 = vld [vmem:[%s310] sm:$0xf]
      %v371 = vld [vmem:[%s310 + $0x4] sm:$0xf]
      %v372 = vld [vmem:[%s310 + $0x8] sm:$0xf]
      %v373 = vld [vmem:[%s310 + $0xc] sm:$0xf]
      %v374 = vld [vmem:[%s310 + $0x10] sm:$0x3]
      %v375 = vld [vmem:[%s2] sm:$0x3]
      %vm376 = vsmask.f32 3328
      %vm377 = vsmask.f32 7440
      %vm378 = vmor %vm376, %vm377
      %v380 = vshrl.u32 %v331, 16
      %v382 = vrot.slane %v380, 4
      %v383 = vshll.u32 %v331, 16
      %v385 = vrot.slane %v383, 5
      %v386 = vor.u32 %v382, %v385
      %v387 = vrot.slane %v386, 4
      %v389 = vshll.u32 %v332, 16
      %v391 = vrot.slane %v389, 5
      %v392 = vsel %vm378, %v387, %v391
      %v394 = vshrl.u32 %v336, 16
      %v396 = vrot.slane %v394, 4
      %v397 = vshll.u32 %v336, 16
      %v399 = vrot.slane %v397, 5
      %v400 = vor.u32 %v396, %v399
      %v401 = vrot.slane %v400, 4
      %v403 = vshll.u32 %v337, 16
      %v405 = vrot.slane %v403, 5
      %v406 = vsel %vm378, %v401, %v405
      %v408 = vshrl.u32 %v341, 16
      %v410 = vrot.slane %v408, 4
      %v411 = vshll.u32 %v341, 16
      %v413 = vrot.slane %v411, 5
      %v414 = vor.u32 %v410, %v413
      %v415 = vrot.slane %v414, 4
      %v417 = vshll.u32 %v342, 16
      %v419 = vrot.slane %v417, 5
      %v420 = vsel %vm378, %v415, %v419
      %v422 = vshrl.u32 %v346, 16
      %v424 = vrot.slane %v422, 4
      %v425 = vshll.u32 %v346, 16
      %v427 = vrot.slane %v425, 5
      %v428 = vor.u32 %v424, %v427
      %v429 = vrot.slane %v428, 4
      %v431 = vshll.u32 %v347, 16
      %v433 = vrot.slane %v431, 5
      %v434 = vsel %vm378, %v429, %v433
      %v436 = vshrl.u32 %v351, 16
      %v438 = vrot.slane %v436, 4
      %v439 = vshll.u32 %v351, 16
      %v441 = vrot.slane %v439, 5
      %v442 = vor.u32 %v438, %v441
      %v443 = vrot.slane %v442, 4
      %v445 = vshll.u32 %v352, 16
      %v447 = vrot.slane %v445, 5
      %v448 = vsel %vm378, %v443, %v447
      %v450 = vshrl.u32 %v356, 16
      %v452 = vrot.slane %v450, 4
      %v453 = vshll.u32 %v356, 16
      %v455 = vrot.slane %v453, 5
      %v456 = vor.u32 %v452, %v455
      %v457 = vrot.slane %v456, 4
      %v459 = vshll.u32 %v357, 16
      %v461 = vrot.slane %v459, 5
      %v462 = vsel %vm378, %v457, %v461
      %v464 = vshrl.u32 %v361, 16
      %v466 = vrot.slane %v464, 4
      %v467 = vshll.u32 %v361, 16
      %v469 = vrot.slane %v467, 5
      %v470 = vor.u32 %v466, %v469
      %v471 = vrot.slane %v470, 4
      %v473 = vshll.u32 %v362, 16
      %v475 = vrot.slane %v473, 5
      %v476 = vsel %vm378, %v471, %v475
      %v478 = vshrl.u32 %v366, 16
      %v480 = vrot.slane %v478, 4
      %v481 = vshll.u32 %v366, 16
      %v483 = vrot.slane %v481, 5
      %v484 = vor.u32 %v480, %v483
      %v485 = vrot.slane %v484, 4
      %v487 = vshll.u32 %v367, 16
      %v489 = vrot.slane %v487, 5
      %v490 = vsel %vm378, %v485, %v489
      %s491 = scalar_lea.vmem %s2, 2
      %v492 = vld [vmem:[%s491] sm:$0x3]
      %v493 = vunpack.c.l.b16 %v392
      %v494 = vunpack.c.l.b16 %v406
      %v495 = vunpack.c.l.b16 %v420
      %v496 = vunpack.c.l.b16 %v434
      %v497 = vunpack.c.l.b16 %v448
      %v498 = vunpack.c.l.b16 %v462
      %v499 = vunpack.c.l.b16 %v476
      %v500 = vunpack.c.l.b16 %v490
      %v501 = vpack.c.b16 %v494, %v493
      %v502 = vpack.c.b16 %v496, %v495
      %v503 = vpack.c.b16 %v498, %v497
      %v504 = vpack.c.b16 %v500, %v499
      %vm505 = vcmask 31744
      %v507 = vsel %vm505, %v501, 0
      %v510 = vsel %vm505, %v502, 0
      %v513 = vsel %vm505, %v503, 0
      %v516 = vsel %vm505, %v504, 0
      %vm518 = vcmask 1041408
      %v520 = vsel %vm518, %v492, 0
      %522 = vmatprep.subr.bf16.mxu0 0
      %523 = vmatpush1.bf16.msra.mxu0 %v520
      %524 = vmatprep.subr.bf16.mxu0 0
      %525 = vmatpush1.bf16.msra.mxu0 0
      %526 = vmatprep.subr.bf16.mxu0 0
      %527 = vmatpush1.bf16.msra.mxu0 0
      %528 = vmatprep.subr.bf16.mxu0 0
      %529 = vmatpush1.bf16.msra.mxu0 0
      %530 = vmatprep.subr.bf16.mxu0 0
      %531 = vmatpush1.bf16.msra.mxu0 0
      %532 = vmatprep.subr.bf16.mxu0 0
      %533 = vmatpush1.bf16.msra.mxu0 0
      %534 = vmatprep.subr.bf16.mxu0 0
      %535 = vmatpush1.bf16.msra.mxu0 0
      %536 = vmatprep.subr.bf16.mxu0 0
      %537 = vmatpush1.bf16.msra.mxu0 0
      %538 = vmatprep.subr.bf16.mxu0 0
      %539 = vmatpush1.bf16.msra.mxu0 0
      %540 = vmatprep.subr.bf16.mxu0 0
      %541 = vmatpush1.bf16.msra.mxu0 0
      %542 = vmatprep.subr.bf16.mxu0 0
      %543 = vmatpush1.bf16.msra.mxu0 0
      %544 = vmatprep.subr.bf16.mxu0 0
      %545 = vmatpush1.bf16.msra.mxu0 0
      %546 = vmatprep.subr.bf16.mxu0 0
      %547 = vmatpush1.bf16.msra.mxu0 0
      %548 = vmatprep.subr.bf16.mxu0 0
      %549 = vmatpush1.bf16.msra.mxu0 0
      %550 = vmatprep.subr.bf16.mxu0 0
      %551 = vmatpush1.bf16.msra.mxu0 0
      %552 = vmatprep.subr.bf16.mxu0 0
      %553 = vmatpush1.bf16.msra.mxu0 0
      %554 = vmatprep.mubr.bf16.mxu0 0
      %555 = vmatmul.mubr.bf16.gmra.mrb[0].mxu0 %v507
      %v556 = vpop.f32.mrb[0].mxu0
      %v557 = vadd.f32 0.0, %v556
      %v558 = vpop.f32.mrb[0].mxu0
      %v559 = vpop.f32.mrb[0].mxu0
      %v560 = vadd.f32 0.0, %v559
      %v561 = vpop.f32.mrb[0].mxu0
      %562 = vmatprep.mubr.bf16.mxu0 0
      %563 = vmatmul.mubr.bf16.gmra.mrb[0].mxu0 %v510
      %v564 = vpop.f32.mrb[0].mxu0
      %v565 = vadd.f32 0.0, %v564
      %v566 = vpop.f32.mrb[0].mxu0
      %v567 = vpop.f32.mrb[0].mxu0
      %v568 = vadd.f32 0.0, %v567
      %v569 = vpop.f32.mrb[0].mxu0
      %570 = vmatprep.mubr.bf16.mxu0 0
      %571 = vmatmul.mubr.bf16.gmra.mrb[0].mxu0 %v513
      %v572 = vpop.f32.mrb[0].mxu0
      %v573 = vadd.f32 0.0, %v572
      %v574 = vpop.f32.mrb[0].mxu0
      %v575 = vpop.f32.mrb[0].mxu0
      %v576 = vadd.f32 0.0, %v575
      %v577 = vpop.f32.mrb[0].mxu0
      %578 = vmatprep.mubr.bf16.mxu0 0
      %579 = vmatmul.mubr.bf16.gmra.mrb[0].mxu0 %v516
      %v580 = vpop.f32.mrb[0].mxu0
      %v581 = vadd.f32 0.0, %v580
      %v582 = vpop.f32.mrb[0].mxu0
      %v583 = vpop.f32.mrb[0].mxu0
      %v584 = vadd.f32 0.0, %v583
      %v585 = vpop.f32.mrb[0].mxu0
      %586 = vdwg.mxu0
      %v595 = vunpack.c.l.b16 %v330
      %v596 = vunpack.c.l.b16 %v335
      %v597 = vunpack.c.l.b16 %v340
      %v598 = vunpack.c.l.b16 %v345
      %v599 = vunpack.c.l.b16 %v350
      %v600 = vunpack.c.l.b16 %v355
      %v601 = vunpack.c.l.b16 %v360
      %v602 = vunpack.c.l.b16 %v365
      %v603 = vpack.c.b16 %v596, %v595
      %v604 = vpack.c.b16 %v598, %v597
      %v605 = vpack.c.b16 %v600, %v599
      %v606 = vpack.c.b16 %v602, %v601
      %v608 = vsel %vm505, %v603, 0
      %v611 = vsel %vm505, %v604, 0
      %v614 = vsel %vm505, %v605, 0
      %v617 = vsel %vm505, %v606, 0
      %v620 = vsel %vm518, %v375, 0
      %622 = vmatprep.subr.bf16.mxu0 0
      %623 = vmatpush1.bf16.msra.mxu0 %v620
      %624 = vmatprep.subr.bf16.mxu0 0
      %625 = vmatpush1.bf16.msra.mxu0 0
      %626 = vmatprep.subr.bf16.mxu0 0
      %627 = vmatpush1.bf16.msra.mxu0 0
      %628 = vmatprep.subr.bf16.mxu0 0
      %629 = vmatpush1.bf16.msra.mxu0 0
      %630 = vmatprep.subr.bf16.mxu0 0
      %631 = vmatpush1.bf16.msra.mxu0 0
      %632 = vmatprep.subr.bf16.mxu0 0
      %633 = vmatpush1.bf16.msra.mxu0 0
      %634 = vmatprep.subr.bf16.mxu0 0
      %635 = vmatpush1.bf16.msra.mxu0 0
      %636 = vmatprep.subr.bf16.mxu0 0
      %637 = vmatpush1.bf16.msra.mxu0 0
      %638 = vmatprep.subr.bf16.mxu0 0
      %639 = vmatpush1.bf16.msra.mxu0 0
      %640 = vmatprep.subr.bf16.mxu0 0
      %641 = vmatpush1.bf16.msra.mxu0 0
      %642 = vmatprep.subr.bf16.mxu0 0
      %643 = vmatpush1.bf16.msra.mxu0 0
      %644 = vmatprep.subr.bf16.mxu0 0
      %645 = vmatpush1.bf16.msra.mxu0 0
      %646 = vmatprep.subr.bf16.mxu0 0
      %647 = vmatpush1.bf16.msra.mxu0 0
      %648 = vmatprep.subr.bf16.mxu0 0
      %649 = vmatpush1.bf16.msra.mxu0 0
      %650 = vmatprep.subr.bf16.mxu0 0
      %651 = vmatpush1.bf16.msra.mxu0 0
      %652 = vmatprep.subr.bf16.mxu0 0
      %653 = vmatpush1.bf16.msra.mxu0 0
      %654 = vmatprep.mubr.bf16.mxu0 0
      %655 = vmatmul.mubr.bf16.gmra.mrb[0].mxu0 %v608
      %v656 = vpop.f32.mrb[0].mxu0
      %v657 = vadd.f32 %v557, %v656
      %v658 = vpop.f32.mrb[0].mxu0
      %v659 = vpop.f32.mrb[0].mxu0
      %v660 = vadd.f32 %v560, %v659
      %v661 = vpop.f32.mrb[0].mxu0
      %662 = vmatprep.mubr.bf16.mxu0 0
      %663 = vmatmul.mubr.bf16.gmra.mrb[0].mxu0 %v611
      %v664 = vpop.f32.mrb[0].mxu0
      %v665 = vadd.f32 %v565, %v664
      %v666 = vpop.f32.mrb[0].mxu0
      %v667 = vpop.f32.mrb[0].mxu0
      %v668 = vadd.f32 %v568, %v667
      %v669 = vpop.f32.mrb[0].mxu0
      %670 = vmatprep.mubr.bf16.mxu0 0
      %671 = vmatmul.mubr.bf16.gmra.mrb[0].mxu0 %v614
      %v672 = vpop.f32.mrb[0].mxu0
      %v673 = vadd.f32 %v573, %v672
      %v674 = vpop.f32.mrb[0].mxu0
      %v675 = vpop.f32.mrb[0].mxu0
      %v676 = vadd.f32 %v576, %v675
      %v677 = vpop.f32.mrb[0].mxu0
      %678 = vmatprep.mubr.bf16.mxu0 0
      %679 = vmatmul.mubr.bf16.gmra.mrb[0].mxu0 %v617
      %v680 = vpop.f32.mrb[0].mxu0
      %v681 = vadd.f32 %v581, %v680
      %v682 = vpop.f32.mrb[0].mxu0
      %v683 = vpop.f32.mrb[0].mxu0
      %v684 = vadd.f32 %v584, %v683
      %v685 = vpop.f32.mrb[0].mxu0
      %686 = vdwg.mxu0
      %v688 = vshrl.u32 %v330, 16
      %v690 = vrot.slane %v688, 4
      %v691 = vshll.u32 %v330, 16
      %v693 = vrot.slane %v691, 5
      %v694 = vor.u32 %v690, %v693
      %v695 = vrot.slane %v694, 4
      %v696 = vsel %vm378, %v695, %v385
      %v698 = vshrl.u32 %v335, 16
      %v700 = vrot.slane %v698, 4
      %v701 = vshll.u32 %v335, 16
      %v703 = vrot.slane %v701, 5
      %v704 = vor.u32 %v700, %v703
      %v705 = vrot.slane %v704, 4
      %v706 = vsel %vm378, %v705, %v399
      %v708 = vshrl.u32 %v340, 16
      %v710 = vrot.slane %v708, 4
      %v711 = vshll.u32 %v340, 16
      %v713 = vrot.slane %v711, 5
      %v714 = vor.u32 %v710, %v713
      %v715 = vrot.slane %v714, 4
      %v716 = vsel %vm378, %v715, %v413
      %v718 = vshrl.u32 %v345, 16
      %v720 = vrot.slane %v718, 4
      %v721 = vshll.u32 %v345, 16
      %v723 = vrot.slane %v721, 5
      %v724 = vor.u32 %v720, %v723
      %v725 = vrot.slane %v724, 4
      %v726 = vsel %vm378, %v725, %v427
      %v728 = vshrl.u32 %v350, 16
      %v730 = vrot.slane %v728, 4
      %v731 = vshll.u32 %v350, 16
      %v733 = vrot.slane %v731, 5
      %v734 = vor.u32 %v730, %v733
      %v735 = vrot.slane %v734, 4
      %v736 = vsel %vm378, %v735, %v441
      %v738 = vshrl.u32 %v355, 16
      %v740 = vrot.slane %v738, 4
      %v741 = vshll.u32 %v355, 16
      %v743 = vrot.slane %v741, 5
      %v744 = vor.u32 %v740, %v743
      %v745 = vrot.slane %v744, 4
      %v746 = vsel %vm378, %v745, %v455
      %v748 = vshrl.u32 %v360, 16
      %v750 = vrot.slane %v748, 4
      %v751 = vshll.u32 %v360, 16
      %v753 = vrot.slane %v751, 5
      %v754 = vor.u32 %v750, %v753
      %v755 = vrot.slane %v754, 4
      %v756 = vsel %vm378, %v755, %v469
      %v758 = vshrl.u32 %v365, 16
      %v760 = vrot.slane %v758, 4
      %v761 = vshll.u32 %v365, 16
      %v763 = vrot.slane %v761, 5
      %v764 = vor.u32 %v760, %v763
      %v765 = vrot.slane %v764, 4
      %v766 = vsel %vm378, %v765, %v483
      %s767 = scalar_lea.vmem %s2, 4
      %v768 = vld [vmem:[%s767] sm:$0x3]
      %v769 = vunpack.c.l.b16 %v696
      %v770 = vunpack.c.l.b16 %v706
      %v771 = vunpack.c.l.b16 %v716
      %v772 = vunpack.c.l.b16 %v726
      %v773 = vunpack.c.l.b16 %v736
      %v774 = vunpack.c.l.b16 %v746
      %v775 = vunpack.c.l.b16 %v756
      %v776 = vunpack.c.l.b16 %v766
      %v777 = vpack.c.b16 %v770, %v769
      %v778 = vpack.c.b16 %v772, %v771
      %v779 = vpack.c.b16 %v774, %v773
      %v780 = vpack.c.b16 %v776, %v775
      %v782 = vsel %vm505, %v777, 0
      %v785 = vsel %vm505, %v778, 0
      %v788 = vsel %vm505, %v779, 0
      %v791 = vsel %vm505, %v780, 0
      %v794 = vsel %vm518, %v768, 0
      %796 = vmatprep.subr.bf16.mxu0 0
      %797 = vmatpush1.bf16.msra.mxu0 %v794
      %798 = vmatprep.subr.bf16.mxu0 0
      %799 = vmatpush1.bf16.msra.mxu0 0
      %800 = vmatprep.subr.bf16.mxu0 0
      %801 = vmatpush1.bf16.msra.mxu0 0
      %802 = vmatprep.subr.bf16.mxu0 0
      %803 = vmatpush1.bf16.msra.mxu0 0
      %804 = vmatprep.subr.bf16.mxu0 0
      %805 = vmatpush1.bf16.msra.mxu0 0
      %806 = vmatprep.subr.bf16.mxu0 0
      %807 = vmatpush1.bf16.msra.mxu0 0
      %808 = vmatprep.subr.bf16.mxu0 0
      %809 = vmatpush1.bf16.msra.mxu0 0
      %810 = vmatprep.subr.bf16.mxu0 0
      %811 = vmatpush1.bf16.msra.mxu0 0
      %812 = vmatprep.subr.bf16.mxu0 0
      %813 = vmatpush1.bf16.msra.mxu0 0
      %814 = vmatprep.subr.bf16.mxu0 0
      %815 = vmatpush1.bf16.msra.mxu0 0
      %816 = vmatprep.subr.bf16.mxu0 0
      %817 = vmatpush1.bf16.msra.mxu0 0
      %818 = vmatprep.subr.bf16.mxu0 0
      %819 = vmatpush1.bf16.msra.mxu0 0
      %820 = vmatprep.subr.bf16.mxu0 0
      %821 = vmatpush1.bf16.msra.mxu0 0
      %822 = vmatprep.subr.bf16.mxu0 0
      %823 = vmatpush1.bf16.msra.mxu0 0
      %824 = vmatprep.subr.bf16.mxu0 0
      %825 = vmatpush1.bf16.msra.mxu0 0
      %826 = vmatprep.subr.bf16.mxu0 0
      %827 = vmatpush1.bf16.msra.mxu0 0
      %828 = vmatprep.mubr.bf16.mxu0 0
      %829 = vmatmul.mubr.bf16.gmra.mrb[0].mxu0 %v782
      %v830 = vpop.f32.mrb[0].mxu0
      %v831 = vadd.f32 0.0, %v830
      %v832 = vpop.f32.mrb[0].mxu0
      %v833 = vpop.f32.mrb[0].mxu0
      %v834 = vadd.f32 0.0, %v833
      %v835 = vpop.f32.mrb[0].mxu0
      %836 = vmatprep.mubr.bf16.mxu0 0
      %837 = vmatmul.mubr.bf16.gmra.mrb[0].mxu0 %v785
      %v838 = vpop.f32.mrb[0].mxu0
      %v839 = vadd.f32 0.0, %v838
      %v840 = vpop.f32.mrb[0].mxu0
      %v841 = vpop.f32.mrb[0].mxu0
      %v842 = vadd.f32 0.0, %v841
      %v843 = vpop.f32.mrb[0].mxu0
      %844 = vmatprep.mubr.bf16.mxu0 0
      %845 = vmatmul.mubr.bf16.gmra.mrb[0].mxu0 %v788
      %v846 = vpop.f32.mrb[0].mxu0
      %v847 = vadd.f32 0.0, %v846
      %v848 = vpop.f32.mrb[0].mxu0
      %v849 = vpop.f32.mrb[0].mxu0
      %v850 = vadd.f32 0.0, %v849
      %v851 = vpop.f32.mrb[0].mxu0
      %852 = vmatprep.mubr.bf16.mxu0 0
      %853 = vmatmul.mubr.bf16.gmra.mrb[0].mxu0 %v791
      %v854 = vpop.f32.mrb[0].mxu0
      %v855 = vadd.f32 0.0, %v854
      %v856 = vpop.f32.mrb[0].mxu0
      %v857 = vpop.f32.mrb[0].mxu0
      %v858 = vadd.f32 0.0, %v857
      %v859 = vpop.f32.mrb[0].mxu0
      %860 = vdwg.mxu0
      %v861 = vadd.f32 %v657, %v831
      %v862 = vadd.f32 %v660, %v834
      %v863 = vadd.f32 %v665, %v839
      %v864 = vadd.f32 %v668, %v842
      %v865 = vadd.f32 %v673, %v847
      %v866 = vadd.f32 %v676, %v850
      %v867 = vadd.f32 %v681, %v855
      %v868 = vadd.f32 %v684, %v858
      %vm885 = vcmask 1042432
      %vm886 = vcmask 1046532
      %vm887 = vmor %vm885, %vm886
      %v888 = vrot.slane %v331, 5
      %v889 = vrot.slane %v888, 4
      %v890 = vrot.slane %v332, 5
      %v891 = vsel %vm887, %v889, %v890
      %v892 = vrot.slane %v336, 5
      %v893 = vrot.slane %v892, 4
      %v894 = vrot.slane %v337, 5
      %v895 = vsel %vm887, %v893, %v894
      %v896 = vrot.slane %v341, 5
      %v897 = vrot.slane %v896, 4
      %v898 = vrot.slane %v342, 5
      %v899 = vsel %vm887, %v897, %v898
      %v900 = vrot.slane %v346, 5
      %v901 = vrot.slane %v900, 4
      %v902 = vrot.slane %v347, 5
      %v903 = vsel %vm887, %v901, %v902
      %v904 = vrot.slane %v351, 5
      %v905 = vrot.slane %v904, 4
      %v906 = vrot.slane %v352, 5
      %v907 = vsel %vm887, %v905, %v906
      %v908 = vrot.slane %v356, 5
      %v909 = vrot.slane %v908, 4
      %v910 = vrot.slane %v357, 5
      %v911 = vsel %vm887, %v909, %v910
      %v912 = vrot.slane %v361, 5
      %v913 = vrot.slane %v912, 4
      %v914 = vrot.slane %v362, 5
      %v915 = vsel %vm887, %v913, %v914
      %v916 = vrot.slane %v366, 5
      %v917 = vrot.slane %v916, 4
      %v918 = vrot.slane %v367, 5
      %v919 = vsel %vm887, %v917, %v918
      %s920 = scalar_lea.vmem %s2, 6
      %v921 = vld [vmem:[%s920] sm:$0x3]
      %v922 = vunpack.c.l.b16 %v891
      %v923 = vunpack.c.l.b16 %v895
      %v924 = vunpack.c.l.b16 %v899
      %v925 = vunpack.c.l.b16 %v903
      %v926 = vunpack.c.l.b16 %v907
      %v927 = vunpack.c.l.b16 %v911
      %v928 = vunpack.c.l.b16 %v915
      %v929 = vunpack.c.l.b16 %v919
      %v930 = vpack.c.b16 %v923, %v922
      %v931 = vpack.c.b16 %v925, %v924
      %v932 = vpack.c.b16 %v927, %v926
      %v933 = vpack.c.b16 %v929, %v928
      %v935 = vsel %vm505, %v930, 0
      %v938 = vsel %vm505, %v931, 0
      %v941 = vsel %vm505, %v932, 0
      %v944 = vsel %vm505, %v933, 0
      %v947 = vsel %vm518, %v921, 0
      %949 = vmatprep.subr.bf16.mxu0 0
      %950 = vmatpush1.bf16.msra.mxu0 %v947
      %951 = vmatprep.subr.bf16.mxu0 0
      %952 = vmatpush1.bf16.msra.mxu0 0
      %953 = vmatprep.subr.bf16.mxu0 0
      %954 = vmatpush1.bf16.msra.mxu0 0
      %955 = vmatprep.subr.bf16.mxu0 0
      %956 = vmatpush1.bf16.msra.mxu0 0
      %957 = vmatprep.subr.bf16.mxu0 0
      %958 = vmatpush1.bf16.msra.mxu0 0
      %959 = vmatprep.subr.bf16.mxu0 0
      %960 = vmatpush1.bf16.msra.mxu0 0
      %961 = vmatprep.subr.bf16.mxu0 0
      %962 = vmatpush1.bf16.msra.mxu0 0
      %963 = vmatprep.subr.bf16.mxu0 0
      %964 = vmatpush1.bf16.msra.mxu0 0
      %965 = vmatprep.subr.bf16.mxu0 0
      %966 = vmatpush1.bf16.msra.mxu0 0
      %967 = vmatprep.subr.bf16.mxu0 0
      %968 = vmatpush1.bf16.msra.mxu0 0
      %969 = vmatprep.subr.bf16.mxu0 0
      %970 = vmatpush1.bf16.msra.mxu0 0
      %971 = vmatprep.subr.bf16.mxu0 0
      %972 = vmatpush1.bf16.msra.mxu0 0
      %973 = vmatprep.subr.bf16.mxu0 0
      %974 = vmatpush1.bf16.msra.mxu0 0
      %975 = vmatprep.subr.bf16.mxu0 0
      %976 = vmatpush1.bf16.msra.mxu0 0
      %977 = vmatprep.subr.bf16.mxu0 0
      %978 = vmatpush1.bf16.msra.mxu0 0
      %979 = vmatprep.subr.bf16.mxu0 0
      %980 = vmatpush1.bf16.msra.mxu0 0
      %981 = vmatprep.mubr.bf16.mxu0 0
      %982 = vmatmul.mubr.bf16.gmra.mrb[0].mxu0 %v935
      %v983 = vpop.f32.mrb[0].mxu0
      %v984 = vadd.f32 0.0, %v983
      %v985 = vpop.f32.mrb[0].mxu0
      %v986 = vpop.f32.mrb[0].mxu0
      %v987 = vadd.f32 0.0, %v986
      %v988 = vpop.f32.mrb[0].mxu0
      %989 = vmatprep.mubr.bf16.mxu0 0
      %990 = vmatmul.mubr.bf16.gmra.mrb[0].mxu0 %v938
      %v991 = vpop.f32.mrb[0].mxu0
      %v992 = vadd.f32 0.0, %v991
      %v993 = vpop.f32.mrb[0].mxu0
      %v994 = vpop.f32.mrb[0].mxu0
      %v995 = vadd.f32 0.0, %v994
      %v996 = vpop.f32.mrb[0].mxu0
      %997 = vmatprep.mubr.bf16.mxu0 0
      %998 = vmatmul.mubr.bf16.gmra.mrb[0].mxu0 %v941
      %v999 = vpop.f32.mrb[0].mxu0
      %v1000 = vadd.f32 0.0, %v999
      %v1001 = vpop.f32.mrb[0].mxu0
      %v1002 = vpop.f32.mrb[0].mxu0
      %v1003 = vadd.f32 0.0, %v1002
      %v1004 = vpop.f32.mrb[0].mxu0
      %1005 = vmatprep.mubr.bf16.mxu0 0
      %1006 = vmatmul.mubr.bf16.gmra.mrb[0].mxu0 %v944
      %v1007 = vpop.f32.mrb[0].mxu0
      %v1008 = vadd.f32 0.0, %v1007
      %v1009 = vpop.f32.mrb[0].mxu0
      %v1010 = vpop.f32.mrb[0].mxu0
      %v1011 = vadd.f32 0.0, %v1010
      %v1012 = vpop.f32.mrb[0].mxu0
      %1013 = vdwg.mxu0
      %v1014 = vadd.f32 %v861, %v984
      %v1015 = vadd.f32 %v862, %v987
      %v1016 = vadd.f32 %v863, %v992
      %v1017 = vadd.f32 %v864, %v995
      %v1018 = vadd.f32 %v865, %v1000
      %v1019 = vadd.f32 %v866, %v1003
      %v1020 = vadd.f32 %v867, %v1008
      %v1021 = vadd.f32 %v868, %v1011
      %v1030 = vrot.slane %v890, 4
      %v1031 = vrot.slane %v333, 5
      %v1032 = vsel %vm887, %v1030, %v1031
      %v1033 = vrot.slane %v894, 4
      %v1034 = vrot.slane %v338, 5
      %v1035 = vsel %vm887, %v1033, %v1034
      %v1036 = vrot.slane %v898, 4
      %v1037 = vrot.slane %v343, 5
      %v1038 = vsel %vm887, %v1036, %v1037
      %v1039 = vrot.slane %v902, 4
      %v1040 = vrot.slane %v348, 5
      %v1041 = vsel %vm887, %v1039, %v1040
      %v1042 = vrot.slane %v906, 4
      %v1043 = vrot.slane %v353, 5
      %v1044 = vsel %vm887, %v1042, %v1043
      %v1045 = vrot.slane %v910, 4
      %v1046 = vrot.slane %v358, 5
      %v1047 = vsel %vm887, %v1045, %v1046
      %v1048 = vrot.slane %v914, 4
      %v1049 = vrot.slane %v363, 5
      %v1050 = vsel %vm887, %v1048, %v1049
      %v1051 = vrot.slane %v918, 4
      %v1052 = vrot.slane %v368, 5
      %v1053 = vsel %vm887, %v1051, %v1052
      %s1054 = scalar_lea.vmem %s2, 8
      %v1055 = vld [vmem:[%s1054] sm:$0x3]
      %v1056 = vunpack.c.l.b16 %v1032
      %v1057 = vunpack.c.l.b16 %v1035
      %v1058 = vunpack.c.l.b16 %v1038
      %v1059 = vunpack.c.l.b16 %v1041
      %v1060 = vunpack.c.l.b16 %v1044
      %v1061 = vunpack.c.l.b16 %v1047
      %v1062 = vunpack.c.l.b16 %v1050
      %v1063 = vunpack.c.l.b16 %v1053
      %v1064 = vpack.c.b16 %v1057, %v1056
      %v1065 = vpack.c.b16 %v1059, %v1058
      %v1066 = vpack.c.b16 %v1061, %v1060
      %v1067 = vpack.c.b16 %v1063, %v1062
      %v1069 = vsel %vm505, %v1064, 0
      %v1072 = vsel %vm505, %v1065, 0
      %v1075 = vsel %vm505, %v1066, 0
      %v1078 = vsel %vm505, %v1067, 0
      %v1081 = vsel %vm518, %v1055, 0
      %1083 = vmatprep.subr.bf16.mxu0 0
      %1084 = vmatpush1.bf16.msra.mxu0 %v1081
      %1085 = vmatprep.subr.bf16.mxu0 0
      %1086 = vmatpush1.bf16.msra.mxu0 0
      %1087 = vmatprep.subr.bf16.mxu0 0
      %1088 = vmatpush1.bf16.msra.mxu0 0
      %1089 = vmatprep.subr.bf16.mxu0 0
      %1090 = vmatpush1.bf16.msra.mxu0 0
      %1091 = vmatprep.subr.bf16.mxu0 0
      %1092 = vmatpush1.bf16.msra.mxu0 0
      %1093 = vmatprep.subr.bf16.mxu0 0
      %1094 = vmatpush1.bf16.msra.mxu0 0
      %1095 = vmatprep.subr.bf16.mxu0 0
      %1096 = vmatpush1.bf16.msra.mxu0 0
      %1097 = vmatprep.subr.bf16.mxu0 0
      %1098 = vmatpush1.bf16.msra.mxu0 0
      %1099 = vmatprep.subr.bf16.mxu0 0
      %1100 = vmatpush1.bf16.msra.mxu0 0
      %1101 = vmatprep.subr.bf16.mxu0 0
      %1102 = vmatpush1.bf16.msra.mxu0 0
      %1103 = vmatprep.subr.bf16.mxu0 0
      %1104 = vmatpush1.bf16.msra.mxu0 0
      %1105 = vmatprep.subr.bf16.mxu0 0
      %1106 = vmatpush1.bf16.msra.mxu0 0
      %1107 = vmatprep.subr.bf16.mxu0 0
      %1108 = vmatpush1.bf16.msra.mxu0 0
      %1109 = vmatprep.subr.bf16.mxu0 0
      %1110 = vmatpush1.bf16.msra.mxu0 0
      %1111 = vmatprep.subr.bf16.mxu0 0
      %1112 = vmatpush1.bf16.msra.mxu0 0
      %1113 = vmatprep.subr.bf16.mxu0 0
      %1114 = vmatpush1.bf16.msra.mxu0 0
      %1115 = vmatprep.mubr.bf16.mxu0 0
      %1116 = vmatmul.mubr.bf16.gmra.mrb[0].mxu0 %v1069
      %v1117 = vpop.f32.mrb[0].mxu0
      %v1118 = vadd.f32 0.0, %v1117
      %v1119 = vpop.f32.mrb[0].mxu0
      %v1120 = vpop.f32.mrb[0].mxu0
      %v1121 = vadd.f32 0.0, %v1120
      %v1122 = vpop.f32.mrb[0].mxu0
      %1123 = vmatprep.mubr.bf16.mxu0 0
      %1124 = vmatmul.mubr.bf16.gmra.mrb[0].mxu0 %v1072
      %v1125 = vpop.f32.mrb[0].mxu0
      %v1126 = vadd.f32 0.0, %v1125
      %v1127 = vpop.f32.mrb[0].mxu0
      %v1128 = vpop.f32.mrb[0].mxu0
      %v1129 = vadd.f32 0.0, %v1128
      %v1130 = vpop.f32.mrb[0].mxu0
      %1131 = vmatprep.mubr.bf16.mxu0 0
      %1132 = vmatmul.mubr.bf16.gmra.mrb[0].mxu0 %v1075
      %v1133 = vpop.f32.mrb[0].mxu0
      %v1134 = vadd.f32 0.0, %v1133
      %v1135 = vpop.f32.mrb[0].mxu0
      %v1136 = vpop.f32.mrb[0].mxu0
      %v1137 = vadd.f32 0.0, %v1136
      %v1138 = vpop.f32.mrb[0].mxu0
      %1139 = vmatprep.mubr.bf16.mxu0 0
      %1140 = vmatmul.mubr.bf16.gmra.mrb[0].mxu0 %v1078
      %v1141 = vpop.f32.mrb[0].mxu0
      %v1142 = vadd.f32 0.0, %v1141
      %v1143 = vpop.f32.mrb[0].mxu0
      %v1144 = vpop.f32.mrb[0].mxu0
      %v1145 = vadd.f32 0.0, %v1144
      %v1146 = vpop.f32.mrb[0].mxu0
      %1147 = vdwg.mxu0
      %v1148 = vadd.f32 %v1014, %v1118
      %v1149 = vadd.f32 %v1015, %v1121
      %v1150 = vadd.f32 %v1016, %v1126
      %v1151 = vadd.f32 %v1017, %v1129
      %v1152 = vadd.f32 %v1018, %v1134
      %v1153 = vadd.f32 %v1019, %v1137
      %v1154 = vadd.f32 %v1020, %v1142
      %v1155 = vadd.f32 %v1021, %v1145
      %vm1156 = vsmask.f32 2304
      %vm1157 = vsmask.f32 6416
      %vm1158 = vmor %vm1156, %vm1157
      %v1160 = vshrl.u32 %v333, 16
      %v1162 = vrot.slane %v1160, 5
      %v1163 = vshll.u32 %v333, 16
      %v1165 = vrot.slane %v1163, 6
      %v1166 = vor.u32 %v1162, %v1165
      %v1167 = vrot.slane %v1166, 4
      %v1169 = vshrl.u32 %v334, 16
      %v1171 = vrot.slane %v1169, 5
      %v1172 = vshll.u32 %v334, 16
      %v1174 = vrot.slane %v1172, 6
      %v1175 = vor.u32 %v1171, %v1174
      %v1176 = vsel %vm1158, %v1167, %v1175
      %v1178 = vshrl.u32 %v338, 16
      %v1180 = vrot.slane %v1178, 5
      %v1181 = vshll.u32 %v338, 16
      %v1183 = vrot.slane %v1181, 6
      %v1184 = vor.u32 %v1180, %v1183
      %v1185 = vrot.slane %v1184, 4
      %v1187 = vshrl.u32 %v339, 16
      %v1189 = vrot.slane %v1187, 5
      %v1190 = vshll.u32 %v339, 16
      %v1192 = vrot.slane %v1190, 6
      %v1193 = vor.u32 %v1189, %v1192
      %v1194 = vsel %vm1158, %v1185, %v1193
      %v1196 = vshrl.u32 %v343, 16
      %v1198 = vrot.slane %v1196, 5
      %v1199 = vshll.u32 %v343, 16
      %v1201 = vrot.slane %v1199, 6
      %v1202 = vor.u32 %v1198, %v1201
      %v1203 = vrot.slane %v1202, 4
      %v1205 = vshrl.u32 %v344, 16
      %v1207 = vrot.slane %v1205, 5
      %v1208 = vshll.u32 %v344, 16
      %v1210 = vrot.slane %v1208, 6
      %v1211 = vor.u32 %v1207, %v1210
      %v1212 = vsel %vm1158, %v1203, %v1211
      %v1214 = vshrl.u32 %v348, 16
      %v1216 = vrot.slane %v1214, 5
      %v1217 = vshll.u32 %v348, 16
      %v1219 = vrot.slane %v1217, 6
      %v1220 = vor.u32 %v1216, %v1219
      %v1221 = vrot.slane %v1220, 4
      %v1223 = vshrl.u32 %v349, 16
      %v1225 = vrot.slane %v1223, 5
      %v1226 = vshll.u32 %v349, 16
      %v1228 = vrot.slane %v1226, 6
      %v1229 = vor.u32 %v1225, %v1228
      %v1230 = vsel %vm1158, %v1221, %v1229
      %v1232 = vshrl.u32 %v353, 16
      %v1234 = vrot.slane %v1232, 5
      %v1235 = vshll.u32 %v353, 16
      %v1237 = vrot.slane %v1235, 6
      %v1238 = vor.u32 %v1234, %v1237
      %v1239 = vrot.slane %v1238, 4
      %v1241 = vshrl.u32 %v354, 16
      %v1243 = vrot.slane %v1241, 5
      %v1244 = vshll.u32 %v354, 16
      %v1246 = vrot.slane %v1244, 6
      %v1247 = vor.u32 %v1243, %v1246
      %v1248 = vsel %vm1158, %v1239, %v1247
      %v1250 = vshrl.u32 %v358, 16
      %v1252 = vrot.slane %v1250, 5
      %v1253 = vshll.u32 %v358, 16
      %v1255 = vrot.slane %v1253, 6
      %v1256 = vor.u32 %v1252, %v1255
      %v1257 = vrot.slane %v1256, 4
      %v1259 = vshrl.u32 %v359, 16
      %v1261 = vrot.slane %v1259, 5
      %v1262 = vshll.u32 %v359, 16
      %v1264 = vrot.slane %v1262, 6
      %v1265 = vor.u32 %v1261, %v1264
      %v1266 = vsel %vm1158, %v1257, %v1265
      %v1268 = vshrl.u32 %v363, 16
      %v1270 = vrot.slane %v1268, 5
      %v1271 = vshll.u32 %v363, 16
      %v1273 = vrot.slane %v1271, 6
      %v1274 = vor.u32 %v1270, %v1273
      %v1275 = vrot.slane %v1274, 4
      %v1277 = vshrl.u32 %v364, 16
      %v1279 = vrot.slane %v1277, 5
      %v1280 = vshll.u32 %v364, 16
      %v1282 = vrot.slane %v1280, 6
      %v1283 = vor.u32 %v1279, %v1282
      %v1284 = vsel %vm1158, %v1275, %v1283
      %v1286 = vshrl.u32 %v368, 16
      %v1288 = vrot.slane %v1286, 5
      %v1289 = vshll.u32 %v368, 16
      %v1291 = vrot.slane %v1289, 6
      %v1292 = vor.u32 %v1288, %v1291
      %v1293 = vrot.slane %v1292, 4
      %v1295 = vshrl.u32 %v369, 16
      %v1297 = vrot.slane %v1295, 5
      %v1298 = vshll.u32 %v369, 16
      %v1300 = vrot.slane %v1298, 6
      %v1301 = vor.u32 %v1297, %v1300
      %v1302 = vsel %vm1158, %v1293, %v1301
      %s1303 = scalar_lea.vmem %s2, 10
      %v1304 = vld [vmem:[%s1303] sm:$0x3]
      %v1305 = vunpack.c.l.b16 %v1176
      %v1306 = vunpack.c.l.b16 %v1194
      %v1307 = vunpack.c.l.b16 %v1212
      %v1308 = vunpack.c.l.b16 %v1230
      %v1309 = vunpack.c.l.b16 %v1248
      %v1310 = vunpack.c.l.b16 %v1266
      %v1311 = vunpack.c.l.b16 %v1284
      %v1312 = vunpack.c.l.b16 %v1302
      %v1313 = vpack.c.b16 %v1306, %v1305
      %v1314 = vpack.c.b16 %v1308, %v1307
      %v1315 = vpack.c.b16 %v1310, %v1309
      %v1316 = vpack.c.b16 %v1312, %v1311
      %v1318 = vsel %vm505, %v1313, 0
      %v1321 = vsel %vm505, %v1314, 0
      %v1324 = vsel %vm505, %v1315, 0
      %v1327 = vsel %vm505, %v1316, 0
      %v1330 = vsel %vm518, %v1304, 0
      %1332 = vmatprep.subr.bf16.mxu0 0
      %1333 = vmatpush1.bf16.msra.mxu0 %v1330
      %1334 = vmatprep.subr.bf16.mxu0 0
      %1335 = vmatpush1.bf16.msra.mxu0 0
      %1336 = vmatprep.subr.bf16.mxu0 0
      %1337 = vmatpush1.bf16.msra.mxu0 0
      %1338 = vmatprep.subr.bf16.mxu0 0
      %1339 = vmatpush1.bf16.msra.mxu0 0
      %1340 = vmatprep.subr.bf16.mxu0 0
      %1341 = vmatpush1.bf16.msra.mxu0 0
      %1342 = vmatprep.subr.bf16.mxu0 0
      %1343 = vmatpush1.bf16.msra.mxu0 0
      %1344 = vmatprep.subr.bf16.mxu0 0
      %1345 = vmatpush1.bf16.msra.mxu0 0
      %1346 = vmatprep.subr.bf16.mxu0 0
      %1347 = vmatpush1.bf16.msra.mxu0 0
      %1348 = vmatprep.subr.bf16.mxu0 0
      %1349 = vmatpush1.bf16.msra.mxu0 0
      %1350 = vmatprep.subr.bf16.mxu0 0
      %1351 = vmatpush1.bf16.msra.mxu0 0
      %1352 = vmatprep.subr.bf16.mxu0 0
      %1353 = vmatpush1.bf16.msra.mxu0 0
      %1354 = vmatprep.subr.bf16.mxu0 0
      %1355 = vmatpush1.bf16.msra.mxu0 0
      %1356 = vmatprep.subr.bf16.mxu0 0
      %1357 = vmatpush1.bf16.msra.mxu0 0
      %1358 = vmatprep.subr.bf16.mxu0 0
      %1359 = vmatpush1.bf16.msra.mxu0 0
      %1360 = vmatprep.subr.bf16.mxu0 0
      %1361 = vmatpush1.bf16.msra.mxu0 0
      %1362 = vmatprep.subr.bf16.mxu0 0
      %1363 = vmatpush1.bf16.msra.mxu0 0
      %1364 = vmatprep.mubr.bf16.mxu0 0
      %1365 = vmatmul.mubr.bf16.gmra.mrb[0].mxu0 %v1318
      %v1366 = vpop.f32.mrb[0].mxu0
      %v1367 = vadd.f32 0.0, %v1366
      %v1368 = vpop.f32.mrb[0].mxu0
      %v1369 = vpop.f32.mrb[0].mxu0
      %v1370 = vadd.f32 0.0, %v1369
      %v1371 = vpop.f32.mrb[0].mxu0
      %1372 = vmatprep.mubr.bf16.mxu0 0
      %1373 = vmatmul.mubr.bf16.gmra.mrb[0].mxu0 %v1321
      %v1374 = vpop.f32.mrb[0].mxu0
      %v1375 = vadd.f32 0.0, %v1374
      %v1376 = vpop.f32.mrb[0].mxu0
      %v1377 = vpop.f32.mrb[0].mxu0
      %v1378 = vadd.f32 0.0, %v1377
      %v1379 = vpop.f32.mrb[0].mxu0
      %1380 = vmatprep.mubr.bf16.mxu0 0
      %1381 = vmatmul.mubr.bf16.gmra.mrb[0].mxu0 %v1324
      %v1382 = vpop.f32.mrb[0].mxu0
      %v1383 = vadd.f32 0.0, %v1382
      %v1384 = vpop.f32.mrb[0].mxu0
      %v1385 = vpop.f32.mrb[0].mxu0
      %v1386 = vadd.f32 0.0, %v1385
      %v1387 = vpop.f32.mrb[0].mxu0
      %1388 = vmatprep.mubr.bf16.mxu0 0
      %1389 = vmatmul.mubr.bf16.gmra.mrb[0].mxu0 %v1327
      %v1390 = vpop.f32.mrb[0].mxu0
      %v1391 = vadd.f32 0.0, %v1390
      %v1392 = vpop.f32.mrb[0].mxu0
      %v1393 = vpop.f32.mrb[0].mxu0
      %v1394 = vadd.f32 0.0, %v1393
      %v1395 = vpop.f32.mrb[0].mxu0
      %1396 = vdwg.mxu0
      %v1397 = vadd.f32 %v1148, %v1367
      %v1398 = vadd.f32 %v1149, %v1370
      %v1399 = vadd.f32 %v1150, %v1375
      %v1400 = vadd.f32 %v1151, %v1378
      %v1401 = vadd.f32 %v1152, %v1383
      %v1402 = vadd.f32 %v1153, %v1386
      %v1403 = vadd.f32 %v1154, %v1391
      %v1404 = vadd.f32 %v1155, %v1394
      %v1405 = vshrl.u32 %v332, 16
      %v1407 = vrot.slane %v1405, 5
      %v1408 = vrot.slane %v389, 6
      %v1409 = vor.u32 %v1407, %v1408
      %v1410 = vrot.slane %v1409, 4
      %v1411 = vsel %vm1158, %v1410, %v1166
      %v1412 = vshrl.u32 %v337, 16
      %v1414 = vrot.slane %v1412, 5
      %v1415 = vrot.slane %v403, 6
      %v1416 = vor.u32 %v1414, %v1415
      %v1417 = vrot.slane %v1416, 4
      %v1418 = vsel %vm1158, %v1417, %v1184
      %v1419 = vshrl.u32 %v342, 16
      %v1421 = vrot.slane %v1419, 5
      %v1422 = vrot.slane %v417, 6
      %v1423 = vor.u32 %v1421, %v1422
      %v1424 = vrot.slane %v1423, 4
      %v1425 = vsel %vm1158, %v1424, %v1202
      %v1426 = vshrl.u32 %v347, 16
      %v1428 = vrot.slane %v1426, 5
      %v1429 = vrot.slane %v431, 6
      %v1430 = vor.u32 %v1428, %v1429
      %v1431 = vrot.slane %v1430, 4
      %v1432 = vsel %vm1158, %v1431, %v1220
      %v1433 = vshrl.u32 %v352, 16
      %v1435 = vrot.slane %v1433, 5
      %v1436 = vrot.slane %v445, 6
      %v1437 = vor.u32 %v1435, %v1436
      %v1438 = vrot.slane %v1437, 4
      %v1439 = vsel %vm1158, %v1438, %v1238
      %v1440 = vshrl.u32 %v357, 16
      %v1442 = vrot.slane %v1440, 5
      %v1443 = vrot.slane %v459, 6
      %v1444 = vor.u32 %v1442, %v1443
      %v1445 = vrot.slane %v1444, 4
      %v1446 = vsel %vm1158, %v1445, %v1256
      %v1447 = vshrl.u32 %v362, 16
      %v1449 = vrot.slane %v1447, 5
      %v1450 = vrot.slane %v473, 6
      %v1451 = vor.u32 %v1449, %v1450
      %v1452 = vrot.slane %v1451, 4
      %v1453 = vsel %vm1158, %v1452, %v1274
      %v1454 = vshrl.u32 %v367, 16
      %v1456 = vrot.slane %v1454, 5
      %v1457 = vrot.slane %v487, 6
      %v1458 = vor.u32 %v1456, %v1457
      %v1459 = vrot.slane %v1458, 4
      %v1460 = vsel %vm1158, %v1459, %v1292
      %s1461 = scalar_lea.vmem %s2, 12
      %v1462 = vld [vmem:[%s1461] sm:$0x3]
      %v1463 = vunpack.c.l.b16 %v1411
      %v1464 = vunpack.c.l.b16 %v1418
      %v1465 = vunpack.c.l.b16 %v1425
      %v1466 = vunpack.c.l.b16 %v1432
      %v1467 = vunpack.c.l.b16 %v1439
      %v1468 = vunpack.c.l.b16 %v1446
      %v1469 = vunpack.c.l.b16 %v1453
      %v1470 = vunpack.c.l.b16 %v1460
      %v1471 = vpack.c.b16 %v1464, %v1463
      %v1472 = vpack.c.b16 %v1466, %v1465
      %v1473 = vpack.c.b16 %v1468, %v1467
      %v1474 = vpack.c.b16 %v1470, %v1469
      %v1476 = vsel %vm505, %v1471, 0
      %v1479 = vsel %vm505, %v1472, 0
      %v1482 = vsel %vm505, %v1473, 0
      %v1485 = vsel %vm505, %v1474, 0
      %v1488 = vsel %vm518, %v1462, 0
      %1490 = vmatprep.subr.bf16.mxu0 0
      %1491 = vmatpush1.bf16.msra.mxu0 %v1488
      %1492 = vmatprep.subr.bf16.mxu0 0
      %1493 = vmatpush1.bf16.msra.mxu0 0
      %1494 = vmatprep.subr.bf16.mxu0 0
      %1495 = vmatpush1.bf16.msra.mxu0 0
      %1496 = vmatprep.subr.bf16.mxu0 0
      %1497 = vmatpush1.bf16.msra.mxu0 0
      %1498 = vmatprep.subr.bf16.mxu0 0
      %1499 = vmatpush1.bf16.msra.mxu0 0
      %1500 = vmatprep.subr.bf16.mxu0 0
      %1501 = vmatpush1.bf16.msra.mxu0 0
      %1502 = vmatprep.subr.bf16.mxu0 0
      %1503 = vmatpush1.bf16.msra.mxu0 0
      %1504 = vmatprep.subr.bf16.mxu0 0
      %1505 = vmatpush1.bf16.msra.mxu0 0
      %1506 = vmatprep.subr.bf16.mxu0 0
      %1507 = vmatpush1.bf16.msra.mxu0 0
      %1508 = vmatprep.subr.bf16.mxu0 0
      %1509 = vmatpush1.bf16.msra.mxu0 0
      %1510 = vmatprep.subr.bf16.mxu0 0
      %1511 = vmatpush1.bf16.msra.mxu0 0
      %1512 = vmatprep.subr.bf16.mxu0 0
      %1513 = vmatpush1.bf16.msra.mxu0 0
      %1514 = vmatprep.subr.bf16.mxu0 0
      %1515 = vmatpush1.bf16.msra.mxu0 0
      %1516 = vmatprep.subr.bf16.mxu0 0
      %1517 = vmatpush1.bf16.msra.mxu0 0
      %1518 = vmatprep.subr.bf16.mxu0 0
      %1519 = vmatpush1.bf16.msra.mxu0 0
      %1520 = vmatprep.subr.bf16.mxu0 0
      %1521 = vmatpush1.bf16.msra.mxu0 0
      %1522 = vmatprep.mubr.bf16.mxu0 0
      %1523 = vmatmul.mubr.bf16.gmra.mrb[0].mxu0 %v1476
      %v1524 = vpop.f32.mrb[0].mxu0
      %v1525 = vadd.f32 0.0, %v1524
      %v1526 = vpop.f32.mrb[0].mxu0
      %v1527 = vpop.f32.mrb[0].mxu0
      %v1528 = vadd.f32 0.0, %v1527
      %v1529 = vpop.f32.mrb[0].mxu0
      %1530 = vmatprep.mubr.bf16.mxu0 0
      %1531 = vmatmul.mubr.bf16.gmra.mrb[0].mxu0 %v1479
      %v1532 = vpop.f32.mrb[0].mxu0
      %v1533 = vadd.f32 0.0, %v1532
      %v1534 = vpop.f32.mrb[0].mxu0
      %v1535 = vpop.f32.mrb[0].mxu0
      %v1536 = vadd.f32 0.0, %v1535
      %v1537 = vpop.f32.mrb[0].mxu0
      %1538 = vmatprep.mubr.bf16.mxu0 0
      %1539 = vmatmul.mubr.bf16.gmra.mrb[0].mxu0 %v1482
      %v1540 = vpop.f32.mrb[0].mxu0
      %v1541 = vadd.f32 0.0, %v1540
      %v1542 = vpop.f32.mrb[0].mxu0
      %v1543 = vpop.f32.mrb[0].mxu0
      %v1544 = vadd.f32 0.0, %v1543
      %v1545 = vpop.f32.mrb[0].mxu0
      %1546 = vmatprep.mubr.bf16.mxu0 0
      %1547 = vmatmul.mubr.bf16.gmra.mrb[0].mxu0 %v1485
      %v1548 = vpop.f32.mrb[0].mxu0
      %v1549 = vadd.f32 0.0, %v1548
      %v1550 = vpop.f32.mrb[0].mxu0
      %v1551 = vpop.f32.mrb[0].mxu0
      %v1552 = vadd.f32 0.0, %v1551
      %v1553 = vpop.f32.mrb[0].mxu0
      %1554 = vdwg.mxu0
      %v1555 = vadd.f32 %v1397, %v1525
      %v1556 = vadd.f32 %v1398, %v1528
      %v1557 = vadd.f32 %v1399, %v1533
      %v1558 = vadd.f32 %v1400, %v1536
      %v1559 = vadd.f32 %v1401, %v1541
      %v1560 = vadd.f32 %v1402, %v1544
      %v1561 = vadd.f32 %v1403, %v1549
      %v1562 = vadd.f32 %v1404, %v1552
      %vm1571 = vcmask 1041408
      %vm1572 = vcmask 1045508
      %vm1573 = vmor %vm1571, %vm1572
      %v1574 = vrot.slane %v333, 6
      %v1575 = vrot.slane %v1574, 4
      %v1576 = vrot.slane %v334, 6
      %v1577 = vsel %vm1573, %v1575, %v1576
      %v1578 = vrot.slane %v338, 6
      %v1579 = vrot.slane %v1578, 4
      %v1580 = vrot.slane %v339, 6
      %v1581 = vsel %vm1573, %v1579, %v1580
      %v1582 = vrot.slane %v343, 6
      %v1583 = vrot.slane %v1582, 4
      %v1584 = vrot.slane %v344, 6
      %v1585 = vsel %vm1573, %v1583, %v1584
      %v1586 = vrot.slane %v348, 6
      %v1587 = vrot.slane %v1586, 4
      %v1588 = vrot.slane %v349, 6
      %v1589 = vsel %vm1573, %v1587, %v1588
      %v1590 = vrot.slane %v353, 6
      %v1591 = vrot.slane %v1590, 4
      %v1592 = vrot.slane %v354, 6
      %v1593 = vsel %vm1573, %v1591, %v1592
      %v1594 = vrot.slane %v358, 6
      %v1595 = vrot.slane %v1594, 4
      %v1596 = vrot.slane %v359, 6
      %v1597 = vsel %vm1573, %v1595, %v1596
      %v1598 = vrot.slane %v363, 6
      %v1599 = vrot.slane %v1598, 4
      %v1600 = vrot.slane %v364, 6
      %v1601 = vsel %vm1573, %v1599, %v1600
      %v1602 = vrot.slane %v368, 6
      %v1603 = vrot.slane %v1602, 4
      %v1604 = vrot.slane %v369, 6
      %v1605 = vsel %vm1573, %v1603, %v1604
      %s1606 = scalar_lea.vmem %s2, 14
      %v1607 = vld [vmem:[%s1606] sm:$0x3]
      %v1608 = vunpack.c.l.b16 %v1577
      %v1609 = vunpack.c.l.b16 %v1581
      %v1610 = vunpack.c.l.b16 %v1585
      %v1611 = vunpack.c.l.b16 %v1589
      %v1612 = vunpack.c.l.b16 %v1593
      %v1613 = vunpack.c.l.b16 %v1597
      %v1614 = vunpack.c.l.b16 %v1601
      %v1615 = vunpack.c.l.b16 %v1605
      %v1616 = vpack.c.b16 %v1609, %v1608
      %v1617 = vpack.c.b16 %v1611, %v1610
      %v1618 = vpack.c.b16 %v1613, %v1612
      %v1619 = vpack.c.b16 %v1615, %v1614
      %v1621 = vsel %vm505, %v1616, 0
      %v1624 = vsel %vm505, %v1617, 0
      %v1627 = vsel %vm505, %v1618, 0
      %v1630 = vsel %vm505, %v1619, 0
      %v1633 = vsel %vm518, %v1607, 0
      %1635 = vmatprep.subr.bf16.mxu0 0
      %1636 = vmatpush1.bf16.msra.mxu0 %v1633
      %1637 = vmatprep.subr.bf16.mxu0 0
      %1638 = vmatpush1.bf16.msra.mxu0 0
      %1639 = vmatprep.subr.bf16.mxu0 0
      %1640 = vmatpush1.bf16.msra.mxu0 0
      %1641 = vmatprep.subr.bf16.mxu0 0
      %1642 = vmatpush1.bf16.msra.mxu0 0
      %1643 = vmatprep.subr.bf16.mxu0 0
      %1644 = vmatpush1.bf16.msra.mxu0 0
      %1645 = vmatprep.subr.bf16.mxu0 0
      %1646 = vmatpush1.bf16.msra.mxu0 0
      %1647 = vmatprep.subr.bf16.mxu0 0
      %1648 = vmatpush1.bf16.msra.mxu0 0
      %1649 = vmatprep.subr.bf16.mxu0 0
      %1650 = vmatpush1.bf16.msra.mxu0 0
      %1651 = vmatprep.subr.bf16.mxu0 0
      %1652 = vmatpush1.bf16.msra.mxu0 0
      %1653 = vmatprep.subr.bf16.mxu0 0
      %1654 = vmatpush1.bf16.msra.mxu0 0
      %1655 = vmatprep.subr.bf16.mxu0 0
      %1656 = vmatpush1.bf16.msra.mxu0 0
      %1657 = vmatprep.subr.bf16.mxu0 0
      %1658 = vmatpush1.bf16.msra.mxu0 0
      %1659 = vmatprep.subr.bf16.mxu0 0
      %1660 = vmatpush1.bf16.msra.mxu0 0
      %1661 = vmatprep.subr.bf16.mxu0 0
      %1662 = vmatpush1.bf16.msra.mxu0 0
      %1663 = vmatprep.subr.bf16.mxu0 0
      %1664 = vmatpush1.bf16.msra.mxu0 0
      %1665 = vmatprep.subr.bf16.mxu0 0
      %1666 = vmatpush1.bf16.msra.mxu0 0
      %1667 = vmatprep.mubr.bf16.mxu0 0
      %1668 = vmatmul.mubr.bf16.gmra.mrb[0].mxu0 %v1621
      %v1669 = vpop.f32.mrb[0].mxu0
      %v1670 = vadd.f32 0.0, %v1669
      %v1671 = vpop.f32.mrb[0].mxu0
      %v1672 = vpop.f32.mrb[0].mxu0
      %v1673 = vadd.f32 0.0, %v1672
      %v1674 = vpop.f32.mrb[0].mxu0
      %1675 = vmatprep.mubr.bf16.mxu0 0
      %1676 = vmatmul.mubr.bf16.gmra.mrb[0].mxu0 %v1624
      %v1677 = vpop.f32.mrb[0].mxu0
      %v1678 = vadd.f32 0.0, %v1677
      %v1679 = vpop.f32.mrb[0].mxu0
      %v1680 = vpop.f32.mrb[0].mxu0
      %v1681 = vadd.f32 0.0, %v1680
      %v1682 = vpop.f32.mrb[0].mxu0
      %1683 = vmatprep.mubr.bf16.mxu0 0
      %1684 = vmatmul.mubr.bf16.gmra.mrb[0].mxu0 %v1627
      %v1685 = vpop.f32.mrb[0].mxu0
      %v1686 = vadd.f32 0.0, %v1685
      %v1687 = vpop.f32.mrb[0].mxu0
      %v1688 = vpop.f32.mrb[0].mxu0
      %v1689 = vadd.f32 0.0, %v1688
      %v1690 = vpop.f32.mrb[0].mxu0
      %1691 = vmatprep.mubr.bf16.mxu0 0
      %1692 = vmatmul.mubr.bf16.gmra.mrb[0].mxu0 %v1630
      %v1693 = vpop.f32.mrb[0].mxu0
      %v1694 = vadd.f32 0.0, %v1693
      %v1695 = vpop.f32.mrb[0].mxu0
      %v1696 = vpop.f32.mrb[0].mxu0
      %v1697 = vadd.f32 0.0, %v1696
      %v1698 = vpop.f32.mrb[0].mxu0
      %1699 = vdwg.mxu0
      %v1700 = vadd.f32 %v1555, %v1670
      %v1701 = vadd.f32 %v1556, %v1673
      %v1702 = vadd.f32 %v1557, %v1678
      %v1703 = vadd.f32 %v1558, %v1681
      %v1704 = vadd.f32 %v1559, %v1686
      %v1705 = vadd.f32 %v1560, %v1689
      %v1706 = vadd.f32 %v1561, %v1694
      %v1707 = vadd.f32 %v1562, %v1697
      %s1708 = scalar_lea.vmem %s2, 16
      %v1709 = vld [vmem:[%s1708] sm:$0x3]
      %v1711 = vunpack.c.l.b16 %v370
      %v1712 = vpack.c.b16 %v597, %v596
      %v1713 = vpack.c.b16 %v599, %v598
      %v1714 = vpack.c.b16 %v601, %v600
      %v1715 = vpack.c.b16 %v1711, %v602
      %v1717 = vsel %vm505, %v1712, 0
      %v1720 = vsel %vm505, %v1713, 0
      %v1723 = vsel %vm505, %v1714, 0
      %v1726 = vsel %vm505, %v1715, 0
      %v1729 = vsel %vm518, %v1709, 0
      %1731 = vmatprep.subr.bf16.mxu0 0
      %1732 = vmatpush1.bf16.msra.mxu0 %v1729
      %1733 = vmatprep.subr.bf16.mxu0 0
      %1734 = vmatpush1.bf16.msra.mxu0 0
      %1735 = vmatprep.subr.bf16.mxu0 0
      %1736 = vmatpush1.bf16.msra.mxu0 0
      %1737 = vmatprep.subr.bf16.mxu0 0
      %1738 = vmatpush1.bf16.msra.mxu0 0
      %1739 = vmatprep.subr.bf16.mxu0 0
      %1740 = vmatpush1.bf16.msra.mxu0 0
      %1741 = vmatprep.subr.bf16.mxu0 0
      %1742 = vmatpush1.bf16.msra.mxu0 0
      %1743 = vmatprep.subr.bf16.mxu0 0
      %1744 = vmatpush1.bf16.msra.mxu0 0
      %1745 = vmatprep.subr.bf16.mxu0 0
      %1746 = vmatpush1.bf16.msra.mxu0 0
      %1747 = vmatprep.subr.bf16.mxu0 0
      %1748 = vmatpush1.bf16.msra.mxu0 0
      %1749 = vmatprep.subr.bf16.mxu0 0
      %1750 = vmatpush1.bf16.msra.mxu0 0
      %1751 = vmatprep.subr.bf16.mxu0 0
      %1752 = vmatpush1.bf16.msra.mxu0 0
      %1753 = vmatprep.subr.bf16.mxu0 0
      %1754 = vmatpush1.bf16.msra.mxu0 0
      %1755 = vmatprep.subr.bf16.mxu0 0
      %1756 = vmatpush1.bf16.msra.mxu0 0
      %1757 = vmatprep.subr.bf16.mxu0 0
      %1758 = vmatpush1.bf16.msra.mxu0 0
      %1759 = vmatprep.subr.bf16.mxu0 0
      %1760 = vmatpush1.bf16.msra.mxu0 0
      %1761 = vmatprep.subr.bf16.mxu0 0
      %1762 = vmatpush1.bf16.msra.mxu0 0
      %1763 = vmatprep.mubr.bf16.mxu0 0
      %1764 = vmatmul.mubr.bf16.gmra.mrb[0].mxu0 %v1717
      %v1765 = vpop.f32.mrb[0].mxu0
      %v1766 = vadd.f32 0.0, %v1765
      %v1767 = vpop.f32.mrb[0].mxu0
      %v1768 = vpop.f32.mrb[0].mxu0
      %v1769 = vadd.f32 0.0, %v1768
      %v1770 = vpop.f32.mrb[0].mxu0
      %1771 = vmatprep.mubr.bf16.mxu0 0
      %1772 = vmatmul.mubr.bf16.gmra.mrb[0].mxu0 %v1720
      %v1773 = vpop.f32.mrb[0].mxu0
      %v1774 = vadd.f32 0.0, %v1773
      %v1775 = vpop.f32.mrb[0].mxu0
      %v1776 = vpop.f32.mrb[0].mxu0
      %v1777 = vadd.f32 0.0, %v1776
      %v1778 = vpop.f32.mrb[0].mxu0
      %1779 = vmatprep.mubr.bf16.mxu0 0
      %1780 = vmatmul.mubr.bf16.gmra.mrb[0].mxu0 %v1723
      %v1781 = vpop.f32.mrb[0].mxu0
      %v1782 = vadd.f32 0.0, %v1781
      %v1783 = vpop.f32.mrb[0].mxu0
      %v1784 = vpop.f32.mrb[0].mxu0
      %v1785 = vadd.f32 0.0, %v1784
      %v1786 = vpop.f32.mrb[0].mxu0
      %1787 = vmatprep.mubr.bf16.mxu0 0
      %1788 = vmatmul.mubr.bf16.gmra.mrb[0].mxu0 %v1726
      %v1789 = vpop.f32.mrb[0].mxu0
      %v1790 = vadd.f32 0.0, %v1789
      %v1791 = vpop.f32.mrb[0].mxu0
      %v1792 = vpop.f32.mrb[0].mxu0
      %v1793 = vadd.f32 0.0, %v1792
      %v1794 = vpop.f32.mrb[0].mxu0
      %1795 = vdwg.mxu0
      %v1796 = vadd.f32 %v1700, %v1766
      %v1797 = vadd.f32 %v1701, %v1769
      %v1798 = vadd.f32 %v1702, %v1774
      %v1799 = vadd.f32 %v1703, %v1777
      %v1800 = vadd.f32 %v1704, %v1782
      %v1801 = vadd.f32 %v1705, %v1785
      %v1802 = vadd.f32 %v1706, %v1790
      %v1803 = vadd.f32 %v1707, %v1793
      %v1805 = vshrl.u32 %v371, 16
      %v1807 = vrot.slane %v1805, 4
      %v1808 = vshll.u32 %v371, 16
      %v1810 = vrot.slane %v1808, 5
      %v1811 = vor.u32 %v1807, %v1810
      %v1812 = vrot.slane %v1811, 4
      %v1814 = vshll.u32 %v372, 16
      %v1816 = vrot.slane %v1814, 5
      %v1817 = vsel %vm378, %v1812, %v1816
      %s1818 = scalar_lea.vmem %s2, 18
      %v1819 = vld [vmem:[%s1818] sm:$0x3]
      %v1820 = vunpack.c.l.b16 %v1817
      %v1821 = vpack.c.b16 %v495, %v494
      %v1822 = vpack.c.b16 %v497, %v496
      %v1823 = vpack.c.b16 %v499, %v498
      %v1824 = vpack.c.b16 %v1820, %v500
      %v1826 = vsel %vm505, %v1821, 0
      %v1829 = vsel %vm505, %v1822, 0
      %v1832 = vsel %vm505, %v1823, 0
      %v1835 = vsel %vm505, %v1824, 0
      %v1838 = vsel %vm518, %v1819, 0
      %1840 = vmatprep.subr.bf16.mxu0 0
      %1841 = vmatpush1.bf16.msra.mxu0 %v1838
      %1842 = vmatprep.subr.bf16.mxu0 0
      %1843 = vmatpush1.bf16.msra.mxu0 0
      %1844 = vmatprep.subr.bf16.mxu0 0
      %1845 = vmatpush1.bf16.msra.mxu0 0
      %1846 = vmatprep.subr.bf16.mxu0 0
      %1847 = vmatpush1.bf16.msra.mxu0 0
      %1848 = vmatprep.subr.bf16.mxu0 0
      %1849 = vmatpush1.bf16.msra.mxu0 0
      %1850 = vmatprep.subr.bf16.mxu0 0
      %1851 = vmatpush1.bf16.msra.mxu0 0
      %1852 = vmatprep.subr.bf16.mxu0 0
      %1853 = vmatpush1.bf16.msra.mxu0 0
      %1854 = vmatprep.subr.bf16.mxu0 0
      %1855 = vmatpush1.bf16.msra.mxu0 0
      %1856 = vmatprep.subr.bf16.mxu0 0
      %1857 = vmatpush1.bf16.msra.mxu0 0
      %1858 = vmatprep.subr.bf16.mxu0 0
      %1859 = vmatpush1.bf16.msra.mxu0 0
      %1860 = vmatprep.subr.bf16.mxu0 0
      %1861 = vmatpush1.bf16.msra.mxu0 0
      %1862 = vmatprep.subr.bf16.mxu0 0
      %1863 = vmatpush1.bf16.msra.mxu0 0
      %1864 = vmatprep.subr.bf16.mxu0 0
      %1865 = vmatpush1.bf16.msra.mxu0 0
      %1866 = vmatprep.subr.bf16.mxu0 0
      %1867 = vmatpush1.bf16.msra.mxu0 0
      %1868 = vmatprep.subr.bf16.mxu0 0
      %1869 = vmatpush1.bf16.msra.mxu0 0
      %1870 = vmatprep.subr.bf16.mxu0 0
      %1871 = vmatpush1.bf16.msra.mxu0 0
      %1872 = vmatprep.mubr.bf16.mxu0 0
      %1873 = vmatmul.mubr.bf16.gmra.mrb[0].mxu0 %v1826
      %v1874 = vpop.f32.mrb[0].mxu0
      %v1875 = vadd.f32 0.0, %v1874
      %v1876 = vpop.f32.mrb[0].mxu0
      %v1877 = vpop.f32.mrb[0].mxu0
      %v1878 = vadd.f32 0.0, %v1877
      %v1879 = vpop.f32.mrb[0].mxu0
      %1880 = vmatprep.mubr.bf16.mxu0 0
      %1881 = vmatmul.mubr.bf16.gmra.mrb[0].mxu0 %v1829
      %v1882 = vpop.f32.mrb[0].mxu0
      %v1883 = vadd.f32 0.0, %v1882
      %v1884 = vpop.f32.mrb[0].mxu0
      %v1885 = vpop.f32.mrb[0].mxu0
      %v1886 = vadd.f32 0.0, %v1885
      %v1887 = vpop.f32.mrb[0].mxu0
      %1888 = vmatprep.mubr.bf16.mxu0 0
      %1889 = vmatmul.mubr.bf16.gmra.mrb[0].mxu0 %v1832
      %v1890 = vpop.f32.mrb[0].mxu0
      %v1891 = vadd.f32 0.0, %v1890
      %v1892 = vpop.f32.mrb[0].mxu0
      %v1893 = vpop.f32.mrb[0].mxu0
      %v1894 = vadd.f32 0.0, %v1893
      %v1895 = vpop.f32.mrb[0].mxu0
      %1896 = vmatprep.mubr.bf16.mxu0 0
      %1897 = vmatmul.mubr.bf16.gmra.mrb[0].mxu0 %v1835
      %v1898 = vpop.f32.mrb[0].mxu0
      %v1899 = vadd.f32 0.0, %v1898
      %v1900 = vpop.f32.mrb[0].mxu0
      %v1901 = vpop.f32.mrb[0].mxu0
      %v1902 = vadd.f32 0.0, %v1901
      %v1903 = vpop.f32.mrb[0].mxu0
      %1904 = vdwg.mxu0
      %v1905 = vadd.f32 %v1796, %v1875
      %v1906 = vadd.f32 %v1797, %v1878
      %v1907 = vadd.f32 %v1798, %v1883
      %v1908 = vadd.f32 %v1799, %v1886
      %v1909 = vadd.f32 %v1800, %v1891
      %v1910 = vadd.f32 %v1801, %v1894
      %v1911 = vadd.f32 %v1802, %v1899
      %v1912 = vadd.f32 %v1803, %v1902
      %v1914 = vshrl.u32 %v370, 16
      %v1916 = vrot.slane %v1914, 4
      %v1917 = vshll.u32 %v370, 16
      %v1919 = vrot.slane %v1917, 5
      %v1920 = vor.u32 %v1916, %v1919
      %v1921 = vrot.slane %v1920, 4
      %v1922 = vsel %vm378, %v1921, %v1810
      %s1923 = scalar_lea.vmem %s2, 20
      %v1924 = vld [vmem:[%s1923] sm:$0x3]
      %v1925 = vunpack.c.l.b16 %v1922
      %v1926 = vpack.c.b16 %v771, %v770
      %v1927 = vpack.c.b16 %v773, %v772
      %v1928 = vpack.c.b16 %v775, %v774
      %v1929 = vpack.c.b16 %v1925, %v776
      %v1931 = vsel %vm505, %v1926, 0
      %v1934 = vsel %vm505, %v1927, 0
      %v1937 = vsel %vm505, %v1928, 0
      %v1940 = vsel %vm505, %v1929, 0
      %v1943 = vsel %vm518, %v1924, 0
      %1945 = vmatprep.subr.bf16.mxu0 0
      %1946 = vmatpush1.bf16.msra.mxu0 %v1943
      %1947 = vmatprep.subr.bf16.mxu0 0
      %1948 = vmatpush1.bf16.msra.mxu0 0
      %1949 = vmatprep.subr.bf16.mxu0 0
      %1950 = vmatpush1.bf16.msra.mxu0 0
      %1951 = vmatprep.subr.bf16.mxu0 0
      %1952 = vmatpush1.bf16.msra.mxu0 0
      %1953 = vmatprep.subr.bf16.mxu0 0
      %1954 = vmatpush1.bf16.msra.mxu0 0
      %1955 = vmatprep.subr.bf16.mxu0 0
      %1956 = vmatpush1.bf16.msra.mxu0 0
      %1957 = vmatprep.subr.bf16.mxu0 0
      %1958 = vmatpush1.bf16.msra.mxu0 0
      %1959 = vmatprep.subr.bf16.mxu0 0
      %1960 = vmatpush1.bf16.msra.mxu0 0
      %1961 = vmatprep.subr.bf16.mxu0 0
      %1962 = vmatpush1.bf16.msra.mxu0 0
      %1963 = vmatprep.subr.bf16.mxu0 0
      %1964 = vmatpush1.bf16.msra.mxu0 0
      %1965 = vmatprep.subr.bf16.mxu0 0
      %1966 = vmatpush1.bf16.msra.mxu0 0
      %1967 = vmatprep.subr.bf16.mxu0 0
      %1968 = vmatpush1.bf16.msra.mxu0 0
      %1969 = vmatprep.subr.bf16.mxu0 0
      %1970 = vmatpush1.bf16.msra.mxu0 0
      %1971 = vmatprep.subr.bf16.mxu0 0
      %1972 = vmatpush1.bf16.msra.mxu0 0
      %1973 = vmatprep.subr.bf16.mxu0 0
      %1974 = vmatpush1.bf16.msra.mxu0 0
      %1975 = vmatprep.subr.bf16.mxu0 0
      %1976 = vmatpush1.bf16.msra.mxu0 0
      %1977 = vmatprep.mubr.bf16.mxu0 0
      %1978 = vmatmul.mubr.bf16.gmra.mrb[0].mxu0 %v1931
      %v1979 = vpop.f32.mrb[0].mxu0
      %v1980 = vadd.f32 0.0, %v1979
      %v1981 = vpop.f32.mrb[0].mxu0
      %v1982 = vpop.f32.mrb[0].mxu0
      %v1983 = vadd.f32 0.0, %v1982
      %v1984 = vpop.f32.mrb[0].mxu0
      %1985 = vmatprep.mubr.bf16.mxu0 0
      %1986 = vmatmul.mubr.bf16.gmra.mrb[0].mxu0 %v1934
      %v1987 = vpop.f32.mrb[0].mxu0
      %v1988 = vadd.f32 0.0, %v1987
      %v1989 = vpop.f32.mrb[0].mxu0
      %v1990 = vpop.f32.mrb[0].mxu0
      %v1991 = vadd.f32 0.0, %v1990
      %v1992 = vpop.f32.mrb[0].mxu0
      %1993 = vmatprep.mubr.bf16.mxu0 0
      %1994 = vmatmul.mubr.bf16.gmra.mrb[0].mxu0 %v1937
      %v1995 = vpop.f32.mrb[0].mxu0
      %v1996 = vadd.f32 0.0, %v1995
      %v1997 = vpop.f32.mrb[0].mxu0
      %v1998 = vpop.f32.mrb[0].mxu0
      %v1999 = vadd.f32 0.0, %v1998
      %v2000 = vpop.f32.mrb[0].mxu0
      %2001 = vmatprep.mubr.bf16.mxu0 0
      %2002 = vmatmul.mubr.bf16.gmra.mrb[0].mxu0 %v1940
      %v2003 = vpop.f32.mrb[0].mxu0
      %v2004 = vadd.f32 0.0, %v2003
      %v2005 = vpop.f32.mrb[0].mxu0
      %v2006 = vpop.f32.mrb[0].mxu0
      %v2007 = vadd.f32 0.0, %v2006
      %v2008 = vpop.f32.mrb[0].mxu0
      %2009 = vdwg.mxu0
      %v2010 = vadd.f32 %v1905, %v1980
      %v2011 = vadd.f32 %v1906, %v1983
      %v2012 = vadd.f32 %v1907, %v1988
      %v2013 = vadd.f32 %v1908, %v1991
      %v2014 = vadd.f32 %v1909, %v1996
      %v2015 = vadd.f32 %v1910, %v1999
      %v2016 = vadd.f32 %v1911, %v2004
      %v2017 = vadd.f32 %v1912, %v2007
      %v2020 = vrot.slane %v371, 5
      %v2021 = vrot.slane %v2020, 4
      %v2022 = vrot.slane %v372, 5
      %v2023 = vsel %vm887, %v2021, %v2022
      %s2024 = scalar_lea.vmem %s2, 22
      %v2025 = vld [vmem:[%s2024] sm:$0x3]
      %v2026 = vunpack.c.l.b16 %v2023
      %v2027 = vpack.c.b16 %v924, %v923
      %v2028 = vpack.c.b16 %v926, %v925
      %v2029 = vpack.c.b16 %v928, %v927
      %v2030 = vpack.c.b16 %v2026, %v929
      %v2032 = vsel %vm505, %v2027, 0
      %v2035 = vsel %vm505, %v2028, 0
      %v2038 = vsel %vm505, %v2029, 0
      %v2041 = vsel %vm505, %v2030, 0
      %v2044 = vsel %vm518, %v2025, 0
      %2046 = vmatprep.subr.bf16.mxu0 0
      %2047 = vmatpush1.bf16.msra.mxu0 %v2044
      %2048 = vmatprep.subr.bf16.mxu0 0
      %2049 = vmatpush1.bf16.msra.mxu0 0
      %2050 = vmatprep.subr.bf16.mxu0 0
      %2051 = vmatpush1.bf16.msra.mxu0 0
      %2052 = vmatprep.subr.bf16.mxu0 0
      %2053 = vmatpush1.bf16.msra.mxu0 0
      %2054 = vmatprep.subr.bf16.mxu0 0
      %2055 = vmatpush1.bf16.msra.mxu0 0
      %2056 = vmatprep.subr.bf16.mxu0 0
      %2057 = vmatpush1.bf16.msra.mxu0 0
      %2058 = vmatprep.subr.bf16.mxu0 0
      %2059 = vmatpush1.bf16.msra.mxu0 0
      %2060 = vmatprep.subr.bf16.mxu0 0
      %2061 = vmatpush1.bf16.msra.mxu0 0
      %2062 = vmatprep.subr.bf16.mxu0 0
      %2063 = vmatpush1.bf16.msra.mxu0 0
      %2064 = vmatprep.subr.bf16.mxu0 0
      %2065 = vmatpush1.bf16.msra.mxu0 0
      %2066 = vmatprep.subr.bf16.mxu0 0
      %2067 = vmatpush1.bf16.msra.mxu0 0
      %2068 = vmatprep.subr.bf16.mxu0 0
      %2069 = vmatpush1.bf16.msra.mxu0 0
      %2070 = vmatprep.subr.bf16.mxu0 0
      %2071 = vmatpush1.bf16.msra.mxu0 0
      %2072 = vmatprep.subr.bf16.mxu0 0
      %2073 = vmatpush1.bf16.msra.mxu0 0
      %2074 = vmatprep.subr.bf16.mxu0 0
      %2075 = vmatpush1.bf16.msra.mxu0 0
      %2076 = vmatprep.subr.bf16.mxu0 0
      %2077 = vmatpush1.bf16.msra.mxu0 0
      %2078 = vmatprep.mubr.bf16.mxu0 0
      %2079 = vmatmul.mubr.bf16.gmra.mrb[0].mxu0 %v2032
      %v2080 = vpop.f32.mrb[0].mxu0
      %v2081 = vadd.f32 0.0, %v2080
      %v2082 = vpop.f32.mrb[0].mxu0
      %v2083 = vpop.f32.mrb[0].mxu0
      %v2084 = vadd.f32 0.0, %v2083
      %v2085 = vpop.f32.mrb[0].mxu0
      %2086 = vmatprep.mubr.bf16.mxu0 0
      %2087 = vmatmul.mubr.bf16.gmra.mrb[0].mxu0 %v2035
      %v2088 = vpop.f32.mrb[0].mxu0
      %v2089 = vadd.f32 0.0, %v2088
      %v2090 = vpop.f32.mrb[0].mxu0
      %v2091 = vpop.f32.mrb[0].mxu0
      %v2092 = vadd.f32 0.0, %v2091
      %v2093 = vpop.f32.mrb[0].mxu0
      %2094 = vmatprep.mubr.bf16.mxu0 0
      %2095 = vmatmul.mubr.bf16.gmra.mrb[0].mxu0 %v2038
      %v2096 = vpop.f32.mrb[0].mxu0
      %v2097 = vadd.f32 0.0, %v2096
      %v2098 = vpop.f32.mrb[0].mxu0
      %v2099 = vpop.f32.mrb[0].mxu0
      %v2100 = vadd.f32 0.0, %v2099
      %v2101 = vpop.f32.mrb[0].mxu0
      %2102 = vmatprep.mubr.bf16.mxu0 0
      %2103 = vmatmul.mubr.bf16.gmra.mrb[0].mxu0 %v2041
      %v2104 = vpop.f32.mrb[0].mxu0
      %v2105 = vadd.f32 0.0, %v2104
      %v2106 = vpop.f32.mrb[0].mxu0
      %v2107 = vpop.f32.mrb[0].mxu0
      %v2108 = vadd.f32 0.0, %v2107
      %v2109 = vpop.f32.mrb[0].mxu0
      %2110 = vdwg.mxu0
      %v2111 = vadd.f32 %v2010, %v2081
      %v2112 = vadd.f32 %v2011, %v2084
      %v2113 = vadd.f32 %v2012, %v2089
      %v2114 = vadd.f32 %v2013, %v2092
      %v2115 = vadd.f32 %v2014, %v2097
      %v2116 = vadd.f32 %v2015, %v2100
      %v2117 = vadd.f32 %v2016, %v2105
      %v2118 = vadd.f32 %v2017, %v2108
      %v2120 = vrot.slane %v2022, 4
      %v2121 = vrot.slane %v373, 5
      %v2122 = vsel %vm887, %v2120, %v2121
      %s2123 = scalar_lea.vmem %s2, 24
      %v2124 = vld [vmem:[%s2123] sm:$0x3]
      %v2125 = vunpack.c.l.b16 %v2122
      %v2126 = vpack.c.b16 %v1058, %v1057
      %v2127 = vpack.c.b16 %v1060, %v1059
      %v2128 = vpack.c.b16 %v1062, %v1061
      %v2129 = vpack.c.b16 %v2125, %v1063
      %v2131 = vsel %vm505, %v2126, 0
      %v2134 = vsel %vm505, %v2127, 0
      %v2137 = vsel %vm505, %v2128, 0
      %v2140 = vsel %vm505, %v2129, 0
      %v2143 = vsel %vm518, %v2124, 0
      %2145 = vmatprep.subr.bf16.mxu0 0
      %2146 = vmatpush1.bf16.msra.mxu0 %v2143
      %2147 = vmatprep.subr.bf16.mxu0 0
      %2148 = vmatpush1.bf16.msra.mxu0 0
      %2149 = vmatprep.subr.bf16.mxu0 0
      %2150 = vmatpush1.bf16.msra.mxu0 0
      %2151 = vmatprep.subr.bf16.mxu0 0
      %2152 = vmatpush1.bf16.msra.mxu0 0
      %2153 = vmatprep.subr.bf16.mxu0 0
      %2154 = vmatpush1.bf16.msra.mxu0 0
      %2155 = vmatprep.subr.bf16.mxu0 0
      %2156 = vmatpush1.bf16.msra.mxu0 0
      %2157 = vmatprep.subr.bf16.mxu0 0
      %2158 = vmatpush1.bf16.msra.mxu0 0
      %2159 = vmatprep.subr.bf16.mxu0 0
      %2160 = vmatpush1.bf16.msra.mxu0 0
      %2161 = vmatprep.subr.bf16.mxu0 0
      %2162 = vmatpush1.bf16.msra.mxu0 0
      %2163 = vmatprep.subr.bf16.mxu0 0
      %2164 = vmatpush1.bf16.msra.mxu0 0
      %2165 = vmatprep.subr.bf16.mxu0 0
      %2166 = vmatpush1.bf16.msra.mxu0 0
      %2167 = vmatprep.subr.bf16.mxu0 0
      %2168 = vmatpush1.bf16.msra.mxu0 0
      %2169 = vmatprep.subr.bf16.mxu0 0
      %2170 = vmatpush1.bf16.msra.mxu0 0
      %2171 = vmatprep.subr.bf16.mxu0 0
      %2172 = vmatpush1.bf16.msra.mxu0 0
      %2173 = vmatprep.subr.bf16.mxu0 0
      %2174 = vmatpush1.bf16.msra.mxu0 0
      %2175 = vmatprep.subr.bf16.mxu0 0
      %2176 = vmatpush1.bf16.msra.mxu0 0
      %2177 = vmatprep.mubr.bf16.mxu0 0
      %2178 = vmatmul.mubr.bf16.gmra.mrb[0].mxu0 %v2131
      %v2179 = vpop.f32.mrb[0].mxu0
      %v2180 = vadd.f32 0.0, %v2179
      %v2181 = vpop.f32.mrb[0].mxu0
      %v2182 = vpop.f32.mrb[0].mxu0
      %v2183 = vadd.f32 0.0, %v2182
      %v2184 = vpop.f32.mrb[0].mxu0
      %2185 = vmatprep.mubr.bf16.mxu0 0
      %2186 = vmatmul.mubr.bf16.gmra.mrb[0].mxu0 %v2134
      %v2187 = vpop.f32.mrb[0].mxu0
      %v2188 = vadd.f32 0.0, %v2187
      %v2189 = vpop.f32.mrb[0].mxu0
      %v2190 = vpop.f32.mrb[0].mxu0
      %v2191 = vadd.f32 0.0, %v2190
      %v2192 = vpop.f32.mrb[0].mxu0
      %2193 = vmatprep.mubr.bf16.mxu0 0
      %2194 = vmatmul.mubr.bf16.gmra.mrb[0].mxu0 %v2137
      %v2195 = vpop.f32.mrb[0].mxu0
      %v2196 = vadd.f32 0.0, %v2195
      %v2197 = vpop.f32.mrb[0].mxu0
      %v2198 = vpop.f32.mrb[0].mxu0
      %v2199 = vadd.f32 0.0, %v2198
      %v2200 = vpop.f32.mrb[0].mxu0
      %2201 = vmatprep.mubr.bf16.mxu0 0
      %2202 = vmatmul.mubr.bf16.gmra.mrb[0].mxu0 %v2140
      %v2203 = vpop.f32.mrb[0].mxu0
      %v2204 = vadd.f32 0.0, %v2203
      %v2205 = vpop.f32.mrb[0].mxu0
      %v2206 = vpop.f32.mrb[0].mxu0
      %v2207 = vadd.f32 0.0, %v2206
      %v2208 = vpop.f32.mrb[0].mxu0
      %2209 = vdwg.mxu0
      %v2210 = vadd.f32 %v2111, %v2180
      %v2211 = vadd.f32 %v2112, %v2183
      %v2212 = vadd.f32 %v2113, %v2188
      %v2213 = vadd.f32 %v2114, %v2191
      %v2214 = vadd.f32 %v2115, %v2196
      %v2215 = vadd.f32 %v2116, %v2199
      %v2216 = vadd.f32 %v2117, %v2204
      %v2217 = vadd.f32 %v2118, %v2207
      %v2219 = vshrl.u32 %v373, 16
      %v2221 = vrot.slane %v2219, 5
      %v2222 = vshll.u32 %v373, 16
      %v2224 = vrot.slane %v2222, 6
      %v2225 = vor.u32 %v2221, %v2224
      %v2226 = vrot.slane %v2225, 4
      %v2228 = vshrl.u32 %v374, 16
      %v2230 = vrot.slane %v2228, 5
      %v2231 = vshll.u32 %v374, 16
      %v2233 = vrot.slane %v2231, 6
      %v2234 = vor.u32 %v2230, %v2233
      %v2235 = vsel %vm1158, %v2226, %v2234
      %s2236 = scalar_lea.vmem %s2, 26
      %v2237 = vld [vmem:[%s2236] sm:$0x3]
      %v2238 = vunpack.c.l.b16 %v2235
      %v2239 = vpack.c.b16 %v1307, %v1306
      %v2240 = vpack.c.b16 %v1309, %v1308
      %v2241 = vpack.c.b16 %v1311, %v1310
      %v2242 = vpack.c.b16 %v2238, %v1312
      %v2244 = vsel %vm505, %v2239, 0
      %v2247 = vsel %vm505, %v2240, 0
      %v2250 = vsel %vm505, %v2241, 0
      %v2253 = vsel %vm505, %v2242, 0
      %v2256 = vsel %vm518, %v2237, 0
      %2258 = vmatprep.subr.bf16.mxu0 0
      %2259 = vmatpush1.bf16.msra.mxu0 %v2256
      %2260 = vmatprep.subr.bf16.mxu0 0
      %2261 = vmatpush1.bf16.msra.mxu0 0
      %2262 = vmatprep.subr.bf16.mxu0 0
      %2263 = vmatpush1.bf16.msra.mxu0 0
      %2264 = vmatprep.subr.bf16.mxu0 0
      %2265 = vmatpush1.bf16.msra.mxu0 0
      %2266 = vmatprep.subr.bf16.mxu0 0
      %2267 = vmatpush1.bf16.msra.mxu0 0
      %2268 = vmatprep.subr.bf16.mxu0 0
      %2269 = vmatpush1.bf16.msra.mxu0 0
      %2270 = vmatprep.subr.bf16.mxu0 0
      %2271 = vmatpush1.bf16.msra.mxu0 0
      %2272 = vmatprep.subr.bf16.mxu0 0
      %2273 = vmatpush1.bf16.msra.mxu0 0
      %2274 = vmatprep.subr.bf16.mxu0 0
      %2275 = vmatpush1.bf16.msra.mxu0 0
      %2276 = vmatprep.subr.bf16.mxu0 0
      %2277 = vmatpush1.bf16.msra.mxu0 0
      %2278 = vmatprep.subr.bf16.mxu0 0
      %2279 = vmatpush1.bf16.msra.mxu0 0
      %2280 = vmatprep.subr.bf16.mxu0 0
      %2281 = vmatpush1.bf16.msra.mxu0 0
      %2282 = vmatprep.subr.bf16.mxu0 0
      %2283 = vmatpush1.bf16.msra.mxu0 0
      %2284 = vmatprep.subr.bf16.mxu0 0
      %2285 = vmatpush1.bf16.msra.mxu0 0
      %2286 = vmatprep.subr.bf16.mxu0 0
      %2287 = vmatpush1.bf16.msra.mxu0 0
      %2288 = vmatprep.subr.bf16.mxu0 0
      %2289 = vmatpush1.bf16.msra.mxu0 0
      %2290 = vmatprep.mubr.bf16.mxu0 0
      %2291 = vmatmul.mubr.bf16.gmra.mrb[0].mxu0 %v2244
      %v2292 = vpop.f32.mrb[0].mxu0
      %v2293 = vadd.f32 0.0, %v2292
      %v2294 = vpop.f32.mrb[0].mxu0
      %v2295 = vpop.f32.mrb[0].mxu0
      %v2296 = vadd.f32 0.0, %v2295
      %v2297 = vpop.f32.mrb[0].mxu0
      %2298 = vmatprep.mubr.bf16.mxu0 0
      %2299 = vmatmul.mubr.bf16.gmra.mrb[0].mxu0 %v2247
      %v2300 = vpop.f32.mrb[0].mxu0
      %v2301 = vadd.f32 0.0, %v2300
      %v2302 = vpop.f32.mrb[0].mxu0
      %v2303 = vpop.f32.mrb[0].mxu0
      %v2304 = vadd.f32 0.0, %v2303
      %v2305 = vpop.f32.mrb[0].mxu0
      %2306 = vmatprep.mubr.bf16.mxu0 0
      %2307 = vmatmul.mubr.bf16.gmra.mrb[0].mxu0 %v2250
      %v2308 = vpop.f32.mrb[0].mxu0
      %v2309 = vadd.f32 0.0, %v2308
      %v2310 = vpop.f32.mrb[0].mxu0
      %v2311 = vpop.f32.mrb[0].mxu0
      %v2312 = vadd.f32 0.0, %v2311
      %v2313 = vpop.f32.mrb[0].mxu0
      %2314 = vmatprep.mubr.bf16.mxu0 0
      %2315 = vmatmul.mubr.bf16.gmra.mrb[0].mxu0 %v2253
      %v2316 = vpop.f32.mrb[0].mxu0
      %v2317 = vadd.f32 0.0, %v2316
      %v2318 = vpop.f32.mrb[0].mxu0
      %v2319 = vpop.f32.mrb[0].mxu0
      %v2320 = vadd.f32 0.0, %v2319
      %v2321 = vpop.f32.mrb[0].mxu0
      %2322 = vdwg.mxu0
      %v2323 = vadd.f32 %v2210, %v2293
      %v2324 = vadd.f32 %v2211, %v2296
      %v2325 = vadd.f32 %v2212, %v2301
      %v2326 = vadd.f32 %v2213, %v2304
      %v2327 = vadd.f32 %v2214, %v2309
      %v2328 = vadd.f32 %v2215, %v2312
      %v2329 = vadd.f32 %v2216, %v2317
      %v2330 = vadd.f32 %v2217, %v2320
      %v2331 = vshrl.u32 %v372, 16
      %v2333 = vrot.slane %v2331, 5
      %v2334 = vrot.slane %v1814, 6
      %v2335 = vor.u32 %v2333, %v2334
      %v2336 = vrot.slane %v2335, 4
      %v2337 = vsel %vm1158, %v2336, %v2225
      %s2338 = scalar_lea.vmem %s2, 28
      %v2339 = vld [vmem:[%s2338] sm:$0x3]
      %v2340 = vunpack.c.l.b16 %v2337
      %v2341 = vpack.c.b16 %v1465, %v1464
      %v2342 = vpack.c.b16 %v1467, %v1466
      %v2343 = vpack.c.b16 %v1469, %v1468
      %v2344 = vpack.c.b16 %v2340, %v1470
      %v2346 = vsel %vm505, %v2341, 0
      %v2349 = vsel %vm505, %v2342, 0
      %v2352 = vsel %vm505, %v2343, 0
      %v2355 = vsel %vm505, %v2344, 0
      %v2358 = vsel %vm518, %v2339, 0
      %2360 = vmatprep.subr.bf16.mxu0 0
      %2361 = vmatpush1.bf16.msra.mxu0 %v2358
      %2362 = vmatprep.subr.bf16.mxu0 0
      %2363 = vmatpush1.bf16.msra.mxu0 0
      %2364 = vmatprep.subr.bf16.mxu0 0
      %2365 = vmatpush1.bf16.msra.mxu0 0
      %2366 = vmatprep.subr.bf16.mxu0 0
      %2367 = vmatpush1.bf16.msra.mxu0 0
      %2368 = vmatprep.subr.bf16.mxu0 0
      %2369 = vmatpush1.bf16.msra.mxu0 0
      %2370 = vmatprep.subr.bf16.mxu0 0
      %2371 = vmatpush1.bf16.msra.mxu0 0
      %2372 = vmatprep.subr.bf16.mxu0 0
      %2373 = vmatpush1.bf16.msra.mxu0 0
      %2374 = vmatprep.subr.bf16.mxu0 0
      %2375 = vmatpush1.bf16.msra.mxu0 0
      %2376 = vmatprep.subr.bf16.mxu0 0
      %2377 = vmatpush1.bf16.msra.mxu0 0
      %2378 = vmatprep.subr.bf16.mxu0 0
      %2379 = vmatpush1.bf16.msra.mxu0 0
      %2380 = vmatprep.subr.bf16.mxu0 0
      %2381 = vmatpush1.bf16.msra.mxu0 0
      %2382 = vmatprep.subr.bf16.mxu0 0
      %2383 = vmatpush1.bf16.msra.mxu0 0
      %2384 = vmatprep.subr.bf16.mxu0 0
      %2385 = vmatpush1.bf16.msra.mxu0 0
      %2386 = vmatprep.subr.bf16.mxu0 0
      %2387 = vmatpush1.bf16.msra.mxu0 0
      %2388 = vmatprep.subr.bf16.mxu0 0
      %2389 = vmatpush1.bf16.msra.mxu0 0
      %2390 = vmatprep.subr.bf16.mxu0 0
      %2391 = vmatpush1.bf16.msra.mxu0 0
      %2392 = vmatprep.mubr.bf16.mxu0 0
      %2393 = vmatmul.mubr.bf16.gmra.mrb[0].mxu0 %v2346
      %v2394 = vpop.f32.mrb[0].mxu0
      %v2395 = vadd.f32 0.0, %v2394
      %v2396 = vpop.f32.mrb[0].mxu0
      %v2397 = vpop.f32.mrb[0].mxu0
      %v2398 = vadd.f32 0.0, %v2397
      %v2399 = vpop.f32.mrb[0].mxu0
      %2400 = vmatprep.mubr.bf16.mxu0 0
      %2401 = vmatmul.mubr.bf16.gmra.mrb[0].mxu0 %v2349
      %v2402 = vpop.f32.mrb[0].mxu0
      %v2403 = vadd.f32 0.0, %v2402
      %v2404 = vpop.f32.mrb[0].mxu0
      %v2405 = vpop.f32.mrb[0].mxu0
      %v2406 = vadd.f32 0.0, %v2405
      %v2407 = vpop.f32.mrb[0].mxu0
      %2408 = vmatprep.mubr.bf16.mxu0 0
      %2409 = vmatmul.mubr.bf16.gmra.mrb[0].mxu0 %v2352
      %v2410 = vpop.f32.mrb[0].mxu0
      %v2411 = vadd.f32 0.0, %v2410
      %v2412 = vpop.f32.mrb[0].mxu0
      %v2413 = vpop.f32.mrb[0].mxu0
      %v2414 = vadd.f32 0.0, %v2413
      %v2415 = vpop.f32.mrb[0].mxu0
      %2416 = vmatprep.mubr.bf16.mxu0 0
      %2417 = vmatmul.mubr.bf16.gmra.mrb[0].mxu0 %v2355
      %v2418 = vpop.f32.mrb[0].mxu0
      %v2419 = vadd.f32 0.0, %v2418
      %v2420 = vpop.f32.mrb[0].mxu0
      %v2421 = vpop.f32.mrb[0].mxu0
      %v2422 = vadd.f32 0.0, %v2421
      %v2423 = vpop.f32.mrb[0].mxu0
      %2424 = vdwg.mxu0
      %v2425 = vadd.f32 %v2323, %v2395
      %v2426 = vadd.f32 %v2324, %v2398
      %v2427 = vadd.f32 %v2325, %v2403
      %v2428 = vadd.f32 %v2326, %v2406
      %v2429 = vadd.f32 %v2327, %v2411
      %v2430 = vadd.f32 %v2328, %v2414
      %v2431 = vadd.f32 %v2329, %v2419
      %v2432 = vadd.f32 %v2330, %v2422
      %v2434 = vrot.slane %v373, 6
      %v2435 = vrot.slane %v2434, 4
      %v2436 = vrot.slane %v374, 6
      %v2437 = vsel %vm1573, %v2435, %v2436
      %s2438 = scalar_lea.vmem %s2, 30
      %v2439 = vld [vmem:[%s2438] sm:$0x3]
      %v2440 = vunpack.c.l.b16 %v2437
      %v2441 = vpack.c.b16 %v1610, %v1609
      %v2442 = vpack.c.b16 %v1612, %v1611
      %v2443 = vpack.c.b16 %v1614, %v1613
      %v2444 = vpack.c.b16 %v2440, %v1615
      %v2446 = vsel %vm505, %v2441, 0
      %v2449 = vsel %vm505, %v2442, 0
      %v2452 = vsel %vm505, %v2443, 0
      %v2455 = vsel %vm505, %v2444, 0
      %v2458 = vsel %vm518, %v2439, 0
      %2460 = vmatprep.subr.bf16.mxu0 0
      %2461 = vmatpush1.bf16.msra.mxu0 %v2458
      %2462 = vmatprep.subr.bf16.mxu0 0
      %2463 = vmatpush1.bf16.msra.mxu0 0
      %2464 = vmatprep.subr.bf16.mxu0 0
      %2465 = vmatpush1.bf16.msra.mxu0 0
      %2466 = vmatprep.subr.bf16.mxu0 0
      %2467 = vmatpush1.bf16.msra.mxu0 0
      %2468 = vmatprep.subr.bf16.mxu0 0
      %2469 = vmatpush1.bf16.msra.mxu0 0
      %2470 = vmatprep.subr.bf16.mxu0 0
      %2471 = vmatpush1.bf16.msra.mxu0 0
      %2472 = vmatprep.subr.bf16.mxu0 0
      %2473 = vmatpush1.bf16.msra.mxu0 0
      %2474 = vmatprep.subr.bf16.mxu0 0
      %2475 = vmatpush1.bf16.msra.mxu0 0
      %2476 = vmatprep.subr.bf16.mxu0 0
      %2477 = vmatpush1.bf16.msra.mxu0 0
      %2478 = vmatprep.subr.bf16.mxu0 0
      %2479 = vmatpush1.bf16.msra.mxu0 0
      %2480 = vmatprep.subr.bf16.mxu0 0
      %2481 = vmatpush1.bf16.msra.mxu0 0
      %2482 = vmatprep.subr.bf16.mxu0 0
      %2483 = vmatpush1.bf16.msra.mxu0 0
      %2484 = vmatprep.subr.bf16.mxu0 0
      %2485 = vmatpush1.bf16.msra.mxu0 0
      %2486 = vmatprep.subr.bf16.mxu0 0
      %2487 = vmatpush1.bf16.msra.mxu0 0
      %2488 = vmatprep.subr.bf16.mxu0 0
      %2489 = vmatpush1.bf16.msra.mxu0 0
      %2490 = vmatprep.subr.bf16.mxu0 0
      %2491 = vmatpush1.bf16.msra.mxu0 0
      %2492 = vmatprep.mubr.bf16.mxu0 0
      %2493 = vmatmul.mubr.bf16.gmra.mrb[0].mxu0 %v2446
      %v2494 = vpop.f32.mrb[0].mxu0
      %v2495 = vadd.f32 0.0, %v2494
      %v2496 = vpop.f32.mrb[0].mxu0
      %v2497 = vpop.f32.mrb[0].mxu0
      %v2498 = vadd.f32 0.0, %v2497
      %v2499 = vpop.f32.mrb[0].mxu0
      %2500 = vmatprep.mubr.bf16.mxu0 0
      %2501 = vmatmul.mubr.bf16.gmra.mrb[0].mxu0 %v2449
      %v2502 = vpop.f32.mrb[0].mxu0
      %v2503 = vadd.f32 0.0, %v2502
      %v2504 = vpop.f32.mrb[0].mxu0
      %v2505 = vpop.f32.mrb[0].mxu0
      %v2506 = vadd.f32 0.0, %v2505
      %v2507 = vpop.f32.mrb[0].mxu0
      %2508 = vmatprep.mubr.bf16.mxu0 0
      %2509 = vmatmul.mubr.bf16.gmra.mrb[0].mxu0 %v2452
      %v2510 = vpop.f32.mrb[0].mxu0
      %v2511 = vadd.f32 0.0, %v2510
      %v2512 = vpop.f32.mrb[0].mxu0
      %v2513 = vpop.f32.mrb[0].mxu0
      %v2514 = vadd.f32 0.0, %v2513
      %v2515 = vpop.f32.mrb[0].mxu0
      %2516 = vmatprep.mubr.bf16.mxu0 0
      %2517 = vmatmul.mubr.bf16.gmra.mrb[0].mxu0 %v2455
      %v2518 = vpop.f32.mrb[0].mxu0
      %v2519 = vadd.f32 0.0, %v2518
      %v2520 = vpop.f32.mrb[0].mxu0
      %v2521 = vpop.f32.mrb[0].mxu0
      %v2522 = vadd.f32 0.0, %v2521
      %v2523 = vpop.f32.mrb[0].mxu0
      %2524 = vdwg.mxu0
      %v2525 = vadd.f32 %v2425, %v2495
      %v2526 = vadd.f32 %v2426, %v2498
      %v2527 = vadd.f32 %v2427, %v2503
      %v2528 = vadd.f32 %v2428, %v2506
      %v2529 = vadd.f32 %v2429, %v2511
      %v2530 = vadd.f32 %v2430, %v2514
      %v2531 = vadd.f32 %v2431, %v2519
      %v2532 = vadd.f32 %v2432, %v2522
      %v2533 = vpack.c.bf16 %v2525, %v2525
      %v2534 = vpack.c.bf16 %v2526, %v2526
      %v2535 = vpack.c.bf16 %v2527, %v2527
      %v2536 = vpack.c.bf16 %v2528, %v2528
      %v2537 = vpack.c.bf16 %v2529, %v2529
      %v2538 = vpack.c.bf16 %v2530, %v2530
      %v2539 = vpack.c.bf16 %v2531, %v2531
      %v2540 = vpack.c.bf16 %v2532, %v2532
      %2541 = vst [vmem:[%s321] sm:$0xf] %v2533
      %2542 = vst [vmem:[%s321 + $0x4] sm:$0xf] %v2534
      %2543 = vst [vmem:[%s321 + $0x8] sm:$0xf] %v2535
      %2544 = vst [vmem:[%s321 + $0xc] sm:$0xf] %v2536
      %2545 = vst [vmem:[%s321 + $0x10] sm:$0xf] %v2537
      %2546 = vst [vmem:[%s321 + $0x14] sm:$0xf] %v2538
      %2547 = vst [vmem:[%s321 + $0x18] sm:$0xf] %v2539
      %2548 = vst [vmem:[%s321 + $0x1c] sm:$0xf] %v2540
      %v2549 = vadd.f32 %v2525, %v2526
      %v2550 = vadd.f32 %v2549, %v2527
      %v2551 = vadd.f32 %v2550, %v2528
      %v2552 = vadd.f32 %v2551, %v2529
      %v2553 = vadd.f32 %v2552, %v2530
      %v2554 = vadd.f32 %v2553, %v2531
      %v2555 = vadd.f32 %v2554, %v2532
      %v2556 = vrot.slane %v2555, 4
      %v2557 = vadd.f32 %v2555, %v2556
      %v2558 = vrot.slane %v2557, 2
      %v2559 = vadd.f32 %v2557, %v2558
      %v2560 = vrot.slane %v2559, 1
      %v2561 = vadd.f32 %v2559, %v2560
      %2562 = vst [vmem:[%s327] sm:$0x1] %v2561
      %v2563 = vmul.f32 %v2525, %v2525
      %v2564 = vmul.f32 %v2526, %v2526
      %v2565 = vmul.f32 %v2527, %v2527
      %v2566 = vmul.f32 %v2528, %v2528
      %v2567 = vmul.f32 %v2529, %v2529
      %v2568 = vmul.f32 %v2530, %v2530
      %v2569 = vmul.f32 %v2531, %v2531
      %v2570 = vmul.f32 %v2532, %v2532
      %v2571 = vadd.f32 %v2563, %v2564
      %v2572 = vadd.f32 %v2571, %v2565
      %v2573 = vadd.f32 %v2572, %v2566
      %v2574 = vadd.f32 %v2573, %v2567
      %v2575 = vadd.f32 %v2574, %v2568
      %v2576 = vadd.f32 %v2575, %v2569
      %v2577 = vadd.f32 %v2576, %v2570
      %v2578 = vrot.slane %v2577, 4
      %v2579 = vadd.f32 %v2577, %v2578
      %v2580 = vrot.slane %v2579, 2
      %v2581 = vadd.f32 %v2579, %v2580
      %v2582 = vrot.slane %v2581, 1
      %v2583 = vadd.f32 %v2581, %v2582
      %2584 = vst [vmem:[%s327 + $0x1] sm:$0x1] %v2583
      %s2585 = smul.u32 8, %s21
      %p2586 = scmp.lt.s32.totalorder %s20, 1
      %s2587 = scalar_select %p2586, %s20, 1
      %p2588 = scmp.lt.s32.totalorder %s2585, 7
      %s2589 = scalar_select %p2588, %s2585, 7
      %s2590 = smul.addr %s2587, 8
      %s2591 = sadd.s32 %s2589, %s2590
      %s2592 = smul.addr %s2591, 4
      %s2593 = scalar_lea.vmem %s3, %s2592
      %s2594 = sadd.s32 %s20, %s21
      %p2595 = scmp.lt.s32.totalorder %s2594, 1
      %s2596 = scalar_select %p2595, %s2594, 1
      %s2597 = smul.addr %s2596, 2
      %s2598 = scalar_lea.vmem %s4, %s2597
      // Predicated region
      $region33: #{convblock_forward.2} parent=31 // pred_check
        %p2599 = pneg %p129
      $region34: #{convblock_forward.2} parent=31 // pred_check_branch
        %2601 = sbr.rel (%p2599) target = $region36
      $region35: #{convblock_forward.2} parent=31 // pred_region
        %s2602 = smul.u32 8, %s21
      $region36: #{convblock_forward.2} parent=31 // pred_fallthru
        _
      // Predicated region
      $region37: #{convblock_forward.2} parent=31 // pred_check
        %p2603 = pneg %p157
      $region38: #{convblock_forward.2} parent=31 // pred_check_branch
        %2605 = sbr.rel (%p2603) target = $region40
      $region39: #{convblock_forward.2} parent=31 // pred_region
        %s2606 = sadd.s32 %s20, %s21
      $region40: #{convblock_forward.2} parent=31 // pred_fallthru
        _
    $region32: #{convblock_forward.2} parent=5 // pred_fallthru
      _
    %p2607 = scmp.le.s32.totalorder 2, %s11
    // Predicated region
    $region41: #{convblock_forward.2} parent=5 // pred_check
      %p2608 = pneg %p2607
    $region42: #{convblock_forward.2} parent=5 // pred_check_branch
      %2610 = sbr.rel (%p2608) target = $region44
    $region43: #{convblock_forward.2} parent=5 // pred_region
      %s2611 = ssub.s32 %s11, 2
      // Predicated region
      $region45: #{convblock_forward.2} parent=43 // pred_check
        %p2612 = pneg %p135
      $region46: #{convblock_forward.2} parent=43 // pred_check_branch
        %2614 = sbr.rel (%p2612) target = $region48
      $region47: #{convblock_forward.2} parent=43 // pred_region
        %s2615 = smul.u32 8, %s23
        %p2616 = scmp.lt.s32.totalorder %s22, 1
        %s2617 = scalar_select %p2616, %s22, 1
        %p2618 = scmp.lt.s32.totalorder %s2615, 7
        %s2619 = scalar_select %p2618, %s2615, 7
        %s2620 = smul.addr %s2617, 8
        %s2621 = sadd.s32 %s2619, %s2620
        %s2622 = smul.addr %s2621, 4
        %s2623 = scalar_lea.vmem %s3, %s2622
      $region48: #{convblock_forward.2} parent=43 // pred_fallthru
        _
      // Predicated region
      $region49: #{convblock_forward.2} parent=43 // pred_check
        %p2624 = pneg %p163
      $region50: #{convblock_forward.2} parent=43 // pred_check_branch
        %2626 = sbr.rel (%p2624) target = $region52
      $region51: #{convblock_forward.2} parent=43 // pred_region
        %s2627 = sadd.s32 %s22, %s23
        %p2628 = scmp.lt.s32.totalorder %s2627, 1
        %s2629 = scalar_select %p2628, %s2627, 1
        %s2630 = smul.addr %s2629, 2
        %s2631 = scalar_lea.vmem %s4, %s2630
      $region52: #{convblock_forward.2} parent=43 // pred_fallthru
        _
    $region44: #{convblock_forward.2} parent=5 // pred_fallthru
      _
  $region6: #{convblock_forward.2} parent=0 // loop_footer
    %s15 = sadd.s32 1, %s11
  $region7: #{convblock_forward.2} parent=0 // loop_footer_branch
    %10 = sbr.rel target = $region3
  $region8: #{convblock_forward.2} parent=0 // loop_exit
    _

</llo_original>
